<compile_context>
chip_gen: v5e
topology: v5e:2x2
jax: 0.10.0
libtpu: 0.0.40
codegen_flags: <defaults>
</compile_context>

<pallas_src>
import math

import jax
import jax.numpy as jnp
from jax.experimental import pallas as pl
from jax.experimental.pallas import tpu as pltpu


# ------------------------------ fused kernel -------------------------------

def make_kernel(cfg):
    D = cfg["d_model"]
    H = cfg["n_head"]
    Dh = D // H
    assert H * Dh == D
    hist = cfg["hist_len"]
    cntx = cfg["cntx_len"]
    pred = cfg["pred_len"]
    Sd = cntx + pred
    n_enc = cfg["num_encoder_layers"]
    n_dec = cfg["num_decoder_layers"]
    dff = cfg["dim_feedforward"]
    scale = 1.0 / math.sqrt(Dh)
    eps = 1e-5

    def dot(a, b):                       # a @ b on the MXU, f32 accumulation
        return jax.lax.dot_general(a, b, (((1,), (0,)), ((), ())),
                                   preferred_element_type=jnp.float32)

    def layer_norm(x, gb):               # PyTorch LayerNorm (biased variance)
        g, b = gb[0:1, :], gb[1:2, :]
        mu = jnp.mean(x, axis=-1, keepdims=True)
        cen = x - mu
        var = jnp.mean(cen * cen, axis=-1, keepdims=True)
        return cen * jax.lax.rsqrt(var + eps) * g + b

    def mha(q_src, kv_src, w, b):
        """nn.MultiheadAttention (eval, no mask).

        w: [D, 4D] = [Wq | Wk | Wv | Wo]
        b: [2, 4D]; row0 = [q_bias | k_bias | v_bias | 0],
                    row1 = [0 | 0 | 0 | out_bias]
        kv_src is None  => self-attention (one fused full-width projection).
        """
        b_in, b_out = b[0:1, :], b[1:2, :]
        # Full-width projections: unused lane blocks are free on the MXU and
        # simply discarded, so no weight lane-slicing is ever needed.
        q_full = dot(q_src, w) + b_in                    # lanes [0, D):  q
        kv_full = q_full if kv_src is None else dot(kv_src, w) + b_in
        #                                                 lanes [D, 3D): k | v
        # Head-batched layout [H, S, Dh] built from static lane slices.
        qh = jnp.stack([q_full[:, h * Dh:(h + 1) * Dh] for h in range(H)], 0)
        kh = jnp.stack([kv_full[:, D + h * Dh:D + (h + 1) * Dh]
                        for h in range(H)], 0)
        vh = jnp.stack([kv_full[:, 2 * D + h * Dh:2 * D + (h + 1) * Dh]
                        for h in range(H)], 0)
        s = jnp.einsum("hqd,hkd->hqk", qh, kh,
                       preferred_element_type=jnp.float32) * scale
        s = s - jnp.max(s, axis=-1, keepdims=True)
        p = jnp.exp(s)
        # Softmax denominator on the EUP (approx reciprocal), off the VALU.
        p = p * pl.reciprocal(jnp.sum(p, axis=-1, keepdims=True), approx=True)
        o = jnp.einsum("hqk,hkd->hqd", p, vh,
                       preferred_element_type=jnp.float32)         # [H, Sq, Dh]
        att = jnp.concatenate([o[h] for h in range(H)], axis=-1)   # [Sq, D]
        # Single output projection: reuse the same [D,4D] slab; result lives
        # in lanes [3D, 4D) (bias row1 already sits there).
        return (dot(att, w) + b_out)[:, 3 * D:]

    def ffn(x, w1, w2, fb):
        h = jnp.maximum(dot(x, w1) + fb[0:1, :dff], 0.0)
        return dot(h, w2) + fb[1:2, :D]

    def kernel(enc_in_ref, dec_in_ref,
               emb_w_ref, attn_w_ref, attn_b_ref, ln_ref,
               f1w_ref, f2w_ref, fb_ref, proj_ref,
               out_ref):
        # Input embeddings: time-feature embedding + bias already folded into
        # the [c_in+freq+1, D] weights (inputs carry a trailing ones column).
        enc = dot(enc_in_ref[...], emb_w_ref[0])            # [hist, D]
        dec = dot(dec_in_ref[...], emb_w_ref[1])            # [Sd, D]

        a = l = f = 0
        # ---- encoder (post-LN) ----
        for _ in range(n_enc):
            sa = mha(enc, None, attn_w_ref[a], attn_b_ref[a]); a += 1
            enc = layer_norm(enc + sa, ln_ref[l]); l += 1
            ff = ffn(enc, f1w_ref[f], f2w_ref[f], fb_ref[f]); f += 1
            enc = layer_norm(enc + ff, ln_ref[l]); l += 1
        enc = layer_norm(enc, ln_ref[l]); l += 1             # encoder.norm

        # ---- decoder (reference forward passes no tgt mask) ----
        for _ in range(n_dec):
            sa = mha(dec, None, attn_w_ref[a], attn_b_ref[a]); a += 1
            dec = layer_norm(dec + sa, ln_ref[l]); l += 1
            ca = mha(dec, enc, attn_w_ref[a], attn_b_ref[a]); a += 1
            dec = layer_norm(dec + ca, ln_ref[l]); l += 1
            ff = ffn(dec, f1w_ref[f], f2w_ref[f], fb_ref[f]); f += 1
            dec = layer_norm(dec + ff, ln_ref[l]); l += 1
        dec = layer_norm(dec, ln_ref[l]); l += 1             # decoder.norm

        # ---- projection; keep only the last pred_len steps ----
        pw = proj_ref[...]                                   # [D+1, c_out]
        out = dot(dec[Sd - pred:, :], pw[:D, :]) + pw[D:, :]
        out_ref[...] = out.astype(out_ref.dtype)

    return kernel


# ----------------- weight packing (host side, done ONCE) -------------------

def pack_params(params, cfg):
    """Fold + stack the param pytree into 8 kernel-ready constant buffers."""
    D = cfg["d_model"]
    dff = cfg["dim_feedforward"]
    f32 = jnp.float32

    tfe_w, tfe_b = params["tfe"]["w"], params["tfe"]["b"]

    def fold_emb(emb):
        # rows: [Wx ; tfe_w @ Wm ; tfe_b @ Wm + b]  ->  [c_in + freq + 1, D]
        return jnp.concatenate(
            [emb["wx"], tfe_w @ emb["wm"], tfe_b @ emb["wm"] + emb["b"]], 0)

    emb_w = jnp.stack([fold_emb(params["enc_emb"]),
                       fold_emb(params["dec_emb"])], 0)

    attn = [lp["self_attn"] for lp in params["enc_layers"]]
    for lp in params["dec_layers"]:
        attn += [lp["self_attn"], lp["cross_attn"]]

    def attn_w_one(p):                              # [D, 4D] = [Wq|Wk|Wv|Wo]
        return jnp.concatenate([p["in_w"], p["out_w"]], axis=1)

    def attn_b_one(p):                              # [2, 4D]
        row0 = jnp.concatenate([p["in_b"], jnp.zeros((1, D), f32)], axis=1)
        row1 = jnp.concatenate([jnp.zeros((1, 3 * D), f32), p["out_b"]], axis=1)
        return jnp.concatenate([row0, row1], axis=0)

    attn_w = jnp.stack([attn_w_one(p) for p in attn], 0)
    attn_b = jnp.stack([attn_b_one(p) for p in attn], 0)

    lns = []
    for lp in params["enc_layers"]:
        lns += [lp["ln1"], lp["ln2"]]
    lns.append(params["enc_norm"])
    for lp in params["dec_layers"]:
        lns += [lp["ln1"], lp["ln2"], lp["ln3"]]
    lns.append(params["dec_norm"])
    ln_gb = jnp.stack([jnp.concatenate([p["g"], p["b"]], 0) for p in lns], 0)

    ffs = params["enc_layers"] + params["dec_layers"]
    f1w = jnp.stack([lp["lin1"]["w"] for lp in ffs], 0)      # [NF, D, dff]
    f2w = jnp.stack([lp["lin2"]["w"] for lp in ffs], 0)      # [NF, dff, D]
    W = max(dff, D)

    def ffn_b_one(lp):                                       # [2, W]
        b1 = jnp.pad(lp["lin1"]["b"], ((0, 0), (0, W - dff)))
        b2 = jnp.pad(lp["lin2"]["b"], ((0, 0), (0, W - D)))
        return jnp.concatenate([b1, b2], axis=0)

    ffn_b = jnp.stack([ffn_b_one(lp) for lp in ffs], 0)

    proj_wb = jnp.concatenate([params["proj"]["w"], params["proj"]["b"]], 0)

    return dict(emb_w=emb_w, attn_w=attn_w, attn_b=attn_b, ln_gb=ln_gb,
                f1w=f1w, f2w=f2w, ffn_b=ffn_b, proj_wb=proj_wb)


_PACK_ORDER = ("emb_w", "attn_w", "attn_b", "ln_gb",
               "f1w", "f2w", "ffn_b", "proj_wb")


# ------------------------------- forward fn --------------------------------

def make_forward(cfg):
    kernel = make_kernel(cfg)
    hist, cntx, pred = cfg["hist_len"], cfg["cntx_len"], cfg["pred_len"]
    Sd = cntx + pred
    c_in, c_out, freq = cfg["c_in"], cfg["c_out"], cfg["freq_dim"]
    F = c_in + freq + 1

    def forward(packed, x, x_mark, y_mark):
        B = x.shape[0]
        # Build the two streamed data blocks (values | time marks | ones-col).
        ones_h = jnp.ones((B, hist, 1), jnp.float32)
        ones_d = jnp.ones((B, Sd, 1), jnp.float32)
        enc_in = jnp.concatenate([x, x_mark, ones_h], -1).reshape(B * hist, F)
        dec_vals = jnp.concatenate(
            [x[:, hist - cntx:, :], jnp.zeros((B, pred, c_in), x.dtype)], 1)
        dec_in = jnp.concatenate([dec_vals, y_mark, ones_d], -1).reshape(B * Sd, F)

        flat = [packed[n] for n in _PACK_ORDER]

        def const_spec(p):
            zeros = (0,) * p.ndim
            return pl.BlockSpec(p.shape, lambda b: zeros)

        in_specs = [
            pl.BlockSpec((hist, F), lambda b: (b, 0)),
            pl.BlockSpec((Sd, F), lambda b: (b, 0)),
        ] + [const_spec(p) for p in flat]

        out = pl.pallas_call(
            kernel,
            out_shape=jax.ShapeDtypeStruct((B * pred, c_out), x.dtype),
            grid=(B,),
            in_specs=in_specs,
            out_specs=pl.BlockSpec((pred, c_out), lambda b: (b, 0)),
            compiler_params=pltpu.CompilerParams(
                dimension_semantics=("parallel",)),
        )(enc_in, dec_in, *flat)
        return out.reshape(B, pred, c_out)

    return forward


# ---------------------------- pure-JAX reference ----------------------------

def reference_forward(params, x, x_mark, y_mark, cfg):
    D = cfg["d_model"]
    H = cfg["n_head"]
    Dh = D // H
    hist, cntx, pred = cfg["hist_len"], cfg["cntx_len"], cfg["pred_len"]

    def linear(t, w, b):
        return t @ w + b

    def ln(t, g, b, eps=1e-5):
        mu = t.mean(-1, keepdims=True)
        var = ((t - mu) ** 2).mean(-1, keepdims=True)
        return (t - mu) / jnp.sqrt(var + eps) * g + b

    def mha(q_in, kv_in, p):
        B, Sq, _ = q_in.shape
        Sk = kv_in.shape[1]
        in_w, in_b = p["in_w"], p["in_b"]
        q = q_in @ in_w[:, :D] + in_b[:, :D]
        k = kv_in @ in_w[:, D:2 * D] + in_b[:, D:2 * D]
        v = kv_in @ in_w[:, 2 * D:] + in_b[:, 2 * D:]
        sp = lambda t, S: t.reshape(B, S, H, Dh).transpose(0, 2, 1, 3)
        q, k, v = sp(q, Sq), sp(k, Sk), sp(v, Sk)
        s = jnp.einsum("bhqd,bhkd->bhqk", q, k) / math.sqrt(Dh)
        w = jax.nn.softmax(s, axis=-1)
        o = jnp.einsum("bhqk,bhkd->bhqd", w, v)
        o = o.transpose(0, 2, 1, 3).reshape(B, Sq, D)
        return o @ p["out_w"] + p["out_b"]

    B = x.shape[0]
    mark = jnp.concatenate([x_mark, y_mark], axis=1)
    mark = linear(mark, params["tfe"]["w"], params["tfe"]["b"])
    enc_inp = jnp.concatenate([x, mark[:, :hist]], axis=-1)
    dec_vals = jnp.concatenate(
        [x[:, -cntx:], jnp.zeros((B, pred, x.shape[-1]), x.dtype)], axis=1)
    dec_inp = jnp.concatenate([dec_vals, mark[:, -(cntx + pred):]], axis=-1)

    enc_w = jnp.concatenate([params["enc_emb"]["wx"], params["enc_emb"]["wm"]], axis=0)
    dec_w = jnp.concatenate([params["dec_emb"]["wx"], params["dec_emb"]["wm"]], axis=0)
    enc = linear(enc_inp, enc_w, params["enc_emb"]["b"])
    out = linear(dec_inp, dec_w, params["dec_emb"]["b"])

    for lp in params["enc_layers"]:
        enc = ln(enc + mha(enc, enc, lp["self_attn"]), lp["ln1"]["g"], lp["ln1"]["b"])
        ff = jax.nn.relu(linear(enc, lp["lin1"]["w"], lp["lin1"]["b"]))
        ff = linear(ff, lp["lin2"]["w"], lp["lin2"]["b"])
        enc = ln(enc + ff, lp["ln2"]["g"], lp["ln2"]["b"])
    enc = ln(enc, params["enc_norm"]["g"], params["enc_norm"]["b"])

    for lp in params["dec_layers"]:
        out = ln(out + mha(out, out, lp["self_attn"]), lp["ln1"]["g"], lp["ln1"]["b"])
        out = ln(out + mha(out, enc, lp["cross_attn"]), lp["ln2"]["g"], lp["ln2"]["b"])
        ff = jax.nn.relu(linear(out, lp["lin1"]["w"], lp["lin1"]["b"]))
        ff = linear(ff, lp["lin2"]["w"], lp["lin2"]["b"])
        out = ln(out + ff, lp["ln3"]["g"], lp["ln3"]["b"])
    out = ln(out, params["dec_norm"]["g"], params["dec_norm"]["b"])
    out = linear(out, params["proj"]["w"], params["proj"]["b"])
    return out[:, -pred:, :]


# ------------------------- deterministic param init ------------------------

def _linear_init(key, fan_in, fan_out):
    kw, kb = jax.random.split(key)
    bound = 1.0 / math.sqrt(fan_in)
    w = jax.random.uniform(kw, (fan_in, fan_out), jnp.float32, -bound, bound)
    b = jax.random.uniform(kb, (1, fan_out), jnp.float32, -bound, bound)
    return w, b


def _attn_init(key, d_model):
    k1, k2 = jax.random.split(key)
    in_w, in_b = _linear_init(k1, d_model, 3 * d_model)     # fused QKV in_proj
    out_w, out_b = _linear_init(k2, d_model, d_model)
    return {"in_w": in_w, "in_b": in_b, "out_w": out_w, "out_b": out_b}


def init_params(key, cfg):
    D = cfg["d_model"]
    dff = cfg["dim_feedforward"]
    emb = cfg["embedding_dim"]
    c_in = cfg["c_in"]
    keys = iter(jax.random.split(key, 256))
    nk = lambda: next(keys)

    def ln(d):
        return {"g": jnp.ones((1, d), jnp.float32), "b": jnp.zeros((1, d), jnp.float32)}

    def lin(i, o):
        w, b = _linear_init(nk(), i, o)
        return {"w": w, "b": b}

    ew, eb = _linear_init(nk(), c_in + emb, D)
    dw, db = _linear_init(nk(), c_in + emb, D)
    params = {
        "tfe": lin(cfg["freq_dim"], emb),
        # embedding weight rows split so the feature-concat folds at pack time
        "enc_emb": {"wx": ew[:c_in], "wm": ew[c_in:], "b": eb},
        "dec_emb": {"wx": dw[:c_in], "wm": dw[c_in:], "b": db},
        "enc_layers": [], "dec_layers": [],
        "enc_norm": ln(D), "dec_norm": ln(D),
        "proj": lin(D, cfg["c_out"]),
    }
    for _ in range(cfg["num_encoder_layers"]):
        params["enc_layers"].append({
            "self_attn": _attn_init(nk(), D),
            "ln1": ln(D),
            "lin1": lin(D, dff),
            "lin2": lin(dff, D),
            "ln2": ln(D),
        })
    for _ in range(cfg["num_decoder_layers"]):
        params["dec_layers"].append({
            "self_attn": _attn_init(nk(), D),
            "ln1": ln(D),
            "cross_attn": _attn_init(nk(), D),
            "ln2": ln(D),
            "lin1": lin(D, dff),
            "lin2": lin(dff, D),
            "ln3": ln(D),
        })
    return params


# ---------------------------------- main ------------------------------------

if __name__ == "__main__":
    cfg = dict(
        c_in=4, c_out=4,
        hist_len=16, cntx_len=8, pred_len=8,
        d_model=32, n_head=4,
        num_encoder_layers=2, num_decoder_layers=2,
        dim_feedforward=64,
        embedding_dim=10,
        freq_dim=5,   # freq='H' -> 5 time features
    )
    key = jax.random.PRNGKey(0)
    pkey, xkey, xmkey, ymkey = jax.random.split(key, 4)
    params = init_params(pkey, cfg)

    # Pack/fold weights ONCE, outside the jitted forward (review item 1).
    packed = pack_params(params, cfg)
    packed = jax.tree_util.tree_map(jax.block_until_ready, packed)

    B = 2
    x = jax.random.normal(xkey, (B, cfg["hist_len"], cfg["c_in"]), jnp.float32)
    x_mark = jax.random.normal(xmkey, (B, cfg["hist_len"], cfg["freq_dim"]), jnp.float32)
    y_mark = jax.random.normal(
        ymkey, (B, cfg["cntx_len"] + cfg["pred_len"], cfg["freq_dim"]), jnp.float32)

    fwd = jax.jit(make_forward(cfg))
    out = fwd(packed, x, x_mark, y_mark)
    out = jax.block_until_ready(out)

    assert out.shape == (B, cfg["pred_len"], cfg["c_out"]), out.shape
    assert bool(jnp.all(jnp.isfinite(out)))

    ref = reference_forward(params, x, x_mark, y_mark, cfg)
    err = float(jnp.max(jnp.abs(out - ref)))
    # Tolerance allows for the EUP approx-reciprocal softmax denominator
    # (~1e-4 relative) accumulated over 6 attention layers plus f32
    # re-association from the host-side weight folding.
    assert err < 5e-3, f"max abs error vs reference: {err}"
    print("KERNEL_OK")
</pallas_src>

<mosaic_0001>
module attributes {stable_mosaic.version = 11 : i64} {
  func.func @kernel(%arg0: i32, %arg1: memref<16x10xf32, #tpu.memory_space<vmem>>, %arg2: memref<16x10xf32, #tpu.memory_space<vmem>>, %arg3: memref<2x10x32xf32, #tpu.memory_space<vmem>>, %arg4: memref<6x32x128xf32, #tpu.memory_space<vmem>>, %arg5: memref<6x2x128xf32, #tpu.memory_space<vmem>>, %arg6: memref<12x2x32xf32, #tpu.memory_space<vmem>>, %arg7: memref<4x32x64xf32, #tpu.memory_space<vmem>>, %arg8: memref<4x64x32xf32, #tpu.memory_space<vmem>>, %arg9: memref<4x2x64xf32, #tpu.memory_space<vmem>>, %arg10: memref<33x4xf32, #tpu.memory_space<vmem>>, %arg11: memref<8x4xf32, #tpu.memory_space<vmem>>) attributes {dimension_semantics = [#tpu.dimension_semantics<parallel>], iteration_bounds = array<i64: 2>, scalar_prefetch = 0 : i64, scratch_operands = 0 : i64, tpu.core_type = #tpu.core_type<tc>, window_params = [{transform_indices = @transform_0, window_bounds = array<i64: 16, 10>}, {transform_indices = @transform_1, window_bounds = array<i64: 16, 10>}, {pipeline_mode = #tpu.pipeline_mode<synchronous>, transform_indices = @transform_2, window_bounds = array<i64: 2, 10, 32>}, {pipeline_mode = #tpu.pipeline_mode<synchronous>, transform_indices = @transform_3, window_bounds = array<i64: 6, 32, 128>}, {pipeline_mode = #tpu.pipeline_mode<synchronous>, transform_indices = @transform_4, window_bounds = array<i64: 6, 2, 128>}, {pipeline_mode = #tpu.pipeline_mode<synchronous>, transform_indices = @transform_5, window_bounds = array<i64: 12, 2, 32>}, {pipeline_mode = #tpu.pipeline_mode<synchronous>, transform_indices = @transform_6, window_bounds = array<i64: 4, 32, 64>}, {pipeline_mode = #tpu.pipeline_mode<synchronous>, transform_indices = @transform_7, window_bounds = array<i64: 4, 64, 32>}, {pipeline_mode = #tpu.pipeline_mode<synchronous>, transform_indices = @transform_8, window_bounds = array<i64: 4, 2, 64>}, {pipeline_mode = #tpu.pipeline_mode<synchronous>, transform_indices = @transform_9, window_bounds = array<i64: 33, 4>}, {transform_indices = @transform_10, window_bounds = array<i64: 8, 4>}]} {
    %c0 = arith.constant 0 : index
    %c0_0 = arith.constant 0 : index
    %0 = vector.load %arg1[%c0, %c0_0] : memref<16x10xf32, #tpu.memory_space<vmem>>, vector<16x10xf32>
    %c0_1 = arith.constant 0 : index
    %c0_2 = arith.constant 0 : index
    %c0_3 = arith.constant 0 : index
    %1 = vector.load %arg3[%c0_1, %c0_2, %c0_3] : memref<2x10x32xf32, #tpu.memory_space<vmem>>, vector<1x10x32xf32>
    %2 = vector.shape_cast %1 : vector<1x10x32xf32> to vector<10x32xf32>
    %cst = arith.constant dense<0.000000e+00> : vector<16x32xf32>
    %3 = tpu.matmul %0, %2, %cst {dimension_numbers = #tpu.dot_dimension_numbers<[1], [0], [0], [1], [0, 0, 1, 1], [], []>} : vector<16x10xf32>, vector<10x32xf32>, vector<16x32xf32> -> vector<16x32xf32>
    %c0_4 = arith.constant 0 : index
    %c0_5 = arith.constant 0 : index
    %4 = vector.load %arg2[%c0_4, %c0_5] : memref<16x10xf32, #tpu.memory_space<vmem>>, vector<16x10xf32>
    %c1 = arith.constant 1 : index
    %c0_6 = arith.constant 0 : index
    %c0_7 = arith.constant 0 : index
    %5 = vector.load %arg3[%c1, %c0_6, %c0_7] : memref<2x10x32xf32, #tpu.memory_space<vmem>>, vector<1x10x32xf32>
    %6 = vector.shape_cast %5 : vector<1x10x32xf32> to vector<10x32xf32>
    %cst_8 = arith.constant dense<0.000000e+00> : vector<16x32xf32>
    %7 = tpu.matmul %4, %6, %cst_8 {dimension_numbers = #tpu.dot_dimension_numbers<[1], [0], [0], [1], [0, 0, 1, 1], [], []>} : vector<16x10xf32>, vector<10x32xf32>, vector<16x32xf32> -> vector<16x32xf32>
    %c0_9 = arith.constant 0 : index
    %c0_10 = arith.constant 0 : index
    %c0_11 = arith.constant 0 : index
    %8 = vector.load %arg4[%c0_9, %c0_10, %c0_11] : memref<6x32x128xf32, #tpu.memory_space<vmem>>, vector<1x32x128xf32>
    %9 = vector.shape_cast %8 : vector<1x32x128xf32> to vector<32x128xf32>
    %c0_12 = arith.constant 0 : index
    %c0_13 = arith.constant 0 : index
    %c0_14 = arith.constant 0 : index
    %10 = vector.load %arg5[%c0_12, %c0_13, %c0_14] : memref<6x2x128xf32, #tpu.memory_space<vmem>>, vector<1x2x128xf32>
    %11 = vector.shape_cast %10 : vector<1x2x128xf32> to vector<2x128xf32>
    %12 = vector.extract_strided_slice %11 {offsets = [0, 0], sizes = [1, 128], strides = [1, 1]} : vector<2x128xf32> to vector<1x128xf32>
    %13 = vector.extract_strided_slice %11 {offsets = [1, 0], sizes = [1, 128], strides = [1, 1]} : vector<2x128xf32> to vector<1x128xf32>
    %cst_15 = arith.constant dense<0.000000e+00> : vector<16x128xf32>
    %14 = tpu.matmul %3, %9, %cst_15 {dimension_numbers = #tpu.dot_dimension_numbers<[1], [0], [0], [1], [0, 0, 1, 1], [], []>} : vector<16x32xf32>, vector<32x128xf32>, vector<16x128xf32> -> vector<16x128xf32>
    %15 = vector.broadcast %12 : vector<1x128xf32> to vector<16x128xf32>
    %16 = arith.addf %14, %15 : vector<16x128xf32>
    %17 = vector.extract_strided_slice %16 {offsets = [0, 0], sizes = [16, 8], strides = [1, 1]} : vector<16x128xf32> to vector<16x8xf32>
    %18 = vector.extract_strided_slice %16 {offsets = [0, 8], sizes = [16, 8], strides = [1, 1]} : vector<16x128xf32> to vector<16x8xf32>
    %19 = vector.extract_strided_slice %16 {offsets = [0, 16], sizes = [16, 8], strides = [1, 1]} : vector<16x128xf32> to vector<16x8xf32>
    %20 = vector.extract_strided_slice %16 {offsets = [0, 24], sizes = [16, 8], strides = [1, 1]} : vector<16x128xf32> to vector<16x8xf32>
    %21 = vector.shape_cast %17 : vector<16x8xf32> to vector<1x16x8xf32>
    %22 = vector.shape_cast %18 : vector<16x8xf32> to vector<1x16x8xf32>
    %23 = vector.shape_cast %19 : vector<16x8xf32> to vector<1x16x8xf32>
    %24 = vector.shape_cast %20 : vector<16x8xf32> to vector<1x16x8xf32>
    %25 = tpu.concatenate %21, %22, %23, %24 in 0 : vector<1x16x8xf32>, vector<1x16x8xf32>, vector<1x16x8xf32>, vector<1x16x8xf32> -> vector<4x16x8xf32>
    %26 = vector.extract_strided_slice %16 {offsets = [0, 32], sizes = [16, 8], strides = [1, 1]} : vector<16x128xf32> to vector<16x8xf32>
    %27 = vector.extract_strided_slice %16 {offsets = [0, 40], sizes = [16, 8], strides = [1, 1]} : vector<16x128xf32> to vector<16x8xf32>
    %28 = vector.extract_strided_slice %16 {offsets = [0, 48], sizes = [16, 8], strides = [1, 1]} : vector<16x128xf32> to vector<16x8xf32>
    %29 = vector.extract_strided_slice %16 {offsets = [0, 56], sizes = [16, 8], strides = [1, 1]} : vector<16x128xf32> to vector<16x8xf32>
    %30 = vector.shape_cast %26 : vector<16x8xf32> to vector<1x16x8xf32>
    %31 = vector.shape_cast %27 : vector<16x8xf32> to vector<1x16x8xf32>
    %32 = vector.shape_cast %28 : vector<16x8xf32> to vector<1x16x8xf32>
    %33 = vector.shape_cast %29 : vector<16x8xf32> to vector<1x16x8xf32>
    %34 = tpu.concatenate %30, %31, %32, %33 in 0 : vector<1x16x8xf32>, vector<1x16x8xf32>, vector<1x16x8xf32>, vector<1x16x8xf32> -> vector<4x16x8xf32>
    %35 = vector.extract_strided_slice %16 {offsets = [0, 64], sizes = [16, 8], strides = [1, 1]} : vector<16x128xf32> to vector<16x8xf32>
    %36 = vector.extract_strided_slice %16 {offsets = [0, 72], sizes = [16, 8], strides = [1, 1]} : vector<16x128xf32> to vector<16x8xf32>
    %37 = vector.extract_strided_slice %16 {offsets = [0, 80], sizes = [16, 8], strides = [1, 1]} : vector<16x128xf32> to vector<16x8xf32>
    %38 = vector.extract_strided_slice %16 {offsets = [0, 88], sizes = [16, 8], strides = [1, 1]} : vector<16x128xf32> to vector<16x8xf32>
    %39 = vector.shape_cast %35 : vector<16x8xf32> to vector<1x16x8xf32>
    %40 = vector.shape_cast %36 : vector<16x8xf32> to vector<1x16x8xf32>
    %41 = vector.shape_cast %37 : vector<16x8xf32> to vector<1x16x8xf32>
    %42 = vector.shape_cast %38 : vector<16x8xf32> to vector<1x16x8xf32>
    %43 = tpu.concatenate %39, %40, %41, %42 in 0 : vector<1x16x8xf32>, vector<1x16x8xf32>, vector<1x16x8xf32>, vector<1x16x8xf32> -> vector<4x16x8xf32>
    "tpu.trace_start"() <{level = 10 : i32, message = "hqd,hkd->hqk"}> : () -> ()
    %cst_16 = arith.constant dense<0.000000e+00> : vector<4x16x16xf32>
    %44 = tpu.matmul %25, %34, %cst_16 {dimension_numbers = #tpu.dot_dimension_numbers<[2], [2], [1], [1], [0, 0, 0, 1, 1, 1], [0], [0]>} : vector<4x16x8xf32>, vector<4x16x8xf32>, vector<4x16x16xf32> -> vector<4x16x16xf32>
    "tpu.trace_stop"() : () -> ()
    %cst_17 = arith.constant 0.353553385 : f32
    %45 = vector.broadcast %cst_17 : f32 to vector<4x16x16xf32>
    %46 = arith.mulf %44, %45 : vector<4x16x16xf32>
    %cst_18 = arith.constant dense<0xFF800000> : vector<4x16xf32>
    %47 = vector.multi_reduction <maximumf>, %46, %cst_18 [2] : vector<4x16x16xf32> to vector<4x16xf32>
    %48 = vector.shape_cast %47 : vector<4x16xf32> to vector<4x16x1xf32>
    %49 = vector.broadcast %48 : vector<4x16x1xf32> to vector<4x16x16xf32>
    %50 = arith.subf %46, %49 : vector<4x16x16xf32>
    %51 = math.exp %50 : vector<4x16x16xf32>
    %cst_19 = arith.constant dense<0.000000e+00> : vector<4x16xf32>
    %52 = vector.multi_reduction <add>, %51, %cst_19 [2] : vector<4x16x16xf32> to vector<4x16xf32>
    %53 = vector.shape_cast %52 : vector<4x16xf32> to vector<4x16x1xf32>
    %54 = tpu.reciprocal %53 {approx = true} : vector<4x16x1xf32> -> vector<4x16x1xf32>
    %55 = vector.broadcast %54 : vector<4x16x1xf32> to vector<4x16x16xf32>
    %56 = arith.mulf %51, %55 : vector<4x16x16xf32>
    "tpu.trace_start"() <{level = 10 : i32, message = "hqk,hkd->hqd"}> : () -> ()
    %cst_20 = arith.constant dense<0.000000e+00> : vector<4x16x8xf32>
    %57 = tpu.matmul %56, %43, %cst_20 {dimension_numbers = #tpu.dot_dimension_numbers<[2], [1], [1], [2], [0, 0, 0, 1, 1, 2], [0], [0]>} : vector<4x16x16xf32>, vector<4x16x8xf32>, vector<4x16x8xf32> -> vector<4x16x8xf32>
    "tpu.trace_stop"() : () -> ()
    %58 = vector.extract_strided_slice %57 {offsets = [0, 0, 0], sizes = [1, 16, 8], strides = [1, 1, 1]} : vector<4x16x8xf32> to vector<1x16x8xf32>
    %59 = vector.shape_cast %58 : vector<1x16x8xf32> to vector<16x8xf32>
    %60 = vector.extract_strided_slice %57 {offsets = [1, 0, 0], sizes = [1, 16, 8], strides = [1, 1, 1]} : vector<4x16x8xf32> to vector<1x16x8xf32>
    %61 = vector.shape_cast %60 : vector<1x16x8xf32> to vector<16x8xf32>
    %62 = vector.extract_strided_slice %57 {offsets = [2, 0, 0], sizes = [1, 16, 8], strides = [1, 1, 1]} : vector<4x16x8xf32> to vector<1x16x8xf32>
    %63 = vector.shape_cast %62 : vector<1x16x8xf32> to vector<16x8xf32>
    %64 = vector.extract_strided_slice %57 {offsets = [3, 0, 0], sizes = [1, 16, 8], strides = [1, 1, 1]} : vector<4x16x8xf32> to vector<1x16x8xf32>
    %65 = vector.shape_cast %64 : vector<1x16x8xf32> to vector<16x8xf32>
    %66 = tpu.concatenate %59, %61, %63, %65 in 1 : vector<16x8xf32>, vector<16x8xf32>, vector<16x8xf32>, vector<16x8xf32> -> vector<16x32xf32>
    %cst_21 = arith.constant dense<0.000000e+00> : vector<16x128xf32>
    %67 = tpu.matmul %66, %9, %cst_21 {dimension_numbers = #tpu.dot_dimension_numbers<[1], [0], [0], [1], [0, 0, 1, 1], [], []>} : vector<16x32xf32>, vector<32x128xf32>, vector<16x128xf32> -> vector<16x128xf32>
    %68 = vector.broadcast %13 : vector<1x128xf32> to vector<16x128xf32>
    %69 = arith.addf %67, %68 : vector<16x128xf32>
    %70 = vector.extract_strided_slice %69 {offsets = [0, 96], sizes = [16, 32], strides = [1, 1]} : vector<16x128xf32> to vector<16x32xf32>
    %71 = arith.addf %3, %70 : vector<16x32xf32>
    %c0_22 = arith.constant 0 : index
    %c0_23 = arith.constant 0 : index
    %c0_24 = arith.constant 0 : index
    %72 = vector.load %arg6[%c0_22, %c0_23, %c0_24] : memref<12x2x32xf32, #tpu.memory_space<vmem>>, vector<1x2x32xf32>
    %73 = vector.shape_cast %72 : vector<1x2x32xf32> to vector<2x32xf32>
    %74 = vector.extract_strided_slice %73 {offsets = [0, 0], sizes = [1, 32], strides = [1, 1]} : vector<2x32xf32> to vector<1x32xf32>
    %75 = vector.extract_strided_slice %73 {offsets = [1, 0], sizes = [1, 32], strides = [1, 1]} : vector<2x32xf32> to vector<1x32xf32>
    %cst_25 = arith.constant dense<0.000000e+00> : vector<16xf32>
    %76 = vector.multi_reduction <add>, %71, %cst_25 [1] : vector<16x32xf32> to vector<16xf32>
    %77 = vector.shape_cast %76 : vector<16xf32> to vector<16x1xf32>
    %cst_26 = arith.constant 3.200000e+01 : f32
    %78 = vector.broadcast %cst_26 : f32 to vector<16x1xf32>
    %79 = arith.divf %77, %78 : vector<16x1xf32>
    %80 = vector.broadcast %79 : vector<16x1xf32> to vector<16x32xf32>
    %81 = arith.subf %71, %80 : vector<16x32xf32>
    %82 = arith.mulf %81, %81 : vector<16x32xf32>
    %cst_27 = arith.constant dense<0.000000e+00> : vector<16xf32>
    %83 = vector.multi_reduction <add>, %82, %cst_27 [1] : vector<16x32xf32> to vector<16xf32>
    %84 = vector.shape_cast %83 : vector<16xf32> to vector<16x1xf32>
    %cst_28 = arith.constant 3.200000e+01 : f32
    %85 = vector.broadcast %cst_28 : f32 to vector<16x1xf32>
    %86 = arith.divf %84, %85 : vector<16x1xf32>
    %cst_29 = arith.constant 9.99999974E-6 : f32
    %87 = vector.broadcast %cst_29 : f32 to vector<16x1xf32>
    %88 = arith.addf %86, %87 : vector<16x1xf32>
    %89 = math.rsqrt %88 : vector<16x1xf32>
    %90 = vector.broadcast %89 : vector<16x1xf32> to vector<16x32xf32>
    %91 = arith.mulf %81, %90 : vector<16x32xf32>
    %92 = vector.broadcast %74 : vector<1x32xf32> to vector<16x32xf32>
    %93 = arith.mulf %91, %92 : vector<16x32xf32>
    %94 = vector.broadcast %75 : vector<1x32xf32> to vector<16x32xf32>
    %95 = arith.addf %93, %94 : vector<16x32xf32>
    %c0_30 = arith.constant 0 : index
    %c0_31 = arith.constant 0 : index
    %c0_32 = arith.constant 0 : index
    %96 = vector.load %arg7[%c0_30, %c0_31, %c0_32] : memref<4x32x64xf32, #tpu.memory_space<vmem>>, vector<1x32x64xf32>
    %97 = vector.shape_cast %96 : vector<1x32x64xf32> to vector<32x64xf32>
    %c0_33 = arith.constant 0 : index
    %c0_34 = arith.constant 0 : index
    %c0_35 = arith.constant 0 : index
    %98 = vector.load %arg8[%c0_33, %c0_34, %c0_35] : memref<4x64x32xf32, #tpu.memory_space<vmem>>, vector<1x64x32xf32>
    %99 = vector.shape_cast %98 : vector<1x64x32xf32> to vector<64x32xf32>
    %c0_36 = arith.constant 0 : index
    %c0_37 = arith.constant 0 : index
    %c0_38 = arith.constant 0 : index
    %100 = vector.load %arg9[%c0_36, %c0_37, %c0_38] : memref<4x2x64xf32, #tpu.memory_space<vmem>>, vector<1x2x64xf32>
    %101 = vector.shape_cast %100 : vector<1x2x64xf32> to vector<2x64xf32>
    %cst_39 = arith.constant dense<0.000000e+00> : vector<16x64xf32>
    %102 = tpu.matmul %95, %97, %cst_39 {dimension_numbers = #tpu.dot_dimension_numbers<[1], [0], [0], [1], [0, 0, 1, 1], [], []>} : vector<16x32xf32>, vector<32x64xf32>, vector<16x64xf32> -> vector<16x64xf32>
    %103 = vector.extract_strided_slice %101 {offsets = [0, 0], sizes = [1, 64], strides = [1, 1]} : vector<2x64xf32> to vector<1x64xf32>
    %104 = vector.broadcast %103 : vector<1x64xf32> to vector<16x64xf32>
    %105 = arith.addf %102, %104 : vector<16x64xf32>
    %cst_40 = arith.constant 0.000000e+00 : f32
    %106 = vector.broadcast %cst_40 : f32 to vector<16x64xf32>
    %107 = arith.maximumf %105, %106 : vector<16x64xf32>
    %cst_41 = arith.constant dense<0.000000e+00> : vector<16x32xf32>
    %108 = tpu.matmul %107, %99, %cst_41 {dimension_numbers = #tpu.dot_dimension_numbers<[1], [0], [0], [1], [0, 0, 1, 1], [], []>} : vector<16x64xf32>, vector<64x32xf32>, vector<16x32xf32> -> vector<16x32xf32>
    %109 = vector.extract_strided_slice %101 {offsets = [1, 0], sizes = [1, 32], strides = [1, 1]} : vector<2x64xf32> to vector<1x32xf32>
    %110 = vector.broadcast %109 : vector<1x32xf32> to vector<16x32xf32>
    %111 = arith.addf %108, %110 : vector<16x32xf32>
    %112 = arith.addf %95, %111 : vector<16x32xf32>
    %c1_42 = arith.constant 1 : index
    %c0_43 = arith.constant 0 : index
    %c0_44 = arith.constant 0 : index
    %113 = vector.load %arg6[%c1_42, %c0_43, %c0_44] : memref<12x2x32xf32, #tpu.memory_space<vmem>>, vector<1x2x32xf32>
    %114 = vector.shape_cast %113 : vector<1x2x32xf32> to vector<2x32xf32>
    %115 = vector.extract_strided_slice %114 {offsets = [0, 0], sizes = [1, 32], strides = [1, 1]} : vector<2x32xf32> to vector<1x32xf32>
    %116 = vector.extract_strided_slice %114 {offsets = [1, 0], sizes = [1, 32], strides = [1, 1]} : vector<2x32xf32> to vector<1x32xf32>
    %cst_45 = arith.constant dense<0.000000e+00> : vector<16xf32>
    %117 = vector.multi_reduction <add>, %112, %cst_45 [1] : vector<16x32xf32> to vector<16xf32>
    %118 = vector.shape_cast %117 : vector<16xf32> to vector<16x1xf32>
    %cst_46 = arith.constant 3.200000e+01 : f32
    %119 = vector.broadcast %cst_46 : f32 to vector<16x1xf32>
    %120 = arith.divf %118, %119 : vector<16x1xf32>
    %121 = vector.broadcast %120 : vector<16x1xf32> to vector<16x32xf32>
    %122 = arith.subf %112, %121 : vector<16x32xf32>
    %123 = arith.mulf %122, %122 : vector<16x32xf32>
    %cst_47 = arith.constant dense<0.000000e+00> : vector<16xf32>
    %124 = vector.multi_reduction <add>, %123, %cst_47 [1] : vector<16x32xf32> to vector<16xf32>
    %125 = vector.shape_cast %124 : vector<16xf32> to vector<16x1xf32>
    %cst_48 = arith.constant 3.200000e+01 : f32
    %126 = vector.broadcast %cst_48 : f32 to vector<16x1xf32>
    %127 = arith.divf %125, %126 : vector<16x1xf32>
    %cst_49 = arith.constant 9.99999974E-6 : f32
    %128 = vector.broadcast %cst_49 : f32 to vector<16x1xf32>
    %129 = arith.addf %127, %128 : vector<16x1xf32>
    %130 = math.rsqrt %129 : vector<16x1xf32>
    %131 = vector.broadcast %130 : vector<16x1xf32> to vector<16x32xf32>
    %132 = arith.mulf %122, %131 : vector<16x32xf32>
    %133 = vector.broadcast %115 : vector<1x32xf32> to vector<16x32xf32>
    %134 = arith.mulf %132, %133 : vector<16x32xf32>
    %135 = vector.broadcast %116 : vector<1x32xf32> to vector<16x32xf32>
    %136 = arith.addf %134, %135 : vector<16x32xf32>
    %c1_50 = arith.constant 1 : index
    %c0_51 = arith.constant 0 : index
    %c0_52 = arith.constant 0 : index
    %137 = vector.load %arg4[%c1_50, %c0_51, %c0_52] : memref<6x32x128xf32, #tpu.memory_space<vmem>>, vector<1x32x128xf32>
    %138 = vector.shape_cast %137 : vector<1x32x128xf32> to vector<32x128xf32>
    %c1_53 = arith.constant 1 : index
    %c0_54 = arith.constant 0 : index
    %c0_55 = arith.constant 0 : index
    %139 = vector.load %arg5[%c1_53, %c0_54, %c0_55] : memref<6x2x128xf32, #tpu.memory_space<vmem>>, vector<1x2x128xf32>
    %140 = vector.shape_cast %139 : vector<1x2x128xf32> to vector<2x128xf32>
    %141 = vector.extract_strided_slice %140 {offsets = [0, 0], sizes = [1, 128], strides = [1, 1]} : vector<2x128xf32> to vector<1x128xf32>
    %142 = vector.extract_strided_slice %140 {offsets = [1, 0], sizes = [1, 128], strides = [1, 1]} : vector<2x128xf32> to vector<1x128xf32>
    %cst_56 = arith.constant dense<0.000000e+00> : vector<16x128xf32>
    %143 = tpu.matmul %136, %138, %cst_56 {dimension_numbers = #tpu.dot_dimension_numbers<[1], [0], [0], [1], [0, 0, 1, 1], [], []>} : vector<16x32xf32>, vector<32x128xf32>, vector<16x128xf32> -> vector<16x128xf32>
    %144 = vector.broadcast %141 : vector<1x128xf32> to vector<16x128xf32>
    %145 = arith.addf %143, %144 : vector<16x128xf32>
    %146 = vector.extract_strided_slice %145 {offsets = [0, 0], sizes = [16, 8], strides = [1, 1]} : vector<16x128xf32> to vector<16x8xf32>
    %147 = vector.extract_strided_slice %145 {offsets = [0, 8], sizes = [16, 8], strides = [1, 1]} : vector<16x128xf32> to vector<16x8xf32>
    %148 = vector.extract_strided_slice %145 {offsets = [0, 16], sizes = [16, 8], strides = [1, 1]} : vector<16x128xf32> to vector<16x8xf32>
    %149 = vector.extract_strided_slice %145 {offsets = [0, 24], sizes = [16, 8], strides = [1, 1]} : vector<16x128xf32> to vector<16x8xf32>
    %150 = vector.shape_cast %146 : vector<16x8xf32> to vector<1x16x8xf32>
    %151 = vector.shape_cast %147 : vector<16x8xf32> to vector<1x16x8xf32>
    %152 = vector.shape_cast %148 : vector<16x8xf32> to vector<1x16x8xf32>
    %153 = vector.shape_cast %149 : vector<16x8xf32> to vector<1x16x8xf32>
    %154 = tpu.concatenate %150, %151, %152, %153 in 0 : vector<1x16x8xf32>, vector<1x16x8xf32>, vector<1x16x8xf32>, vector<1x16x8xf32> -> vector<4x16x8xf32>
    %155 = vector.extract_strided_slice %145 {offsets = [0, 32], sizes = [16, 8], strides = [1, 1]} : vector<16x128xf32> to vector<16x8xf32>
    %156 = vector.extract_strided_slice %145 {offsets = [0, 40], sizes = [16, 8], strides = [1, 1]} : vector<16x128xf32> to vector<16x8xf32>
    %157 = vector.extract_strided_slice %145 {offsets = [0, 48], sizes = [16, 8], strides = [1, 1]} : vector<16x128xf32> to vector<16x8xf32>
    %158 = vector.extract_strided_slice %145 {offsets = [0, 56], sizes = [16, 8], strides = [1, 1]} : vector<16x128xf32> to vector<16x8xf32>
    %159 = vector.shape_cast %155 : vector<16x8xf32> to vector<1x16x8xf32>
    %160 = vector.shape_cast %156 : vector<16x8xf32> to vector<1x16x8xf32>
    %161 = vector.shape_cast %157 : vector<16x8xf32> to vector<1x16x8xf32>
    %162 = vector.shape_cast %158 : vector<16x8xf32> to vector<1x16x8xf32>
    %163 = tpu.concatenate %159, %160, %161, %162 in 0 : vector<1x16x8xf32>, vector<1x16x8xf32>, vector<1x16x8xf32>, vector<1x16x8xf32> -> vector<4x16x8xf32>
    %164 = vector.extract_strided_slice %145 {offsets = [0, 64], sizes = [16, 8], strides = [1, 1]} : vector<16x128xf32> to vector<16x8xf32>
    %165 = vector.extract_strided_slice %145 {offsets = [0, 72], sizes = [16, 8], strides = [1, 1]} : vector<16x128xf32> to vector<16x8xf32>
    %166 = vector.extract_strided_slice %145 {offsets = [0, 80], sizes = [16, 8], strides = [1, 1]} : vector<16x128xf32> to vector<16x8xf32>
    %167 = vector.extract_strided_slice %145 {offsets = [0, 88], sizes = [16, 8], strides = [1, 1]} : vector<16x128xf32> to vector<16x8xf32>
    %168 = vector.shape_cast %164 : vector<16x8xf32> to vector<1x16x8xf32>
    %169 = vector.shape_cast %165 : vector<16x8xf32> to vector<1x16x8xf32>
    %170 = vector.shape_cast %166 : vector<16x8xf32> to vector<1x16x8xf32>
    %171 = vector.shape_cast %167 : vector<16x8xf32> to vector<1x16x8xf32>
    %172 = tpu.concatenate %168, %169, %170, %171 in 0 : vector<1x16x8xf32>, vector<1x16x8xf32>, vector<1x16x8xf32>, vector<1x16x8xf32> -> vector<4x16x8xf32>
    "tpu.trace_start"() <{level = 10 : i32, message = "hqd,hkd->hqk"}> : () -> ()
    %cst_57 = arith.constant dense<0.000000e+00> : vector<4x16x16xf32>
    %173 = tpu.matmul %154, %163, %cst_57 {dimension_numbers = #tpu.dot_dimension_numbers<[2], [2], [1], [1], [0, 0, 0, 1, 1, 1], [0], [0]>} : vector<4x16x8xf32>, vector<4x16x8xf32>, vector<4x16x16xf32> -> vector<4x16x16xf32>
    "tpu.trace_stop"() : () -> ()
    %cst_58 = arith.constant 0.353553385 : f32
    %174 = vector.broadcast %cst_58 : f32 to vector<4x16x16xf32>
    %175 = arith.mulf %173, %174 : vector<4x16x16xf32>
    %cst_59 = arith.constant dense<0xFF800000> : vector<4x16xf32>
    %176 = vector.multi_reduction <maximumf>, %175, %cst_59 [2] : vector<4x16x16xf32> to vector<4x16xf32>
    %177 = vector.shape_cast %176 : vector<4x16xf32> to vector<4x16x1xf32>
    %178 = vector.broadcast %177 : vector<4x16x1xf32> to vector<4x16x16xf32>
    %179 = arith.subf %175, %178 : vector<4x16x16xf32>
    %180 = math.exp %179 : vector<4x16x16xf32>
    %cst_60 = arith.constant dense<0.000000e+00> : vector<4x16xf32>
    %181 = vector.multi_reduction <add>, %180, %cst_60 [2] : vector<4x16x16xf32> to vector<4x16xf32>
    %182 = vector.shape_cast %181 : vector<4x16xf32> to vector<4x16x1xf32>
    %183 = tpu.reciprocal %182 {approx = true} : vector<4x16x1xf32> -> vector<4x16x1xf32>
    %184 = vector.broadcast %183 : vector<4x16x1xf32> to vector<4x16x16xf32>
    %185 = arith.mulf %180, %184 : vector<4x16x16xf32>
    "tpu.trace_start"() <{level = 10 : i32, message = "hqk,hkd->hqd"}> : () -> ()
    %cst_61 = arith.constant dense<0.000000e+00> : vector<4x16x8xf32>
    %186 = tpu.matmul %185, %172, %cst_61 {dimension_numbers = #tpu.dot_dimension_numbers<[2], [1], [1], [2], [0, 0, 0, 1, 1, 2], [0], [0]>} : vector<4x16x16xf32>, vector<4x16x8xf32>, vector<4x16x8xf32> -> vector<4x16x8xf32>
    "tpu.trace_stop"() : () -> ()
    %187 = vector.extract_strided_slice %186 {offsets = [0, 0, 0], sizes = [1, 16, 8], strides = [1, 1, 1]} : vector<4x16x8xf32> to vector<1x16x8xf32>
    %188 = vector.shape_cast %187 : vector<1x16x8xf32> to vector<16x8xf32>
    %189 = vector.extract_strided_slice %186 {offsets = [1, 0, 0], sizes = [1, 16, 8], strides = [1, 1, 1]} : vector<4x16x8xf32> to vector<1x16x8xf32>
    %190 = vector.shape_cast %189 : vector<1x16x8xf32> to vector<16x8xf32>
    %191 = vector.extract_strided_slice %186 {offsets = [2, 0, 0], sizes = [1, 16, 8], strides = [1, 1, 1]} : vector<4x16x8xf32> to vector<1x16x8xf32>
    %192 = vector.shape_cast %191 : vector<1x16x8xf32> to vector<16x8xf32>
    %193 = vector.extract_strided_slice %186 {offsets = [3, 0, 0], sizes = [1, 16, 8], strides = [1, 1, 1]} : vector<4x16x8xf32> to vector<1x16x8xf32>
    %194 = vector.shape_cast %193 : vector<1x16x8xf32> to vector<16x8xf32>
    %195 = tpu.concatenate %188, %190, %192, %194 in 1 : vector<16x8xf32>, vector<16x8xf32>, vector<16x8xf32>, vector<16x8xf32> -> vector<16x32xf32>
    %cst_62 = arith.constant dense<0.000000e+00> : vector<16x128xf32>
    %196 = tpu.matmul %195, %138, %cst_62 {dimension_numbers = #tpu.dot_dimension_numbers<[1], [0], [0], [1], [0, 0, 1, 1], [], []>} : vector<16x32xf32>, vector<32x128xf32>, vector<16x128xf32> -> vector<16x128xf32>
    %197 = vector.broadcast %142 : vector<1x128xf32> to vector<16x128xf32>
    %198 = arith.addf %196, %197 : vector<16x128xf32>
    %199 = vector.extract_strided_slice %198 {offsets = [0, 96], sizes = [16, 32], strides = [1, 1]} : vector<16x128xf32> to vector<16x32xf32>
    %200 = arith.addf %136, %199 : vector<16x32xf32>
    %c2 = arith.constant 2 : index
    %c0_63 = arith.constant 0 : index
    %c0_64 = arith.constant 0 : index
    %201 = vector.load %arg6[%c2, %c0_63, %c0_64] : memref<12x2x32xf32, #tpu.memory_space<vmem>>, vector<1x2x32xf32>
    %202 = vector.shape_cast %201 : vector<1x2x32xf32> to vector<2x32xf32>
    %203 = vector.extract_strided_slice %202 {offsets = [0, 0], sizes = [1, 32], strides = [1, 1]} : vector<2x32xf32> to vector<1x32xf32>
    %204 = vector.extract_strided_slice %202 {offsets = [1, 0], sizes = [1, 32], strides = [1, 1]} : vector<2x32xf32> to vector<1x32xf32>
    %cst_65 = arith.constant dense<0.000000e+00> : vector<16xf32>
    %205 = vector.multi_reduction <add>, %200, %cst_65 [1] : vector<16x32xf32> to vector<16xf32>
    %206 = vector.shape_cast %205 : vector<16xf32> to vector<16x1xf32>
    %cst_66 = arith.constant 3.200000e+01 : f32
    %207 = vector.broadcast %cst_66 : f32 to vector<16x1xf32>
    %208 = arith.divf %206, %207 : vector<16x1xf32>
    %209 = vector.broadcast %208 : vector<16x1xf32> to vector<16x32xf32>
    %210 = arith.subf %200, %209 : vector<16x32xf32>
    %211 = arith.mulf %210, %210 : vector<16x32xf32>
    %cst_67 = arith.constant dense<0.000000e+00> : vector<16xf32>
    %212 = vector.multi_reduction <add>, %211, %cst_67 [1] : vector<16x32xf32> to vector<16xf32>
    %213 = vector.shape_cast %212 : vector<16xf32> to vector<16x1xf32>
    %cst_68 = arith.constant 3.200000e+01 : f32
    %214 = vector.broadcast %cst_68 : f32 to vector<16x1xf32>
    %215 = arith.divf %213, %214 : vector<16x1xf32>
    %cst_69 = arith.constant 9.99999974E-6 : f32
    %216 = vector.broadcast %cst_69 : f32 to vector<16x1xf32>
    %217 = arith.addf %215, %216 : vector<16x1xf32>
    %218 = math.rsqrt %217 : vector<16x1xf32>
    %219 = vector.broadcast %218 : vector<16x1xf32> to vector<16x32xf32>
    %220 = arith.mulf %210, %219 : vector<16x32xf32>
    %221 = vector.broadcast %203 : vector<1x32xf32> to vector<16x32xf32>
    %222 = arith.mulf %220, %221 : vector<16x32xf32>
    %223 = vector.broadcast %204 : vector<1x32xf32> to vector<16x32xf32>
    %224 = arith.addf %222, %223 : vector<16x32xf32>
    %c1_70 = arith.constant 1 : index
    %c0_71 = arith.constant 0 : index
    %c0_72 = arith.constant 0 : index
    %225 = vector.load %arg7[%c1_70, %c0_71, %c0_72] : memref<4x32x64xf32, #tpu.memory_space<vmem>>, vector<1x32x64xf32>
    %226 = vector.shape_cast %225 : vector<1x32x64xf32> to vector<32x64xf32>
    %c1_73 = arith.constant 1 : index
    %c0_74 = arith.constant 0 : index
    %c0_75 = arith.constant 0 : index
    %227 = vector.load %arg8[%c1_73, %c0_74, %c0_75] : memref<4x64x32xf32, #tpu.memory_space<vmem>>, vector<1x64x32xf32>
    %228 = vector.shape_cast %227 : vector<1x64x32xf32> to vector<64x32xf32>
    %c1_76 = arith.constant 1 : index
    %c0_77 = arith.constant 0 : index
    %c0_78 = arith.constant 0 : index
    %229 = vector.load %arg9[%c1_76, %c0_77, %c0_78] : memref<4x2x64xf32, #tpu.memory_space<vmem>>, vector<1x2x64xf32>
    %230 = vector.shape_cast %229 : vector<1x2x64xf32> to vector<2x64xf32>
    %cst_79 = arith.constant dense<0.000000e+00> : vector<16x64xf32>
    %231 = tpu.matmul %224, %226, %cst_79 {dimension_numbers = #tpu.dot_dimension_numbers<[1], [0], [0], [1], [0, 0, 1, 1], [], []>} : vector<16x32xf32>, vector<32x64xf32>, vector<16x64xf32> -> vector<16x64xf32>
    %232 = vector.extract_strided_slice %230 {offsets = [0, 0], sizes = [1, 64], strides = [1, 1]} : vector<2x64xf32> to vector<1x64xf32>
    %233 = vector.broadcast %232 : vector<1x64xf32> to vector<16x64xf32>
    %234 = arith.addf %231, %233 : vector<16x64xf32>
    %cst_80 = arith.constant 0.000000e+00 : f32
    %235 = vector.broadcast %cst_80 : f32 to vector<16x64xf32>
    %236 = arith.maximumf %234, %235 : vector<16x64xf32>
    %cst_81 = arith.constant dense<0.000000e+00> : vector<16x32xf32>
    %237 = tpu.matmul %236, %228, %cst_81 {dimension_numbers = #tpu.dot_dimension_numbers<[1], [0], [0], [1], [0, 0, 1, 1], [], []>} : vector<16x64xf32>, vector<64x32xf32>, vector<16x32xf32> -> vector<16x32xf32>
    %238 = vector.extract_strided_slice %230 {offsets = [1, 0], sizes = [1, 32], strides = [1, 1]} : vector<2x64xf32> to vector<1x32xf32>
    %239 = vector.broadcast %238 : vector<1x32xf32> to vector<16x32xf32>
    %240 = arith.addf %237, %239 : vector<16x32xf32>
    %241 = arith.addf %224, %240 : vector<16x32xf32>
    %c3 = arith.constant 3 : index
    %c0_82 = arith.constant 0 : index
    %c0_83 = arith.constant 0 : index
    %242 = vector.load %arg6[%c3, %c0_82, %c0_83] : memref<12x2x32xf32, #tpu.memory_space<vmem>>, vector<1x2x32xf32>
    %243 = vector.shape_cast %242 : vector<1x2x32xf32> to vector<2x32xf32>
    %244 = vector.extract_strided_slice %243 {offsets = [0, 0], sizes = [1, 32], strides = [1, 1]} : vector<2x32xf32> to vector<1x32xf32>
    %245 = vector.extract_strided_slice %243 {offsets = [1, 0], sizes = [1, 32], strides = [1, 1]} : vector<2x32xf32> to vector<1x32xf32>
    %cst_84 = arith.constant dense<0.000000e+00> : vector<16xf32>
    %246 = vector.multi_reduction <add>, %241, %cst_84 [1] : vector<16x32xf32> to vector<16xf32>
    %247 = vector.shape_cast %246 : vector<16xf32> to vector<16x1xf32>
    %cst_85 = arith.constant 3.200000e+01 : f32
    %248 = vector.broadcast %cst_85 : f32 to vector<16x1xf32>
    %249 = arith.divf %247, %248 : vector<16x1xf32>
    %250 = vector.broadcast %249 : vector<16x1xf32> to vector<16x32xf32>
    %251 = arith.subf %241, %250 : vector<16x32xf32>
    %252 = arith.mulf %251, %251 : vector<16x32xf32>
    %cst_86 = arith.constant dense<0.000000e+00> : vector<16xf32>
    %253 = vector.multi_reduction <add>, %252, %cst_86 [1] : vector<16x32xf32> to vector<16xf32>
    %254 = vector.shape_cast %253 : vector<16xf32> to vector<16x1xf32>
    %cst_87 = arith.constant 3.200000e+01 : f32
    %255 = vector.broadcast %cst_87 : f32 to vector<16x1xf32>
    %256 = arith.divf %254, %255 : vector<16x1xf32>
    %cst_88 = arith.constant 9.99999974E-6 : f32
    %257 = vector.broadcast %cst_88 : f32 to vector<16x1xf32>
    %258 = arith.addf %256, %257 : vector<16x1xf32>
    %259 = math.rsqrt %258 : vector<16x1xf32>
    %260 = vector.broadcast %259 : vector<16x1xf32> to vector<16x32xf32>
    %261 = arith.mulf %251, %260 : vector<16x32xf32>
    %262 = vector.broadcast %244 : vector<1x32xf32> to vector<16x32xf32>
    %263 = arith.mulf %261, %262 : vector<16x32xf32>
    %264 = vector.broadcast %245 : vector<1x32xf32> to vector<16x32xf32>
    %265 = arith.addf %263, %264 : vector<16x32xf32>
    %c4 = arith.constant 4 : index
    %c0_89 = arith.constant 0 : index
    %c0_90 = arith.constant 0 : index
    %266 = vector.load %arg6[%c4, %c0_89, %c0_90] : memref<12x2x32xf32, #tpu.memory_space<vmem>>, vector<1x2x32xf32>
    %267 = vector.shape_cast %266 : vector<1x2x32xf32> to vector<2x32xf32>
    %268 = vector.extract_strided_slice %267 {offsets = [0, 0], sizes = [1, 32], strides = [1, 1]} : vector<2x32xf32> to vector<1x32xf32>
    %269 = vector.extract_strided_slice %267 {offsets = [1, 0], sizes = [1, 32], strides = [1, 1]} : vector<2x32xf32> to vector<1x32xf32>
    %cst_91 = arith.constant dense<0.000000e+00> : vector<16xf32>
    %270 = vector.multi_reduction <add>, %265, %cst_91 [1] : vector<16x32xf32> to vector<16xf32>
    %271 = vector.shape_cast %270 : vector<16xf32> to vector<16x1xf32>
    %cst_92 = arith.constant 3.200000e+01 : f32
    %272 = vector.broadcast %cst_92 : f32 to vector<16x1xf32>
    %273 = arith.divf %271, %272 : vector<16x1xf32>
    %274 = vector.broadcast %273 : vector<16x1xf32> to vector<16x32xf32>
    %275 = arith.subf %265, %274 : vector<16x32xf32>
    %276 = arith.mulf %275, %275 : vector<16x32xf32>
    %cst_93 = arith.constant dense<0.000000e+00> : vector<16xf32>
    %277 = vector.multi_reduction <add>, %276, %cst_93 [1] : vector<16x32xf32> to vector<16xf32>
    %278 = vector.shape_cast %277 : vector<16xf32> to vector<16x1xf32>
    %cst_94 = arith.constant 3.200000e+01 : f32
    %279 = vector.broadcast %cst_94 : f32 to vector<16x1xf32>
    %280 = arith.divf %278, %279 : vector<16x1xf32>
    %cst_95 = arith.constant 9.99999974E-6 : f32
    %281 = vector.broadcast %cst_95 : f32 to vector<16x1xf32>
    %282 = arith.addf %280, %281 : vector<16x1xf32>
    %283 = math.rsqrt %282 : vector<16x1xf32>
    %284 = vector.broadcast %283 : vector<16x1xf32> to vector<16x32xf32>
    %285 = arith.mulf %275, %284 : vector<16x32xf32>
    %286 = vector.broadcast %268 : vector<1x32xf32> to vector<16x32xf32>
    %287 = arith.mulf %285, %286 : vector<16x32xf32>
    %288 = vector.broadcast %269 : vector<1x32xf32> to vector<16x32xf32>
    %289 = arith.addf %287, %288 : vector<16x32xf32>
    %c2_96 = arith.constant 2 : index
    %c0_97 = arith.constant 0 : index
    %c0_98 = arith.constant 0 : index
    %290 = vector.load %arg4[%c2_96, %c0_97, %c0_98] : memref<6x32x128xf32, #tpu.memory_space<vmem>>, vector<1x32x128xf32>
    %291 = vector.shape_cast %290 : vector<1x32x128xf32> to vector<32x128xf32>
    %c2_99 = arith.constant 2 : index
    %c0_100 = arith.constant 0 : index
    %c0_101 = arith.constant 0 : index
    %292 = vector.load %arg5[%c2_99, %c0_100, %c0_101] : memref<6x2x128xf32, #tpu.memory_space<vmem>>, vector<1x2x128xf32>
    %293 = vector.shape_cast %292 : vector<1x2x128xf32> to vector<2x128xf32>
    %294 = vector.extract_strided_slice %293 {offsets = [0, 0], sizes = [1, 128], strides = [1, 1]} : vector<2x128xf32> to vector<1x128xf32>
    %295 = vector.extract_strided_slice %293 {offsets = [1, 0], sizes = [1, 128], strides = [1, 1]} : vector<2x128xf32> to vector<1x128xf32>
    %cst_102 = arith.constant dense<0.000000e+00> : vector<16x128xf32>
    %296 = tpu.matmul %7, %291, %cst_102 {dimension_numbers = #tpu.dot_dimension_numbers<[1], [0], [0], [1], [0, 0, 1, 1], [], []>} : vector<16x32xf32>, vector<32x128xf32>, vector<16x128xf32> -> vector<16x128xf32>
    %297 = vector.broadcast %294 : vector<1x128xf32> to vector<16x128xf32>
    %298 = arith.addf %296, %297 : vector<16x128xf32>
    %299 = vector.extract_strided_slice %298 {offsets = [0, 0], sizes = [16, 8], strides = [1, 1]} : vector<16x128xf32> to vector<16x8xf32>
    %300 = vector.extract_strided_slice %298 {offsets = [0, 8], sizes = [16, 8], strides = [1, 1]} : vector<16x128xf32> to vector<16x8xf32>
    %301 = vector.extract_strided_slice %298 {offsets = [0, 16], sizes = [16, 8], strides = [1, 1]} : vector<16x128xf32> to vector<16x8xf32>
    %302 = vector.extract_strided_slice %298 {offsets = [0, 24], sizes = [16, 8], strides = [1, 1]} : vector<16x128xf32> to vector<16x8xf32>
    %303 = vector.shape_cast %299 : vector<16x8xf32> to vector<1x16x8xf32>
    %304 = vector.shape_cast %300 : vector<16x8xf32> to vector<1x16x8xf32>
    %305 = vector.shape_cast %301 : vector<16x8xf32> to vector<1x16x8xf32>
    %306 = vector.shape_cast %302 : vector<16x8xf32> to vector<1x16x8xf32>
    %307 = tpu.concatenate %303, %304, %305, %306 in 0 : vector<1x16x8xf32>, vector<1x16x8xf32>, vector<1x16x8xf32>, vector<1x16x8xf32> -> vector<4x16x8xf32>
    %308 = vector.extract_strided_slice %298 {offsets = [0, 32], sizes = [16, 8], strides = [1, 1]} : vector<16x128xf32> to vector<16x8xf32>
    %309 = vector.extract_strided_slice %298 {offsets = [0, 40], sizes = [16, 8], strides = [1, 1]} : vector<16x128xf32> to vector<16x8xf32>
    %310 = vector.extract_strided_slice %298 {offsets = [0, 48], sizes = [16, 8], strides = [1, 1]} : vector<16x128xf32> to vector<16x8xf32>
    %311 = vector.extract_strided_slice %298 {offsets = [0, 56], sizes = [16, 8], strides = [1, 1]} : vector<16x128xf32> to vector<16x8xf32>
    %312 = vector.shape_cast %308 : vector<16x8xf32> to vector<1x16x8xf32>
    %313 = vector.shape_cast %309 : vector<16x8xf32> to vector<1x16x8xf32>
    %314 = vector.shape_cast %310 : vector<16x8xf32> to vector<1x16x8xf32>
    %315 = vector.shape_cast %311 : vector<16x8xf32> to vector<1x16x8xf32>
    %316 = tpu.concatenate %312, %313, %314, %315 in 0 : vector<1x16x8xf32>, vector<1x16x8xf32>, vector<1x16x8xf32>, vector<1x16x8xf32> -> vector<4x16x8xf32>
    %317 = vector.extract_strided_slice %298 {offsets = [0, 64], sizes = [16, 8], strides = [1, 1]} : vector<16x128xf32> to vector<16x8xf32>
    %318 = vector.extract_strided_slice %298 {offsets = [0, 72], sizes = [16, 8], strides = [1, 1]} : vector<16x128xf32> to vector<16x8xf32>
    %319 = vector.extract_strided_slice %298 {offsets = [0, 80], sizes = [16, 8], strides = [1, 1]} : vector<16x128xf32> to vector<16x8xf32>
    %320 = vector.extract_strided_slice %298 {offsets = [0, 88], sizes = [16, 8], strides = [1, 1]} : vector<16x128xf32> to vector<16x8xf32>
    %321 = vector.shape_cast %317 : vector<16x8xf32> to vector<1x16x8xf32>
    %322 = vector.shape_cast %318 : vector<16x8xf32> to vector<1x16x8xf32>
    %323 = vector.shape_cast %319 : vector<16x8xf32> to vector<1x16x8xf32>
    %324 = vector.shape_cast %320 : vector<16x8xf32> to vector<1x16x8xf32>
    %325 = tpu.concatenate %321, %322, %323, %324 in 0 : vector<1x16x8xf32>, vector<1x16x8xf32>, vector<1x16x8xf32>, vector<1x16x8xf32> -> vector<4x16x8xf32>
    "tpu.trace_start"() <{level = 10 : i32, message = "hqd,hkd->hqk"}> : () -> ()
    %cst_103 = arith.constant dense<0.000000e+00> : vector<4x16x16xf32>
    %326 = tpu.matmul %307, %316, %cst_103 {dimension_numbers = #tpu.dot_dimension_numbers<[2], [2], [1], [1], [0, 0, 0, 1, 1, 1], [0], [0]>} : vector<4x16x8xf32>, vector<4x16x8xf32>, vector<4x16x16xf32> -> vector<4x16x16xf32>
    "tpu.trace_stop"() : () -> ()
    %cst_104 = arith.constant 0.353553385 : f32
    %327 = vector.broadcast %cst_104 : f32 to vector<4x16x16xf32>
    %328 = arith.mulf %326, %327 : vector<4x16x16xf32>
    %cst_105 = arith.constant dense<0xFF800000> : vector<4x16xf32>
    %329 = vector.multi_reduction <maximumf>, %328, %cst_105 [2] : vector<4x16x16xf32> to vector<4x16xf32>
    %330 = vector.shape_cast %329 : vector<4x16xf32> to vector<4x16x1xf32>
    %331 = vector.broadcast %330 : vector<4x16x1xf32> to vector<4x16x16xf32>
    %332 = arith.subf %328, %331 : vector<4x16x16xf32>
    %333 = math.exp %332 : vector<4x16x16xf32>
    %cst_106 = arith.constant dense<0.000000e+00> : vector<4x16xf32>
    %334 = vector.multi_reduction <add>, %333, %cst_106 [2] : vector<4x16x16xf32> to vector<4x16xf32>
    %335 = vector.shape_cast %334 : vector<4x16xf32> to vector<4x16x1xf32>
    %336 = tpu.reciprocal %335 {approx = true} : vector<4x16x1xf32> -> vector<4x16x1xf32>
    %337 = vector.broadcast %336 : vector<4x16x1xf32> to vector<4x16x16xf32>
    %338 = arith.mulf %333, %337 : vector<4x16x16xf32>
    "tpu.trace_start"() <{level = 10 : i32, message = "hqk,hkd->hqd"}> : () -> ()
    %cst_107 = arith.constant dense<0.000000e+00> : vector<4x16x8xf32>
    %339 = tpu.matmul %338, %325, %cst_107 {dimension_numbers = #tpu.dot_dimension_numbers<[2], [1], [1], [2], [0, 0, 0, 1, 1, 2], [0], [0]>} : vector<4x16x16xf32>, vector<4x16x8xf32>, vector<4x16x8xf32> -> vector<4x16x8xf32>
    "tpu.trace_stop"() : () -> ()
    %340 = vector.extract_strided_slice %339 {offsets = [0, 0, 0], sizes = [1, 16, 8], strides = [1, 1, 1]} : vector<4x16x8xf32> to vector<1x16x8xf32>
    %341 = vector.shape_cast %340 : vector<1x16x8xf32> to vector<16x8xf32>
    %342 = vector.extract_strided_slice %339 {offsets = [1, 0, 0], sizes = [1, 16, 8], strides = [1, 1, 1]} : vector<4x16x8xf32> to vector<1x16x8xf32>
    %343 = vector.shape_cast %342 : vector<1x16x8xf32> to vector<16x8xf32>
    %344 = vector.extract_strided_slice %339 {offsets = [2, 0, 0], sizes = [1, 16, 8], strides = [1, 1, 1]} : vector<4x16x8xf32> to vector<1x16x8xf32>
    %345 = vector.shape_cast %344 : vector<1x16x8xf32> to vector<16x8xf32>
    %346 = vector.extract_strided_slice %339 {offsets = [3, 0, 0], sizes = [1, 16, 8], strides = [1, 1, 1]} : vector<4x16x8xf32> to vector<1x16x8xf32>
    %347 = vector.shape_cast %346 : vector<1x16x8xf32> to vector<16x8xf32>
    %348 = tpu.concatenate %341, %343, %345, %347 in 1 : vector<16x8xf32>, vector<16x8xf32>, vector<16x8xf32>, vector<16x8xf32> -> vector<16x32xf32>
    %cst_108 = arith.constant dense<0.000000e+00> : vector<16x128xf32>
    %349 = tpu.matmul %348, %291, %cst_108 {dimension_numbers = #tpu.dot_dimension_numbers<[1], [0], [0], [1], [0, 0, 1, 1], [], []>} : vector<16x32xf32>, vector<32x128xf32>, vector<16x128xf32> -> vector<16x128xf32>
    %350 = vector.broadcast %295 : vector<1x128xf32> to vector<16x128xf32>
    %351 = arith.addf %349, %350 : vector<16x128xf32>
    %352 = vector.extract_strided_slice %351 {offsets = [0, 96], sizes = [16, 32], strides = [1, 1]} : vector<16x128xf32> to vector<16x32xf32>
    %353 = arith.addf %7, %352 : vector<16x32xf32>
    %c5 = arith.constant 5 : index
    %c0_109 = arith.constant 0 : index
    %c0_110 = arith.constant 0 : index
    %354 = vector.load %arg6[%c5, %c0_109, %c0_110] : memref<12x2x32xf32, #tpu.memory_space<vmem>>, vector<1x2x32xf32>
    %355 = vector.shape_cast %354 : vector<1x2x32xf32> to vector<2x32xf32>
    %356 = vector.extract_strided_slice %355 {offsets = [0, 0], sizes = [1, 32], strides = [1, 1]} : vector<2x32xf32> to vector<1x32xf32>
    %357 = vector.extract_strided_slice %355 {offsets = [1, 0], sizes = [1, 32], strides = [1, 1]} : vector<2x32xf32> to vector<1x32xf32>
    %cst_111 = arith.constant dense<0.000000e+00> : vector<16xf32>
    %358 = vector.multi_reduction <add>, %353, %cst_111 [1] : vector<16x32xf32> to vector<16xf32>
    %359 = vector.shape_cast %358 : vector<16xf32> to vector<16x1xf32>
    %cst_112 = arith.constant 3.200000e+01 : f32
    %360 = vector.broadcast %cst_112 : f32 to vector<16x1xf32>
    %361 = arith.divf %359, %360 : vector<16x1xf32>
    %362 = vector.broadcast %361 : vector<16x1xf32> to vector<16x32xf32>
    %363 = arith.subf %353, %362 : vector<16x32xf32>
    %364 = arith.mulf %363, %363 : vector<16x32xf32>
    %cst_113 = arith.constant dense<0.000000e+00> : vector<16xf32>
    %365 = vector.multi_reduction <add>, %364, %cst_113 [1] : vector<16x32xf32> to vector<16xf32>
    %366 = vector.shape_cast %365 : vector<16xf32> to vector<16x1xf32>
    %cst_114 = arith.constant 3.200000e+01 : f32
    %367 = vector.broadcast %cst_114 : f32 to vector<16x1xf32>
    %368 = arith.divf %366, %367 : vector<16x1xf32>
    %cst_115 = arith.constant 9.99999974E-6 : f32
    %369 = vector.broadcast %cst_115 : f32 to vector<16x1xf32>
    %370 = arith.addf %368, %369 : vector<16x1xf32>
    %371 = math.rsqrt %370 : vector<16x1xf32>
    %372 = vector.broadcast %371 : vector<16x1xf32> to vector<16x32xf32>
    %373 = arith.mulf %363, %372 : vector<16x32xf32>
    %374 = vector.broadcast %356 : vector<1x32xf32> to vector<16x32xf32>
    %375 = arith.mulf %373, %374 : vector<16x32xf32>
    %376 = vector.broadcast %357 : vector<1x32xf32> to vector<16x32xf32>
    %377 = arith.addf %375, %376 : vector<16x32xf32>
    %c3_116 = arith.constant 3 : index
    %c0_117 = arith.constant 0 : index
    %c0_118 = arith.constant 0 : index
    %378 = vector.load %arg4[%c3_116, %c0_117, %c0_118] : memref<6x32x128xf32, #tpu.memory_space<vmem>>, vector<1x32x128xf32>
    %379 = vector.shape_cast %378 : vector<1x32x128xf32> to vector<32x128xf32>
    %c3_119 = arith.constant 3 : index
    %c0_120 = arith.constant 0 : index
    %c0_121 = arith.constant 0 : index
    %380 = vector.load %arg5[%c3_119, %c0_120, %c0_121] : memref<6x2x128xf32, #tpu.memory_space<vmem>>, vector<1x2x128xf32>
    %381 = vector.shape_cast %380 : vector<1x2x128xf32> to vector<2x128xf32>
    %382 = vector.extract_strided_slice %381 {offsets = [0, 0], sizes = [1, 128], strides = [1, 1]} : vector<2x128xf32> to vector<1x128xf32>
    %383 = vector.extract_strided_slice %381 {offsets = [1, 0], sizes = [1, 128], strides = [1, 1]} : vector<2x128xf32> to vector<1x128xf32>
    %cst_122 = arith.constant dense<0.000000e+00> : vector<16x128xf32>
    %384 = tpu.matmul %377, %379, %cst_122 {dimension_numbers = #tpu.dot_dimension_numbers<[1], [0], [0], [1], [0, 0, 1, 1], [], []>} : vector<16x32xf32>, vector<32x128xf32>, vector<16x128xf32> -> vector<16x128xf32>
    %385 = vector.broadcast %382 : vector<1x128xf32> to vector<16x128xf32>
    %386 = arith.addf %384, %385 : vector<16x128xf32>
    %cst_123 = arith.constant dense<0.000000e+00> : vector<16x128xf32>
    %387 = tpu.matmul %289, %379, %cst_123 {dimension_numbers = #tpu.dot_dimension_numbers<[1], [0], [0], [1], [0, 0, 1, 1], [], []>} : vector<16x32xf32>, vector<32x128xf32>, vector<16x128xf32> -> vector<16x128xf32>
    %388 = vector.broadcast %382 : vector<1x128xf32> to vector<16x128xf32>
    %389 = arith.addf %387, %388 : vector<16x128xf32>
    %390 = vector.extract_strided_slice %386 {offsets = [0, 0], sizes = [16, 8], strides = [1, 1]} : vector<16x128xf32> to vector<16x8xf32>
    %391 = vector.extract_strided_slice %386 {offsets = [0, 8], sizes = [16, 8], strides = [1, 1]} : vector<16x128xf32> to vector<16x8xf32>
    %392 = vector.extract_strided_slice %386 {offsets = [0, 16], sizes = [16, 8], strides = [1, 1]} : vector<16x128xf32> to vector<16x8xf32>
    %393 = vector.extract_strided_slice %386 {offsets = [0, 24], sizes = [16, 8], strides = [1, 1]} : vector<16x128xf32> to vector<16x8xf32>
    %394 = vector.shape_cast %390 : vector<16x8xf32> to vector<1x16x8xf32>
    %395 = vector.shape_cast %391 : vector<16x8xf32> to vector<1x16x8xf32>
    %396 = vector.shape_cast %392 : vector<16x8xf32> to vector<1x16x8xf32>
    %397 = vector.shape_cast %393 : vector<16x8xf32> to vector<1x16x8xf32>
    %398 = tpu.concatenate %394, %395, %396, %397 in 0 : vector<1x16x8xf32>, vector<1x16x8xf32>, vector<1x16x8xf32>, vector<1x16x8xf32> -> vector<4x16x8xf32>
    %399 = vector.extract_strided_slice %389 {offsets = [0, 32], sizes = [16, 8], strides = [1, 1]} : vector<16x128xf32> to vector<16x8xf32>
    %400 = vector.extract_strided_slice %389 {offsets = [0, 40], sizes = [16, 8], strides = [1, 1]} : vector<16x128xf32> to vector<16x8xf32>
    %401 = vector.extract_strided_slice %389 {offsets = [0, 48], sizes = [16, 8], strides = [1, 1]} : vector<16x128xf32> to vector<16x8xf32>
    %402 = vector.extract_strided_slice %389 {offsets = [0, 56], sizes = [16, 8], strides = [1, 1]} : vector<16x128xf32> to vector<16x8xf32>
    %403 = vector.shape_cast %399 : vector<16x8xf32> to vector<1x16x8xf32>
    %404 = vector.shape_cast %400 : vector<16x8xf32> to vector<1x16x8xf32>
    %405 = vector.shape_cast %401 : vector<16x8xf32> to vector<1x16x8xf32>
    %406 = vector.shape_cast %402 : vector<16x8xf32> to vector<1x16x8xf32>
    %407 = tpu.concatenate %403, %404, %405, %406 in 0 : vector<1x16x8xf32>, vector<1x16x8xf32>, vector<1x16x8xf32>, vector<1x16x8xf32> -> vector<4x16x8xf32>
    %408 = vector.extract_strided_slice %389 {offsets = [0, 64], sizes = [16, 8], strides = [1, 1]} : vector<16x128xf32> to vector<16x8xf32>
    %409 = vector.extract_strided_slice %389 {offsets = [0, 72], sizes = [16, 8], strides = [1, 1]} : vector<16x128xf32> to vector<16x8xf32>
    %410 = vector.extract_strided_slice %389 {offsets = [0, 80], sizes = [16, 8], strides = [1, 1]} : vector<16x128xf32> to vector<16x8xf32>
    %411 = vector.extract_strided_slice %389 {offsets = [0, 88], sizes = [16, 8], strides = [1, 1]} : vector<16x128xf32> to vector<16x8xf32>
    %412 = vector.shape_cast %408 : vector<16x8xf32> to vector<1x16x8xf32>
    %413 = vector.shape_cast %409 : vector<16x8xf32> to vector<1x16x8xf32>
    %414 = vector.shape_cast %410 : vector<16x8xf32> to vector<1x16x8xf32>
    %415 = vector.shape_cast %411 : vector<16x8xf32> to vector<1x16x8xf32>
    %416 = tpu.concatenate %412, %413, %414, %415 in 0 : vector<1x16x8xf32>, vector<1x16x8xf32>, vector<1x16x8xf32>, vector<1x16x8xf32> -> vector<4x16x8xf32>
    "tpu.trace_start"() <{level = 10 : i32, message = "hqd,hkd->hqk"}> : () -> ()
    %cst_124 = arith.constant dense<0.000000e+00> : vector<4x16x16xf32>
    %417 = tpu.matmul %398, %407, %cst_124 {dimension_numbers = #tpu.dot_dimension_numbers<[2], [2], [1], [1], [0, 0, 0, 1, 1, 1], [0], [0]>} : vector<4x16x8xf32>, vector<4x16x8xf32>, vector<4x16x16xf32> -> vector<4x16x16xf32>
    "tpu.trace_stop"() : () -> ()
    %cst_125 = arith.constant 0.353553385 : f32
    %418 = vector.broadcast %cst_125 : f32 to vector<4x16x16xf32>
    %419 = arith.mulf %417, %418 : vector<4x16x16xf32>
    %cst_126 = arith.constant dense<0xFF800000> : vector<4x16xf32>
    %420 = vector.multi_reduction <maximumf>, %419, %cst_126 [2] : vector<4x16x16xf32> to vector<4x16xf32>
    %421 = vector.shape_cast %420 : vector<4x16xf32> to vector<4x16x1xf32>
    %422 = vector.broadcast %421 : vector<4x16x1xf32> to vector<4x16x16xf32>
    %423 = arith.subf %419, %422 : vector<4x16x16xf32>
    %424 = math.exp %423 : vector<4x16x16xf32>
    %cst_127 = arith.constant dense<0.000000e+00> : vector<4x16xf32>
    %425 = vector.multi_reduction <add>, %424, %cst_127 [2] : vector<4x16x16xf32> to vector<4x16xf32>
    %426 = vector.shape_cast %425 : vector<4x16xf32> to vector<4x16x1xf32>
    %427 = tpu.reciprocal %426 {approx = true} : vector<4x16x1xf32> -> vector<4x16x1xf32>
    %428 = vector.broadcast %427 : vector<4x16x1xf32> to vector<4x16x16xf32>
    %429 = arith.mulf %424, %428 : vector<4x16x16xf32>
    "tpu.trace_start"() <{level = 10 : i32, message = "hqk,hkd->hqd"}> : () -> ()
    %cst_128 = arith.constant dense<0.000000e+00> : vector<4x16x8xf32>
    %430 = tpu.matmul %429, %416, %cst_128 {dimension_numbers = #tpu.dot_dimension_numbers<[2], [1], [1], [2], [0, 0, 0, 1, 1, 2], [0], [0]>} : vector<4x16x16xf32>, vector<4x16x8xf32>, vector<4x16x8xf32> -> vector<4x16x8xf32>
    "tpu.trace_stop"() : () -> ()
    %431 = vector.extract_strided_slice %430 {offsets = [0, 0, 0], sizes = [1, 16, 8], strides = [1, 1, 1]} : vector<4x16x8xf32> to vector<1x16x8xf32>
    %432 = vector.shape_cast %431 : vector<1x16x8xf32> to vector<16x8xf32>
    %433 = vector.extract_strided_slice %430 {offsets = [1, 0, 0], sizes = [1, 16, 8], strides = [1, 1, 1]} : vector<4x16x8xf32> to vector<1x16x8xf32>
    %434 = vector.shape_cast %433 : vector<1x16x8xf32> to vector<16x8xf32>
    %435 = vector.extract_strided_slice %430 {offsets = [2, 0, 0], sizes = [1, 16, 8], strides = [1, 1, 1]} : vector<4x16x8xf32> to vector<1x16x8xf32>
    %436 = vector.shape_cast %435 : vector<1x16x8xf32> to vector<16x8xf32>
    %437 = vector.extract_strided_slice %430 {offsets = [3, 0, 0], sizes = [1, 16, 8], strides = [1, 1, 1]} : vector<4x16x8xf32> to vector<1x16x8xf32>
    %438 = vector.shape_cast %437 : vector<1x16x8xf32> to vector<16x8xf32>
    %439 = tpu.concatenate %432, %434, %436, %438 in 1 : vector<16x8xf32>, vector<16x8xf32>, vector<16x8xf32>, vector<16x8xf32> -> vector<16x32xf32>
    %cst_129 = arith.constant dense<0.000000e+00> : vector<16x128xf32>
    %440 = tpu.matmul %439, %379, %cst_129 {dimension_numbers = #tpu.dot_dimension_numbers<[1], [0], [0], [1], [0, 0, 1, 1], [], []>} : vector<16x32xf32>, vector<32x128xf32>, vector<16x128xf32> -> vector<16x128xf32>
    %441 = vector.broadcast %383 : vector<1x128xf32> to vector<16x128xf32>
    %442 = arith.addf %440, %441 : vector<16x128xf32>
    %443 = vector.extract_strided_slice %442 {offsets = [0, 96], sizes = [16, 32], strides = [1, 1]} : vector<16x128xf32> to vector<16x32xf32>
    %444 = arith.addf %377, %443 : vector<16x32xf32>
    %c6 = arith.constant 6 : index
    %c0_130 = arith.constant 0 : index
    %c0_131 = arith.constant 0 : index
    %445 = vector.load %arg6[%c6, %c0_130, %c0_131] : memref<12x2x32xf32, #tpu.memory_space<vmem>>, vector<1x2x32xf32>
    %446 = vector.shape_cast %445 : vector<1x2x32xf32> to vector<2x32xf32>
    %447 = vector.extract_strided_slice %446 {offsets = [0, 0], sizes = [1, 32], strides = [1, 1]} : vector<2x32xf32> to vector<1x32xf32>
    %448 = vector.extract_strided_slice %446 {offsets = [1, 0], sizes = [1, 32], strides = [1, 1]} : vector<2x32xf32> to vector<1x32xf32>
    %cst_132 = arith.constant dense<0.000000e+00> : vector<16xf32>
    %449 = vector.multi_reduction <add>, %444, %cst_132 [1] : vector<16x32xf32> to vector<16xf32>
    %450 = vector.shape_cast %449 : vector<16xf32> to vector<16x1xf32>
    %cst_133 = arith.constant 3.200000e+01 : f32
    %451 = vector.broadcast %cst_133 : f32 to vector<16x1xf32>
    %452 = arith.divf %450, %451 : vector<16x1xf32>
    %453 = vector.broadcast %452 : vector<16x1xf32> to vector<16x32xf32>
    %454 = arith.subf %444, %453 : vector<16x32xf32>
    %455 = arith.mulf %454, %454 : vector<16x32xf32>
    %cst_134 = arith.constant dense<0.000000e+00> : vector<16xf32>
    %456 = vector.multi_reduction <add>, %455, %cst_134 [1] : vector<16x32xf32> to vector<16xf32>
    %457 = vector.shape_cast %456 : vector<16xf32> to vector<16x1xf32>
    %cst_135 = arith.constant 3.200000e+01 : f32
    %458 = vector.broadcast %cst_135 : f32 to vector<16x1xf32>
    %459 = arith.divf %457, %458 : vector<16x1xf32>
    %cst_136 = arith.constant 9.99999974E-6 : f32
    %460 = vector.broadcast %cst_136 : f32 to vector<16x1xf32>
    %461 = arith.addf %459, %460 : vector<16x1xf32>
    %462 = math.rsqrt %461 : vector<16x1xf32>
    %463 = vector.broadcast %462 : vector<16x1xf32> to vector<16x32xf32>
    %464 = arith.mulf %454, %463 : vector<16x32xf32>
    %465 = vector.broadcast %447 : vector<1x32xf32> to vector<16x32xf32>
    %466 = arith.mulf %464, %465 : vector<16x32xf32>
    %467 = vector.broadcast %448 : vector<1x32xf32> to vector<16x32xf32>
    %468 = arith.addf %466, %467 : vector<16x32xf32>
    %c2_137 = arith.constant 2 : index
    %c0_138 = arith.constant 0 : index
    %c0_139 = arith.constant 0 : index
    %469 = vector.load %arg7[%c2_137, %c0_138, %c0_139] : memref<4x32x64xf32, #tpu.memory_space<vmem>>, vector<1x32x64xf32>
    %470 = vector.shape_cast %469 : vector<1x32x64xf32> to vector<32x64xf32>
    %c2_140 = arith.constant 2 : index
    %c0_141 = arith.constant 0 : index
    %c0_142 = arith.constant 0 : index
    %471 = vector.load %arg8[%c2_140, %c0_141, %c0_142] : memref<4x64x32xf32, #tpu.memory_space<vmem>>, vector<1x64x32xf32>
    %472 = vector.shape_cast %471 : vector<1x64x32xf32> to vector<64x32xf32>
    %c2_143 = arith.constant 2 : index
    %c0_144 = arith.constant 0 : index
    %c0_145 = arith.constant 0 : index
    %473 = vector.load %arg9[%c2_143, %c0_144, %c0_145] : memref<4x2x64xf32, #tpu.memory_space<vmem>>, vector<1x2x64xf32>
    %474 = vector.shape_cast %473 : vector<1x2x64xf32> to vector<2x64xf32>
    %cst_146 = arith.constant dense<0.000000e+00> : vector<16x64xf32>
    %475 = tpu.matmul %468, %470, %cst_146 {dimension_numbers = #tpu.dot_dimension_numbers<[1], [0], [0], [1], [0, 0, 1, 1], [], []>} : vector<16x32xf32>, vector<32x64xf32>, vector<16x64xf32> -> vector<16x64xf32>
    %476 = vector.extract_strided_slice %474 {offsets = [0, 0], sizes = [1, 64], strides = [1, 1]} : vector<2x64xf32> to vector<1x64xf32>
    %477 = vector.broadcast %476 : vector<1x64xf32> to vector<16x64xf32>
    %478 = arith.addf %475, %477 : vector<16x64xf32>
    %cst_147 = arith.constant 0.000000e+00 : f32
    %479 = vector.broadcast %cst_147 : f32 to vector<16x64xf32>
    %480 = arith.maximumf %478, %479 : vector<16x64xf32>
    %cst_148 = arith.constant dense<0.000000e+00> : vector<16x32xf32>
    %481 = tpu.matmul %480, %472, %cst_148 {dimension_numbers = #tpu.dot_dimension_numbers<[1], [0], [0], [1], [0, 0, 1, 1], [], []>} : vector<16x64xf32>, vector<64x32xf32>, vector<16x32xf32> -> vector<16x32xf32>
    %482 = vector.extract_strided_slice %474 {offsets = [1, 0], sizes = [1, 32], strides = [1, 1]} : vector<2x64xf32> to vector<1x32xf32>
    %483 = vector.broadcast %482 : vector<1x32xf32> to vector<16x32xf32>
    %484 = arith.addf %481, %483 : vector<16x32xf32>
    %485 = arith.addf %468, %484 : vector<16x32xf32>
    %c7 = arith.constant 7 : index
    %c0_149 = arith.constant 0 : index
    %c0_150 = arith.constant 0 : index
    %486 = vector.load %arg6[%c7, %c0_149, %c0_150] : memref<12x2x32xf32, #tpu.memory_space<vmem>>, vector<1x2x32xf32>
    %487 = vector.shape_cast %486 : vector<1x2x32xf32> to vector<2x32xf32>
    %488 = vector.extract_strided_slice %487 {offsets = [0, 0], sizes = [1, 32], strides = [1, 1]} : vector<2x32xf32> to vector<1x32xf32>
    %489 = vector.extract_strided_slice %487 {offsets = [1, 0], sizes = [1, 32], strides = [1, 1]} : vector<2x32xf32> to vector<1x32xf32>
    %cst_151 = arith.constant dense<0.000000e+00> : vector<16xf32>
    %490 = vector.multi_reduction <add>, %485, %cst_151 [1] : vector<16x32xf32> to vector<16xf32>
    %491 = vector.shape_cast %490 : vector<16xf32> to vector<16x1xf32>
    %cst_152 = arith.constant 3.200000e+01 : f32
    %492 = vector.broadcast %cst_152 : f32 to vector<16x1xf32>
    %493 = arith.divf %491, %492 : vector<16x1xf32>
    %494 = vector.broadcast %493 : vector<16x1xf32> to vector<16x32xf32>
    %495 = arith.subf %485, %494 : vector<16x32xf32>
    %496 = arith.mulf %495, %495 : vector<16x32xf32>
    %cst_153 = arith.constant dense<0.000000e+00> : vector<16xf32>
    %497 = vector.multi_reduction <add>, %496, %cst_153 [1] : vector<16x32xf32> to vector<16xf32>
    %498 = vector.shape_cast %497 : vector<16xf32> to vector<16x1xf32>
    %cst_154 = arith.constant 3.200000e+01 : f32
    %499 = vector.broadcast %cst_154 : f32 to vector<16x1xf32>
    %500 = arith.divf %498, %499 : vector<16x1xf32>
    %cst_155 = arith.constant 9.99999974E-6 : f32
    %501 = vector.broadcast %cst_155 : f32 to vector<16x1xf32>
    %502 = arith.addf %500, %501 : vector<16x1xf32>
    %503 = math.rsqrt %502 : vector<16x1xf32>
    %504 = vector.broadcast %503 : vector<16x1xf32> to vector<16x32xf32>
    %505 = arith.mulf %495, %504 : vector<16x32xf32>
    %506 = vector.broadcast %488 : vector<1x32xf32> to vector<16x32xf32>
    %507 = arith.mulf %505, %506 : vector<16x32xf32>
    %508 = vector.broadcast %489 : vector<1x32xf32> to vector<16x32xf32>
    %509 = arith.addf %507, %508 : vector<16x32xf32>
    %c4_156 = arith.constant 4 : index
    %c0_157 = arith.constant 0 : index
    %c0_158 = arith.constant 0 : index
    %510 = vector.load %arg4[%c4_156, %c0_157, %c0_158] : memref<6x32x128xf32, #tpu.memory_space<vmem>>, vector<1x32x128xf32>
    %511 = vector.shape_cast %510 : vector<1x32x128xf32> to vector<32x128xf32>
    %c4_159 = arith.constant 4 : index
    %c0_160 = arith.constant 0 : index
    %c0_161 = arith.constant 0 : index
    %512 = vector.load %arg5[%c4_159, %c0_160, %c0_161] : memref<6x2x128xf32, #tpu.memory_space<vmem>>, vector<1x2x128xf32>
    %513 = vector.shape_cast %512 : vector<1x2x128xf32> to vector<2x128xf32>
    %514 = vector.extract_strided_slice %513 {offsets = [0, 0], sizes = [1, 128], strides = [1, 1]} : vector<2x128xf32> to vector<1x128xf32>
    %515 = vector.extract_strided_slice %513 {offsets = [1, 0], sizes = [1, 128], strides = [1, 1]} : vector<2x128xf32> to vector<1x128xf32>
    %cst_162 = arith.constant dense<0.000000e+00> : vector<16x128xf32>
    %516 = tpu.matmul %509, %511, %cst_162 {dimension_numbers = #tpu.dot_dimension_numbers<[1], [0], [0], [1], [0, 0, 1, 1], [], []>} : vector<16x32xf32>, vector<32x128xf32>, vector<16x128xf32> -> vector<16x128xf32>
    %517 = vector.broadcast %514 : vector<1x128xf32> to vector<16x128xf32>
    %518 = arith.addf %516, %517 : vector<16x128xf32>
    %519 = vector.extract_strided_slice %518 {offsets = [0, 0], sizes = [16, 8], strides = [1, 1]} : vector<16x128xf32> to vector<16x8xf32>
    %520 = vector.extract_strided_slice %518 {offsets = [0, 8], sizes = [16, 8], strides = [1, 1]} : vector<16x128xf32> to vector<16x8xf32>
    %521 = vector.extract_strided_slice %518 {offsets = [0, 16], sizes = [16, 8], strides = [1, 1]} : vector<16x128xf32> to vector<16x8xf32>
    %522 = vector.extract_strided_slice %518 {offsets = [0, 24], sizes = [16, 8], strides = [1, 1]} : vector<16x128xf32> to vector<16x8xf32>
    %523 = vector.shape_cast %519 : vector<16x8xf32> to vector<1x16x8xf32>
    %524 = vector.shape_cast %520 : vector<16x8xf32> to vector<1x16x8xf32>
    %525 = vector.shape_cast %521 : vector<16x8xf32> to vector<1x16x8xf32>
    %526 = vector.shape_cast %522 : vector<16x8xf32> to vector<1x16x8xf32>
    %527 = tpu.concatenate %523, %524, %525, %526 in 0 : vector<1x16x8xf32>, vector<1x16x8xf32>, vector<1x16x8xf32>, vector<1x16x8xf32> -> vector<4x16x8xf32>
    %528 = vector.extract_strided_slice %518 {offsets = [0, 32], sizes = [16, 8], strides = [1, 1]} : vector<16x128xf32> to vector<16x8xf32>
    %529 = vector.extract_strided_slice %518 {offsets = [0, 40], sizes = [16, 8], strides = [1, 1]} : vector<16x128xf32> to vector<16x8xf32>
    %530 = vector.extract_strided_slice %518 {offsets = [0, 48], sizes = [16, 8], strides = [1, 1]} : vector<16x128xf32> to vector<16x8xf32>
    %531 = vector.extract_strided_slice %518 {offsets = [0, 56], sizes = [16, 8], strides = [1, 1]} : vector<16x128xf32> to vector<16x8xf32>
    %532 = vector.shape_cast %528 : vector<16x8xf32> to vector<1x16x8xf32>
    %533 = vector.shape_cast %529 : vector<16x8xf32> to vector<1x16x8xf32>
    %534 = vector.shape_cast %530 : vector<16x8xf32> to vector<1x16x8xf32>
    %535 = vector.shape_cast %531 : vector<16x8xf32> to vector<1x16x8xf32>
    %536 = tpu.concatenate %532, %533, %534, %535 in 0 : vector<1x16x8xf32>, vector<1x16x8xf32>, vector<1x16x8xf32>, vector<1x16x8xf32> -> vector<4x16x8xf32>
    %537 = vector.extract_strided_slice %518 {offsets = [0, 64], sizes = [16, 8], strides = [1, 1]} : vector<16x128xf32> to vector<16x8xf32>
    %538 = vector.extract_strided_slice %518 {offsets = [0, 72], sizes = [16, 8], strides = [1, 1]} : vector<16x128xf32> to vector<16x8xf32>
    %539 = vector.extract_strided_slice %518 {offsets = [0, 80], sizes = [16, 8], strides = [1, 1]} : vector<16x128xf32> to vector<16x8xf32>
    %540 = vector.extract_strided_slice %518 {offsets = [0, 88], sizes = [16, 8], strides = [1, 1]} : vector<16x128xf32> to vector<16x8xf32>
    %541 = vector.shape_cast %537 : vector<16x8xf32> to vector<1x16x8xf32>
    %542 = vector.shape_cast %538 : vector<16x8xf32> to vector<1x16x8xf32>
    %543 = vector.shape_cast %539 : vector<16x8xf32> to vector<1x16x8xf32>
    %544 = vector.shape_cast %540 : vector<16x8xf32> to vector<1x16x8xf32>
    %545 = tpu.concatenate %541, %542, %543, %544 in 0 : vector<1x16x8xf32>, vector<1x16x8xf32>, vector<1x16x8xf32>, vector<1x16x8xf32> -> vector<4x16x8xf32>
    "tpu.trace_start"() <{level = 10 : i32, message = "hqd,hkd->hqk"}> : () -> ()
    %cst_163 = arith.constant dense<0.000000e+00> : vector<4x16x16xf32>
    %546 = tpu.matmul %527, %536, %cst_163 {dimension_numbers = #tpu.dot_dimension_numbers<[2], [2], [1], [1], [0, 0, 0, 1, 1, 1], [0], [0]>} : vector<4x16x8xf32>, vector<4x16x8xf32>, vector<4x16x16xf32> -> vector<4x16x16xf32>
    "tpu.trace_stop"() : () -> ()
    %cst_164 = arith.constant 0.353553385 : f32
    %547 = vector.broadcast %cst_164 : f32 to vector<4x16x16xf32>
    %548 = arith.mulf %546, %547 : vector<4x16x16xf32>
    %cst_165 = arith.constant dense<0xFF800000> : vector<4x16xf32>
    %549 = vector.multi_reduction <maximumf>, %548, %cst_165 [2] : vector<4x16x16xf32> to vector<4x16xf32>
    %550 = vector.shape_cast %549 : vector<4x16xf32> to vector<4x16x1xf32>
    %551 = vector.broadcast %550 : vector<4x16x1xf32> to vector<4x16x16xf32>
    %552 = arith.subf %548, %551 : vector<4x16x16xf32>
    %553 = math.exp %552 : vector<4x16x16xf32>
    %cst_166 = arith.constant dense<0.000000e+00> : vector<4x16xf32>
    %554 = vector.multi_reduction <add>, %553, %cst_166 [2] : vector<4x16x16xf32> to vector<4x16xf32>
    %555 = vector.shape_cast %554 : vector<4x16xf32> to vector<4x16x1xf32>
    %556 = tpu.reciprocal %555 {approx = true} : vector<4x16x1xf32> -> vector<4x16x1xf32>
    %557 = vector.broadcast %556 : vector<4x16x1xf32> to vector<4x16x16xf32>
    %558 = arith.mulf %553, %557 : vector<4x16x16xf32>
    "tpu.trace_start"() <{level = 10 : i32, message = "hqk,hkd->hqd"}> : () -> ()
    %cst_167 = arith.constant dense<0.000000e+00> : vector<4x16x8xf32>
    %559 = tpu.matmul %558, %545, %cst_167 {dimension_numbers = #tpu.dot_dimension_numbers<[2], [1], [1], [2], [0, 0, 0, 1, 1, 2], [0], [0]>} : vector<4x16x16xf32>, vector<4x16x8xf32>, vector<4x16x8xf32> -> vector<4x16x8xf32>
    "tpu.trace_stop"() : () -> ()
    %560 = vector.extract_strided_slice %559 {offsets = [0, 0, 0], sizes = [1, 16, 8], strides = [1, 1, 1]} : vector<4x16x8xf32> to vector<1x16x8xf32>
    %561 = vector.shape_cast %560 : vector<1x16x8xf32> to vector<16x8xf32>
    %562 = vector.extract_strided_slice %559 {offsets = [1, 0, 0], sizes = [1, 16, 8], strides = [1, 1, 1]} : vector<4x16x8xf32> to vector<1x16x8xf32>
    %563 = vector.shape_cast %562 : vector<1x16x8xf32> to vector<16x8xf32>
    %564 = vector.extract_strided_slice %559 {offsets = [2, 0, 0], sizes = [1, 16, 8], strides = [1, 1, 1]} : vector<4x16x8xf32> to vector<1x16x8xf32>
    %565 = vector.shape_cast %564 : vector<1x16x8xf32> to vector<16x8xf32>
    %566 = vector.extract_strided_slice %559 {offsets = [3, 0, 0], sizes = [1, 16, 8], strides = [1, 1, 1]} : vector<4x16x8xf32> to vector<1x16x8xf32>
    %567 = vector.shape_cast %566 : vector<1x16x8xf32> to vector<16x8xf32>
    %568 = tpu.concatenate %561, %563, %565, %567 in 1 : vector<16x8xf32>, vector<16x8xf32>, vector<16x8xf32>, vector<16x8xf32> -> vector<16x32xf32>
    %cst_168 = arith.constant dense<0.000000e+00> : vector<16x128xf32>
    %569 = tpu.matmul %568, %511, %cst_168 {dimension_numbers = #tpu.dot_dimension_numbers<[1], [0], [0], [1], [0, 0, 1, 1], [], []>} : vector<16x32xf32>, vector<32x128xf32>, vector<16x128xf32> -> vector<16x128xf32>
    %570 = vector.broadcast %515 : vector<1x128xf32> to vector<16x128xf32>
    %571 = arith.addf %569, %570 : vector<16x128xf32>
    %572 = vector.extract_strided_slice %571 {offsets = [0, 96], sizes = [16, 32], strides = [1, 1]} : vector<16x128xf32> to vector<16x32xf32>
    %573 = arith.addf %509, %572 : vector<16x32xf32>
    %c8 = arith.constant 8 : index
    %c0_169 = arith.constant 0 : index
    %c0_170 = arith.constant 0 : index
    %574 = vector.load %arg6[%c8, %c0_169, %c0_170] : memref<12x2x32xf32, #tpu.memory_space<vmem>>, vector<1x2x32xf32>
    %575 = vector.shape_cast %574 : vector<1x2x32xf32> to vector<2x32xf32>
    %576 = vector.extract_strided_slice %575 {offsets = [0, 0], sizes = [1, 32], strides = [1, 1]} : vector<2x32xf32> to vector<1x32xf32>
    %577 = vector.extract_strided_slice %575 {offsets = [1, 0], sizes = [1, 32], strides = [1, 1]} : vector<2x32xf32> to vector<1x32xf32>
    %cst_171 = arith.constant dense<0.000000e+00> : vector<16xf32>
    %578 = vector.multi_reduction <add>, %573, %cst_171 [1] : vector<16x32xf32> to vector<16xf32>
    %579 = vector.shape_cast %578 : vector<16xf32> to vector<16x1xf32>
    %cst_172 = arith.constant 3.200000e+01 : f32
    %580 = vector.broadcast %cst_172 : f32 to vector<16x1xf32>
    %581 = arith.divf %579, %580 : vector<16x1xf32>
    %582 = vector.broadcast %581 : vector<16x1xf32> to vector<16x32xf32>
    %583 = arith.subf %573, %582 : vector<16x32xf32>
    %584 = arith.mulf %583, %583 : vector<16x32xf32>
    %cst_173 = arith.constant dense<0.000000e+00> : vector<16xf32>
    %585 = vector.multi_reduction <add>, %584, %cst_173 [1] : vector<16x32xf32> to vector<16xf32>
    %586 = vector.shape_cast %585 : vector<16xf32> to vector<16x1xf32>
    %cst_174 = arith.constant 3.200000e+01 : f32
    %587 = vector.broadcast %cst_174 : f32 to vector<16x1xf32>
    %588 = arith.divf %586, %587 : vector<16x1xf32>
    %cst_175 = arith.constant 9.99999974E-6 : f32
    %589 = vector.broadcast %cst_175 : f32 to vector<16x1xf32>
    %590 = arith.addf %588, %589 : vector<16x1xf32>
    %591 = math.rsqrt %590 : vector<16x1xf32>
    %592 = vector.broadcast %591 : vector<16x1xf32> to vector<16x32xf32>
    %593 = arith.mulf %583, %592 : vector<16x32xf32>
    %594 = vector.broadcast %576 : vector<1x32xf32> to vector<16x32xf32>
    %595 = arith.mulf %593, %594 : vector<16x32xf32>
    %596 = vector.broadcast %577 : vector<1x32xf32> to vector<16x32xf32>
    %597 = arith.addf %595, %596 : vector<16x32xf32>
    %c5_176 = arith.constant 5 : index
    %c0_177 = arith.constant 0 : index
    %c0_178 = arith.constant 0 : index
    %598 = vector.load %arg4[%c5_176, %c0_177, %c0_178] : memref<6x32x128xf32, #tpu.memory_space<vmem>>, vector<1x32x128xf32>
    %599 = vector.shape_cast %598 : vector<1x32x128xf32> to vector<32x128xf32>
    %c5_179 = arith.constant 5 : index
    %c0_180 = arith.constant 0 : index
    %c0_181 = arith.constant 0 : index
    %600 = vector.load %arg5[%c5_179, %c0_180, %c0_181] : memref<6x2x128xf32, #tpu.memory_space<vmem>>, vector<1x2x128xf32>
    %601 = vector.shape_cast %600 : vector<1x2x128xf32> to vector<2x128xf32>
    %602 = vector.extract_strided_slice %601 {offsets = [0, 0], sizes = [1, 128], strides = [1, 1]} : vector<2x128xf32> to vector<1x128xf32>
    %603 = vector.extract_strided_slice %601 {offsets = [1, 0], sizes = [1, 128], strides = [1, 1]} : vector<2x128xf32> to vector<1x128xf32>
    %cst_182 = arith.constant dense<0.000000e+00> : vector<16x128xf32>
    %604 = tpu.matmul %597, %599, %cst_182 {dimension_numbers = #tpu.dot_dimension_numbers<[1], [0], [0], [1], [0, 0, 1, 1], [], []>} : vector<16x32xf32>, vector<32x128xf32>, vector<16x128xf32> -> vector<16x128xf32>
    %605 = vector.broadcast %602 : vector<1x128xf32> to vector<16x128xf32>
    %606 = arith.addf %604, %605 : vector<16x128xf32>
    %cst_183 = arith.constant dense<0.000000e+00> : vector<16x128xf32>
    %607 = tpu.matmul %289, %599, %cst_183 {dimension_numbers = #tpu.dot_dimension_numbers<[1], [0], [0], [1], [0, 0, 1, 1], [], []>} : vector<16x32xf32>, vector<32x128xf32>, vector<16x128xf32> -> vector<16x128xf32>
    %608 = vector.broadcast %602 : vector<1x128xf32> to vector<16x128xf32>
    %609 = arith.addf %607, %608 : vector<16x128xf32>
    %610 = vector.extract_strided_slice %606 {offsets = [0, 0], sizes = [16, 8], strides = [1, 1]} : vector<16x128xf32> to vector<16x8xf32>
    %611 = vector.extract_strided_slice %606 {offsets = [0, 8], sizes = [16, 8], strides = [1, 1]} : vector<16x128xf32> to vector<16x8xf32>
    %612 = vector.extract_strided_slice %606 {offsets = [0, 16], sizes = [16, 8], strides = [1, 1]} : vector<16x128xf32> to vector<16x8xf32>
    %613 = vector.extract_strided_slice %606 {offsets = [0, 24], sizes = [16, 8], strides = [1, 1]} : vector<16x128xf32> to vector<16x8xf32>
    %614 = vector.shape_cast %610 : vector<16x8xf32> to vector<1x16x8xf32>
    %615 = vector.shape_cast %611 : vector<16x8xf32> to vector<1x16x8xf32>
    %616 = vector.shape_cast %612 : vector<16x8xf32> to vector<1x16x8xf32>
    %617 = vector.shape_cast %613 : vector<16x8xf32> to vector<1x16x8xf32>
    %618 = tpu.concatenate %614, %615, %616, %617 in 0 : vector<1x16x8xf32>, vector<1x16x8xf32>, vector<1x16x8xf32>, vector<1x16x8xf32> -> vector<4x16x8xf32>
    %619 = vector.extract_strided_slice %609 {offsets = [0, 32], sizes = [16, 8], strides = [1, 1]} : vector<16x128xf32> to vector<16x8xf32>
    %620 = vector.extract_strided_slice %609 {offsets = [0, 40], sizes = [16, 8], strides = [1, 1]} : vector<16x128xf32> to vector<16x8xf32>
    %621 = vector.extract_strided_slice %609 {offsets = [0, 48], sizes = [16, 8], strides = [1, 1]} : vector<16x128xf32> to vector<16x8xf32>
    %622 = vector.extract_strided_slice %609 {offsets = [0, 56], sizes = [16, 8], strides = [1, 1]} : vector<16x128xf32> to vector<16x8xf32>
    %623 = vector.shape_cast %619 : vector<16x8xf32> to vector<1x16x8xf32>
    %624 = vector.shape_cast %620 : vector<16x8xf32> to vector<1x16x8xf32>
    %625 = vector.shape_cast %621 : vector<16x8xf32> to vector<1x16x8xf32>
    %626 = vector.shape_cast %622 : vector<16x8xf32> to vector<1x16x8xf32>
    %627 = tpu.concatenate %623, %624, %625, %626 in 0 : vector<1x16x8xf32>, vector<1x16x8xf32>, vector<1x16x8xf32>, vector<1x16x8xf32> -> vector<4x16x8xf32>
    %628 = vector.extract_strided_slice %609 {offsets = [0, 64], sizes = [16, 8], strides = [1, 1]} : vector<16x128xf32> to vector<16x8xf32>
    %629 = vector.extract_strided_slice %609 {offsets = [0, 72], sizes = [16, 8], strides = [1, 1]} : vector<16x128xf32> to vector<16x8xf32>
    %630 = vector.extract_strided_slice %609 {offsets = [0, 80], sizes = [16, 8], strides = [1, 1]} : vector<16x128xf32> to vector<16x8xf32>
    %631 = vector.extract_strided_slice %609 {offsets = [0, 88], sizes = [16, 8], strides = [1, 1]} : vector<16x128xf32> to vector<16x8xf32>
    %632 = vector.shape_cast %628 : vector<16x8xf32> to vector<1x16x8xf32>
    %633 = vector.shape_cast %629 : vector<16x8xf32> to vector<1x16x8xf32>
    %634 = vector.shape_cast %630 : vector<16x8xf32> to vector<1x16x8xf32>
    %635 = vector.shape_cast %631 : vector<16x8xf32> to vector<1x16x8xf32>
    %636 = tpu.concatenate %632, %633, %634, %635 in 0 : vector<1x16x8xf32>, vector<1x16x8xf32>, vector<1x16x8xf32>, vector<1x16x8xf32> -> vector<4x16x8xf32>
    "tpu.trace_start"() <{level = 10 : i32, message = "hqd,hkd->hqk"}> : () -> ()
    %cst_184 = arith.constant dense<0.000000e+00> : vector<4x16x16xf32>
    %637 = tpu.matmul %618, %627, %cst_184 {dimension_numbers = #tpu.dot_dimension_numbers<[2], [2], [1], [1], [0, 0, 0, 1, 1, 1], [0], [0]>} : vector<4x16x8xf32>, vector<4x16x8xf32>, vector<4x16x16xf32> -> vector<4x16x16xf32>
    "tpu.trace_stop"() : () -> ()
    %cst_185 = arith.constant 0.353553385 : f32
    %638 = vector.broadcast %cst_185 : f32 to vector<4x16x16xf32>
    %639 = arith.mulf %637, %638 : vector<4x16x16xf32>
    %cst_186 = arith.constant dense<0xFF800000> : vector<4x16xf32>
    %640 = vector.multi_reduction <maximumf>, %639, %cst_186 [2] : vector<4x16x16xf32> to vector<4x16xf32>
    %641 = vector.shape_cast %640 : vector<4x16xf32> to vector<4x16x1xf32>
    %642 = vector.broadcast %641 : vector<4x16x1xf32> to vector<4x16x16xf32>
    %643 = arith.subf %639, %642 : vector<4x16x16xf32>
    %644 = math.exp %643 : vector<4x16x16xf32>
    %cst_187 = arith.constant dense<0.000000e+00> : vector<4x16xf32>
    %645 = vector.multi_reduction <add>, %644, %cst_187 [2] : vector<4x16x16xf32> to vector<4x16xf32>
    %646 = vector.shape_cast %645 : vector<4x16xf32> to vector<4x16x1xf32>
    %647 = tpu.reciprocal %646 {approx = true} : vector<4x16x1xf32> -> vector<4x16x1xf32>
    %648 = vector.broadcast %647 : vector<4x16x1xf32> to vector<4x16x16xf32>
    %649 = arith.mulf %644, %648 : vector<4x16x16xf32>
    "tpu.trace_start"() <{level = 10 : i32, message = "hqk,hkd->hqd"}> : () -> ()
    %cst_188 = arith.constant dense<0.000000e+00> : vector<4x16x8xf32>
    %650 = tpu.matmul %649, %636, %cst_188 {dimension_numbers = #tpu.dot_dimension_numbers<[2], [1], [1], [2], [0, 0, 0, 1, 1, 2], [0], [0]>} : vector<4x16x16xf32>, vector<4x16x8xf32>, vector<4x16x8xf32> -> vector<4x16x8xf32>
    "tpu.trace_stop"() : () -> ()
    %651 = vector.extract_strided_slice %650 {offsets = [0, 0, 0], sizes = [1, 16, 8], strides = [1, 1, 1]} : vector<4x16x8xf32> to vector<1x16x8xf32>
    %652 = vector.shape_cast %651 : vector<1x16x8xf32> to vector<16x8xf32>
    %653 = vector.extract_strided_slice %650 {offsets = [1, 0, 0], sizes = [1, 16, 8], strides = [1, 1, 1]} : vector<4x16x8xf32> to vector<1x16x8xf32>
    %654 = vector.shape_cast %653 : vector<1x16x8xf32> to vector<16x8xf32>
    %655 = vector.extract_strided_slice %650 {offsets = [2, 0, 0], sizes = [1, 16, 8], strides = [1, 1, 1]} : vector<4x16x8xf32> to vector<1x16x8xf32>
    %656 = vector.shape_cast %655 : vector<1x16x8xf32> to vector<16x8xf32>
    %657 = vector.extract_strided_slice %650 {offsets = [3, 0, 0], sizes = [1, 16, 8], strides = [1, 1, 1]} : vector<4x16x8xf32> to vector<1x16x8xf32>
    %658 = vector.shape_cast %657 : vector<1x16x8xf32> to vector<16x8xf32>
    %659 = tpu.concatenate %652, %654, %656, %658 in 1 : vector<16x8xf32>, vector<16x8xf32>, vector<16x8xf32>, vector<16x8xf32> -> vector<16x32xf32>
    %cst_189 = arith.constant dense<0.000000e+00> : vector<16x128xf32>
    %660 = tpu.matmul %659, %599, %cst_189 {dimension_numbers = #tpu.dot_dimension_numbers<[1], [0], [0], [1], [0, 0, 1, 1], [], []>} : vector<16x32xf32>, vector<32x128xf32>, vector<16x128xf32> -> vector<16x128xf32>
    %661 = vector.broadcast %603 : vector<1x128xf32> to vector<16x128xf32>
    %662 = arith.addf %660, %661 : vector<16x128xf32>
    %663 = vector.extract_strided_slice %662 {offsets = [0, 96], sizes = [16, 32], strides = [1, 1]} : vector<16x128xf32> to vector<16x32xf32>
    %664 = arith.addf %597, %663 : vector<16x32xf32>
    %c9 = arith.constant 9 : index
    %c0_190 = arith.constant 0 : index
    %c0_191 = arith.constant 0 : index
    %665 = vector.load %arg6[%c9, %c0_190, %c0_191] : memref<12x2x32xf32, #tpu.memory_space<vmem>>, vector<1x2x32xf32>
    %666 = vector.shape_cast %665 : vector<1x2x32xf32> to vector<2x32xf32>
    %667 = vector.extract_strided_slice %666 {offsets = [0, 0], sizes = [1, 32], strides = [1, 1]} : vector<2x32xf32> to vector<1x32xf32>
    %668 = vector.extract_strided_slice %666 {offsets = [1, 0], sizes = [1, 32], strides = [1, 1]} : vector<2x32xf32> to vector<1x32xf32>
    %cst_192 = arith.constant dense<0.000000e+00> : vector<16xf32>
    %669 = vector.multi_reduction <add>, %664, %cst_192 [1] : vector<16x32xf32> to vector<16xf32>
    %670 = vector.shape_cast %669 : vector<16xf32> to vector<16x1xf32>
    %cst_193 = arith.constant 3.200000e+01 : f32
    %671 = vector.broadcast %cst_193 : f32 to vector<16x1xf32>
    %672 = arith.divf %670, %671 : vector<16x1xf32>
    %673 = vector.broadcast %672 : vector<16x1xf32> to vector<16x32xf32>
    %674 = arith.subf %664, %673 : vector<16x32xf32>
    %675 = arith.mulf %674, %674 : vector<16x32xf32>
    %cst_194 = arith.constant dense<0.000000e+00> : vector<16xf32>
    %676 = vector.multi_reduction <add>, %675, %cst_194 [1] : vector<16x32xf32> to vector<16xf32>
    %677 = vector.shape_cast %676 : vector<16xf32> to vector<16x1xf32>
    %cst_195 = arith.constant 3.200000e+01 : f32
    %678 = vector.broadcast %cst_195 : f32 to vector<16x1xf32>
    %679 = arith.divf %677, %678 : vector<16x1xf32>
    %cst_196 = arith.constant 9.99999974E-6 : f32
    %680 = vector.broadcast %cst_196 : f32 to vector<16x1xf32>
    %681 = arith.addf %679, %680 : vector<16x1xf32>
    %682 = math.rsqrt %681 : vector<16x1xf32>
    %683 = vector.broadcast %682 : vector<16x1xf32> to vector<16x32xf32>
    %684 = arith.mulf %674, %683 : vector<16x32xf32>
    %685 = vector.broadcast %667 : vector<1x32xf32> to vector<16x32xf32>
    %686 = arith.mulf %684, %685 : vector<16x32xf32>
    %687 = vector.broadcast %668 : vector<1x32xf32> to vector<16x32xf32>
    %688 = arith.addf %686, %687 : vector<16x32xf32>
    %c3_197 = arith.constant 3 : index
    %c0_198 = arith.constant 0 : index
    %c0_199 = arith.constant 0 : index
    %689 = vector.load %arg7[%c3_197, %c0_198, %c0_199] : memref<4x32x64xf32, #tpu.memory_space<vmem>>, vector<1x32x64xf32>
    %690 = vector.shape_cast %689 : vector<1x32x64xf32> to vector<32x64xf32>
    %c3_200 = arith.constant 3 : index
    %c0_201 = arith.constant 0 : index
    %c0_202 = arith.constant 0 : index
    %691 = vector.load %arg8[%c3_200, %c0_201, %c0_202] : memref<4x64x32xf32, #tpu.memory_space<vmem>>, vector<1x64x32xf32>
    %692 = vector.shape_cast %691 : vector<1x64x32xf32> to vector<64x32xf32>
    %c3_203 = arith.constant 3 : index
    %c0_204 = arith.constant 0 : index
    %c0_205 = arith.constant 0 : index
    %693 = vector.load %arg9[%c3_203, %c0_204, %c0_205] : memref<4x2x64xf32, #tpu.memory_space<vmem>>, vector<1x2x64xf32>
    %694 = vector.shape_cast %693 : vector<1x2x64xf32> to vector<2x64xf32>
    %cst_206 = arith.constant dense<0.000000e+00> : vector<16x64xf32>
    %695 = tpu.matmul %688, %690, %cst_206 {dimension_numbers = #tpu.dot_dimension_numbers<[1], [0], [0], [1], [0, 0, 1, 1], [], []>} : vector<16x32xf32>, vector<32x64xf32>, vector<16x64xf32> -> vector<16x64xf32>
    %696 = vector.extract_strided_slice %694 {offsets = [0, 0], sizes = [1, 64], strides = [1, 1]} : vector<2x64xf32> to vector<1x64xf32>
    %697 = vector.broadcast %696 : vector<1x64xf32> to vector<16x64xf32>
    %698 = arith.addf %695, %697 : vector<16x64xf32>
    %cst_207 = arith.constant 0.000000e+00 : f32
    %699 = vector.broadcast %cst_207 : f32 to vector<16x64xf32>
    %700 = arith.maximumf %698, %699 : vector<16x64xf32>
    %cst_208 = arith.constant dense<0.000000e+00> : vector<16x32xf32>
    %701 = tpu.matmul %700, %692, %cst_208 {dimension_numbers = #tpu.dot_dimension_numbers<[1], [0], [0], [1], [0, 0, 1, 1], [], []>} : vector<16x64xf32>, vector<64x32xf32>, vector<16x32xf32> -> vector<16x32xf32>
    %702 = vector.extract_strided_slice %694 {offsets = [1, 0], sizes = [1, 32], strides = [1, 1]} : vector<2x64xf32> to vector<1x32xf32>
    %703 = vector.broadcast %702 : vector<1x32xf32> to vector<16x32xf32>
    %704 = arith.addf %701, %703 : vector<16x32xf32>
    %705 = arith.addf %688, %704 : vector<16x32xf32>
    %c10 = arith.constant 10 : index
    %c0_209 = arith.constant 0 : index
    %c0_210 = arith.constant 0 : index
    %706 = vector.load %arg6[%c10, %c0_209, %c0_210] : memref<12x2x32xf32, #tpu.memory_space<vmem>>, vector<1x2x32xf32>
    %707 = vector.shape_cast %706 : vector<1x2x32xf32> to vector<2x32xf32>
    %708 = vector.extract_strided_slice %707 {offsets = [0, 0], sizes = [1, 32], strides = [1, 1]} : vector<2x32xf32> to vector<1x32xf32>
    %709 = vector.extract_strided_slice %707 {offsets = [1, 0], sizes = [1, 32], strides = [1, 1]} : vector<2x32xf32> to vector<1x32xf32>
    %cst_211 = arith.constant dense<0.000000e+00> : vector<16xf32>
    %710 = vector.multi_reduction <add>, %705, %cst_211 [1] : vector<16x32xf32> to vector<16xf32>
    %711 = vector.shape_cast %710 : vector<16xf32> to vector<16x1xf32>
    %cst_212 = arith.constant 3.200000e+01 : f32
    %712 = vector.broadcast %cst_212 : f32 to vector<16x1xf32>
    %713 = arith.divf %711, %712 : vector<16x1xf32>
    %714 = vector.broadcast %713 : vector<16x1xf32> to vector<16x32xf32>
    %715 = arith.subf %705, %714 : vector<16x32xf32>
    %716 = arith.mulf %715, %715 : vector<16x32xf32>
    %cst_213 = arith.constant dense<0.000000e+00> : vector<16xf32>
    %717 = vector.multi_reduction <add>, %716, %cst_213 [1] : vector<16x32xf32> to vector<16xf32>
    %718 = vector.shape_cast %717 : vector<16xf32> to vector<16x1xf32>
    %cst_214 = arith.constant 3.200000e+01 : f32
    %719 = vector.broadcast %cst_214 : f32 to vector<16x1xf32>
    %720 = arith.divf %718, %719 : vector<16x1xf32>
    %cst_215 = arith.constant 9.99999974E-6 : f32
    %721 = vector.broadcast %cst_215 : f32 to vector<16x1xf32>
    %722 = arith.addf %720, %721 : vector<16x1xf32>
    %723 = math.rsqrt %722 : vector<16x1xf32>
    %724 = vector.broadcast %723 : vector<16x1xf32> to vector<16x32xf32>
    %725 = arith.mulf %715, %724 : vector<16x32xf32>
    %726 = vector.broadcast %708 : vector<1x32xf32> to vector<16x32xf32>
    %727 = arith.mulf %725, %726 : vector<16x32xf32>
    %728 = vector.broadcast %709 : vector<1x32xf32> to vector<16x32xf32>
    %729 = arith.addf %727, %728 : vector<16x32xf32>
    %c11 = arith.constant 11 : index
    %c0_216 = arith.constant 0 : index
    %c0_217 = arith.constant 0 : index
    %730 = vector.load %arg6[%c11, %c0_216, %c0_217] : memref<12x2x32xf32, #tpu.memory_space<vmem>>, vector<1x2x32xf32>
    %731 = vector.shape_cast %730 : vector<1x2x32xf32> to vector<2x32xf32>
    %732 = vector.extract_strided_slice %731 {offsets = [0, 0], sizes = [1, 32], strides = [1, 1]} : vector<2x32xf32> to vector<1x32xf32>
    %733 = vector.extract_strided_slice %731 {offsets = [1, 0], sizes = [1, 32], strides = [1, 1]} : vector<2x32xf32> to vector<1x32xf32>
    %cst_218 = arith.constant dense<0.000000e+00> : vector<16xf32>
    %734 = vector.multi_reduction <add>, %729, %cst_218 [1] : vector<16x32xf32> to vector<16xf32>
    %735 = vector.shape_cast %734 : vector<16xf32> to vector<16x1xf32>
    %cst_219 = arith.constant 3.200000e+01 : f32
    %736 = vector.broadcast %cst_219 : f32 to vector<16x1xf32>
    %737 = arith.divf %735, %736 : vector<16x1xf32>
    %738 = vector.broadcast %737 : vector<16x1xf32> to vector<16x32xf32>
    %739 = arith.subf %729, %738 : vector<16x32xf32>
    %740 = arith.mulf %739, %739 : vector<16x32xf32>
    %cst_220 = arith.constant dense<0.000000e+00> : vector<16xf32>
    %741 = vector.multi_reduction <add>, %740, %cst_220 [1] : vector<16x32xf32> to vector<16xf32>
    %742 = vector.shape_cast %741 : vector<16xf32> to vector<16x1xf32>
    %cst_221 = arith.constant 3.200000e+01 : f32
    %743 = vector.broadcast %cst_221 : f32 to vector<16x1xf32>
    %744 = arith.divf %742, %743 : vector<16x1xf32>
    %cst_222 = arith.constant 9.99999974E-6 : f32
    %745 = vector.broadcast %cst_222 : f32 to vector<16x1xf32>
    %746 = arith.addf %744, %745 : vector<16x1xf32>
    %747 = math.rsqrt %746 : vector<16x1xf32>
    %748 = vector.broadcast %747 : vector<16x1xf32> to vector<16x32xf32>
    %749 = arith.mulf %739, %748 : vector<16x32xf32>
    %750 = vector.broadcast %732 : vector<1x32xf32> to vector<16x32xf32>
    %751 = arith.mulf %749, %750 : vector<16x32xf32>
    %752 = vector.broadcast %733 : vector<1x32xf32> to vector<16x32xf32>
    %753 = arith.addf %751, %752 : vector<16x32xf32>
    %c0_223 = arith.constant 0 : index
    %c0_224 = arith.constant 0 : index
    %754 = vector.load %arg10[%c0_223, %c0_224] : memref<33x4xf32, #tpu.memory_space<vmem>>, vector<33x4xf32>
    %755 = vector.extract_strided_slice %753 {offsets = [8, 0], sizes = [8, 32], strides = [1, 1]} : vector<16x32xf32> to vector<8x32xf32>
    %756 = vector.extract_strided_slice %754 {offsets = [0, 0], sizes = [32, 4], strides = [1, 1]} : vector<33x4xf32> to vector<32x4xf32>
    %cst_225 = arith.constant dense<0.000000e+00> : vector<8x4xf32>
    %757 = tpu.matmul %755, %756, %cst_225 {dimension_numbers = #tpu.dot_dimension_numbers<[1], [0], [0], [1], [0, 0, 1, 1], [], []>} : vector<8x32xf32>, vector<32x4xf32>, vector<8x4xf32> -> vector<8x4xf32>
    %758 = vector.extract_strided_slice %754 {offsets = [32, 0], sizes = [1, 4], strides = [1, 1]} : vector<33x4xf32> to vector<1x4xf32>
    %759 = vector.broadcast %758 : vector<1x4xf32> to vector<8x4xf32>
    %760 = arith.addf %757, %759 : vector<8x4xf32>
    %c0_226 = arith.constant 0 : index
    %c0_227 = arith.constant 0 : index
    %761 = vector.load %arg11[%c0_226, %c0_227] : memref<8x4xf32, #tpu.memory_space<vmem>>, vector<8x4xf32>
    tpu.vector_store %arg11[%c0_226, %c0_227], %760 {strides = array<i32>} : memref<8x4xf32, #tpu.memory_space<vmem>>, vector<8x4xf32>,
    return
  }
  func.func @transform_0(%arg0: i32) -> (i32, i32) {
    %c0_i32 = arith.constant 0 : i32
    %c0_i32_0 = arith.constant 0 : i32
    return %arg0, %c0_i32 : i32, i32
  }
  func.func @transform_1(%arg0: i32) -> (i32, i32) {
    %c0_i32 = arith.constant 0 : i32
    %c0_i32_0 = arith.constant 0 : i32
    return %arg0, %c0_i32 : i32, i32
  }
  func.func @transform_2(%arg0: i32) -> (i32, i32, i32) {
    %c0_i32 = arith.constant 0 : i32
    %c0_i32_0 = arith.constant 0 : i32
    %c0_i32_1 = arith.constant 0 : i32
    %c0_i32_2 = arith.constant 0 : i32
    return %c0_i32, %c0_i32_0, %c0_i32_1 : i32, i32, i32
  }
  func.func @transform_3(%arg0: i32) -> (i32, i32, i32) {
    %c0_i32 = arith.constant 0 : i32
    %c0_i32_0 = arith.constant 0 : i32
    %c0_i32_1 = arith.constant 0 : i32
    %c0_i32_2 = arith.constant 0 : i32
    return %c0_i32, %c0_i32_0, %c0_i32_1 : i32, i32, i32
  }
  func.func @transform_4(%arg0: i32) -> (i32, i32, i32) {
    %c0_i32 = arith.constant 0 : i32
    %c0_i32_0 = arith.constant 0 : i32
    %c0_i32_1 = arith.constant 0 : i32
    %c0_i32_2 = arith.constant 0 : i32
    return %c0_i32, %c0_i32_0, %c0_i32_1 : i32, i32, i32
  }
  func.func @transform_5(%arg0: i32) -> (i32, i32, i32) {
    %c0_i32 = arith.constant 0 : i32
    %c0_i32_0 = arith.constant 0 : i32
    %c0_i32_1 = arith.constant 0 : i32
    %c0_i32_2 = arith.constant 0 : i32
    return %c0_i32, %c0_i32_0, %c0_i32_1 : i32, i32, i32
  }
  func.func @transform_6(%arg0: i32) -> (i32, i32, i32) {
    %c0_i32 = arith.constant 0 : i32
    %c0_i32_0 = arith.constant 0 : i32
    %c0_i32_1 = arith.constant 0 : i32
    %c0_i32_2 = arith.constant 0 : i32
    return %c0_i32, %c0_i32_0, %c0_i32_1 : i32, i32, i32
  }
  func.func @transform_7(%arg0: i32) -> (i32, i32, i32) {
    %c0_i32 = arith.constant 0 : i32
    %c0_i32_0 = arith.constant 0 : i32
    %c0_i32_1 = arith.constant 0 : i32
    %c0_i32_2 = arith.constant 0 : i32
    return %c0_i32, %c0_i32_0, %c0_i32_1 : i32, i32, i32
  }
  func.func @transform_8(%arg0: i32) -> (i32, i32, i32) {
    %c0_i32 = arith.constant 0 : i32
    %c0_i32_0 = arith.constant 0 : i32
    %c0_i32_1 = arith.constant 0 : i32
    %c0_i32_2 = arith.constant 0 : i32
    return %c0_i32, %c0_i32_0, %c0_i32_1 : i32, i32, i32
  }
  func.func @transform_9(%arg0: i32) -> (i32, i32) {
    %c0_i32 = arith.constant 0 : i32
    %c0_i32_0 = arith.constant 0 : i32
    %c0_i32_1 = arith.constant 0 : i32
    return %c0_i32, %c0_i32_0 : i32, i32
  }
  func.func @transform_10(%arg0: i32) -> (i32, i32) {
    %c0_i32 = arith.constant 0 : i32
    %c0_i32_0 = arith.constant 0 : i32
    return %arg0, %c0_i32 : i32, i32
  }
}

</mosaic_0001>

<llo_original>
// kernel: forward.1
$region0: #{forward.1}
  #allocation0 [shape = 'u32[]', space=smem, size = 0x4, offset = 0x4, fixed_abs, tag = 'smem constant byte address 0x4 - core index']
  #allocation1 [shape = 'u32[72,128]{1,0:T(1,128)}', space=vmem, size = 0x9000, scoped, tag = 'internal scratch']
  %s0 = inlined_call_operand.vmem [shape: f32[32,10], index: 0, kind: input, shape index: {}]
  %s1 = inlined_call_operand.vmem [shape: f32[32,10], index: 1, kind: input, shape index: {}]
  %s2 = inlined_call_operand.vmem [shape: f32[2,10,32], index: 2, kind: input, shape index: {}]
  %s3 = inlined_call_operand.vmem [shape: f32[6,32,128], index: 3, kind: input, shape index: {}]
  %s4 = inlined_call_operand.vmem [shape: f32[6,2,128], index: 4, kind: input, shape index: {}]
  %s5 = inlined_call_operand.vmem [shape: f32[12,2,32], index: 5, kind: input, shape index: {}]
  %s6 = inlined_call_operand.vmem [shape: f32[4,32,64], index: 6, kind: input, shape index: {}]
  %s7 = inlined_call_operand.vmem [shape: f32[4,64,32], index: 7, kind: input, shape index: {}]
  %s8 = inlined_call_operand.vmem [shape: f32[4,2,64], index: 8, kind: input, shape index: {}]
  %s9 = inlined_call_operand.vmem [shape: f32[33,4], index: 9, kind: input, shape index: {}]
  %s10 = inlined_call_operand.vmem [shape: f32[16,4], index: 10, kind: output, shape index: {}]
  %s11 = sld [smem:[#allocation0]]
  $region73: #{forward.1} parent=0
    _
  %s13 = ssub.s32 1, %s11
  %s14 = scalar_select 0, %s13, %s11
  loop: start=0, step=1, limit=4
  $region2: #{forward.1} parent=0 // loop_pre_header
    _
  $region3: #{forward.1} parent=0 // loop_header
    %s16 = sphi 0, %s20
    %p17 = scmp.ge.s32.totalorder %s16, 4
    %s26 = sphi 0, %s28
    %s29 = sphi 0, %s26
    %s30 = sphi 0, %s29
    %s46 = sphi 0, %s30
    %s52 = sphi 0, %s54
    %s55 = sphi 0, %s52
    %s56 = sphi 0, %s55
    %s72 = sphi 0, %s56
    %s76 = sphi 0, %s76
    %s78 = sphi 0, %s76
    %s79 = sphi 0, %s78
    %s93 = sphi 0, %s79
    %s97 = sphi 0, %s97
    %s99 = sphi 0, %s97
    %s100 = sphi 0, %s99
    %s114 = sphi 0, %s100
    %s118 = sphi 0, %s118
    %s120 = sphi 0, %s118
    %s121 = sphi 0, %s120
    %s135 = sphi 0, %s121
    %s139 = sphi 0, %s139
    %s141 = sphi 0, %s139
    %s142 = sphi 0, %s141
    %s156 = sphi 0, %s142
    %s160 = sphi 0, %s160
    %s162 = sphi 0, %s160
    %s163 = sphi 0, %s162
    %s177 = sphi 0, %s163
    %s181 = sphi 0, %s181
    %s183 = sphi 0, %s181
    %s184 = sphi 0, %s183
    %s198 = sphi 0, %s184
    %s202 = sphi 0, %s202
    %s204 = sphi 0, %s202
    %s205 = sphi 0, %s204
    %s219 = sphi 0, %s205
    %s223 = sphi 0, %s223
    %s225 = sphi 0, %s223
    %s226 = sphi 0, %s225
    %s240 = sphi 0, %s226
    %s246 = sphi 0, %s248
    %s249 = sphi 0, %s246
    %s250 = sphi 0, %s249
    %s266 = sphi 0, %s250
  $region4: #{forward.1} parent=0 // loop_header_branch
    %19 = sbr.rel (%p17) target = $region8
  $region5: #{forward.1} parent=0 // loop_body
    %s21 = ssub.s32 %s16, 1
    %s22 = ssub.s32 %s16, 2
    %s23 = sadd.s32 %s16, 1
    %s24 = ssub.s32 %s16, %s23
    %p25 = scmp.eq.s32.totalorder %s24, 0
    %s27 = sadd.s32 %s26, 1
    %s28 = scalar_select %p25, %s26, %s27
    %p31 = pneg %p25
    %p32 = scmp.eq.s32.totalorder %s16, 1
    %p33 = por %p31, %p32
    %p34 = scmp.ne.s32.totalorder %s26, %s29
    %p35 = scmp.eq.s32.totalorder %s16, 0
    %p36 = por %p34, %p35
    %p37 = scmp.ne.s32.totalorder %s26, %s29
    %p38 = scmp.eq.s32.totalorder %s21, 1
    %p39 = por %p37, %p38
    %p40 = scmp.ne.s32.totalorder %s29, %s30
    %p41 = scmp.eq.s32.totalorder %s21, 0
    %p42 = por %p40, %p41
    %p43 = scmp.ne.s32.totalorder %s29, %s30
    %p44 = scmp.eq.s32.totalorder %s22, 1
    %p45 = por %p43, %p44
    %p47 = scmp.ne.s32.totalorder %s30, %s46
    %p48 = scmp.eq.s32.totalorder %s22, 0
    %p49 = por %p47, %p48
    %s50 = ssub.s32 %s16, %s23
    %p51 = scmp.eq.s32.totalorder %s50, 0
    %s53 = sadd.s32 %s52, 1
    %s54 = scalar_select %p51, %s52, %s53
    %p57 = pneg %p51
    %p58 = scmp.eq.s32.totalorder %s16, 1
    %p59 = por %p57, %p58
    %p60 = scmp.ne.s32.totalorder %s52, %s55
    %p61 = scmp.eq.s32.totalorder %s16, 0
    %p62 = por %p60, %p61
    %p63 = scmp.ne.s32.totalorder %s52, %s55
    %p64 = scmp.eq.s32.totalorder %s21, 1
    %p65 = por %p63, %p64
    %p66 = scmp.ne.s32.totalorder %s55, %s56
    %p67 = scmp.eq.s32.totalorder %s21, 0
    %p68 = por %p66, %p67
    %p69 = scmp.ne.s32.totalorder %s55, %s56
    %p70 = scmp.eq.s32.totalorder %s22, 1
    %p71 = por %p69, %p70
    %p73 = scmp.ne.s32.totalorder %s56, %s72
    %p74 = scmp.eq.s32.totalorder %s22, 0
    %p75 = por %p73, %p74
    %s77 = sadd.s32 %s76, 1
    %p80 = scmp.eq.s32.totalorder %s16, 1
    %p81 = scmp.ne.s32.totalorder %s76, %s78
    %p82 = scmp.eq.s32.totalorder %s16, 0
    %p83 = por %p81, %p82
    %p84 = scmp.ne.s32.totalorder %s76, %s78
    %p85 = scmp.eq.s32.totalorder %s21, 1
    %p86 = por %p84, %p85
    %p87 = scmp.ne.s32.totalorder %s78, %s79
    %p88 = scmp.eq.s32.totalorder %s21, 0
    %p89 = por %p87, %p88
    %p90 = scmp.ne.s32.totalorder %s78, %s79
    %p91 = scmp.eq.s32.totalorder %s22, 1
    %p92 = por %p90, %p91
    %p94 = scmp.ne.s32.totalorder %s79, %s93
    %p95 = scmp.eq.s32.totalorder %s22, 0
    %p96 = por %p94, %p95
    %s98 = sadd.s32 %s97, 1
    %p101 = scmp.eq.s32.totalorder %s16, 1
    %p102 = scmp.ne.s32.totalorder %s97, %s99
    %p103 = scmp.eq.s32.totalorder %s16, 0
    %p104 = por %p102, %p103
    %p105 = scmp.ne.s32.totalorder %s97, %s99
    %p106 = scmp.eq.s32.totalorder %s21, 1
    %p107 = por %p105, %p106
    %p108 = scmp.ne.s32.totalorder %s99, %s100
    %p109 = scmp.eq.s32.totalorder %s21, 0
    %p110 = por %p108, %p109
    %p111 = scmp.ne.s32.totalorder %s99, %s100
    %p112 = scmp.eq.s32.totalorder %s22, 1
    %p113 = por %p111, %p112
    %p115 = scmp.ne.s32.totalorder %s100, %s114
    %p116 = scmp.eq.s32.totalorder %s22, 0
    %p117 = por %p115, %p116
    %s119 = sadd.s32 %s118, 1
    %p122 = scmp.eq.s32.totalorder %s16, 1
    %p123 = scmp.ne.s32.totalorder %s118, %s120
    %p124 = scmp.eq.s32.totalorder %s16, 0
    %p125 = por %p123, %p124
    %p126 = scmp.ne.s32.totalorder %s118, %s120
    %p127 = scmp.eq.s32.totalorder %s21, 1
    %p128 = por %p126, %p127
    %p129 = scmp.ne.s32.totalorder %s120, %s121
    %p130 = scmp.eq.s32.totalorder %s21, 0
    %p131 = por %p129, %p130
    %p132 = scmp.ne.s32.totalorder %s120, %s121
    %p133 = scmp.eq.s32.totalorder %s22, 1
    %p134 = por %p132, %p133
    %p136 = scmp.ne.s32.totalorder %s121, %s135
    %p137 = scmp.eq.s32.totalorder %s22, 0
    %p138 = por %p136, %p137
    %s140 = sadd.s32 %s139, 1
    %p143 = scmp.eq.s32.totalorder %s16, 1
    %p144 = scmp.ne.s32.totalorder %s139, %s141
    %p145 = scmp.eq.s32.totalorder %s16, 0
    %p146 = por %p144, %p145
    %p147 = scmp.ne.s32.totalorder %s139, %s141
    %p148 = scmp.eq.s32.totalorder %s21, 1
    %p149 = por %p147, %p148
    %p150 = scmp.ne.s32.totalorder %s141, %s142
    %p151 = scmp.eq.s32.totalorder %s21, 0
    %p152 = por %p150, %p151
    %p153 = scmp.ne.s32.totalorder %s141, %s142
    %p154 = scmp.eq.s32.totalorder %s22, 1
    %p155 = por %p153, %p154
    %p157 = scmp.ne.s32.totalorder %s142, %s156
    %p158 = scmp.eq.s32.totalorder %s22, 0
    %p159 = por %p157, %p158
    %s161 = sadd.s32 %s160, 1
    %p164 = scmp.eq.s32.totalorder %s16, 1
    %p165 = scmp.ne.s32.totalorder %s160, %s162
    %p166 = scmp.eq.s32.totalorder %s16, 0
    %p167 = por %p165, %p166
    %p168 = scmp.ne.s32.totalorder %s160, %s162
    %p169 = scmp.eq.s32.totalorder %s21, 1
    %p170 = por %p168, %p169
    %p171 = scmp.ne.s32.totalorder %s162, %s163
    %p172 = scmp.eq.s32.totalorder %s21, 0
    %p173 = por %p171, %p172
    %p174 = scmp.ne.s32.totalorder %s162, %s163
    %p175 = scmp.eq.s32.totalorder %s22, 1
    %p176 = por %p174, %p175
    %p178 = scmp.ne.s32.totalorder %s163, %s177
    %p179 = scmp.eq.s32.totalorder %s22, 0
    %p180 = por %p178, %p179
    %s182 = sadd.s32 %s181, 1
    %p185 = scmp.eq.s32.totalorder %s16, 1
    %p186 = scmp.ne.s32.totalorder %s181, %s183
    %p187 = scmp.eq.s32.totalorder %s16, 0
    %p188 = por %p186, %p187
    %p189 = scmp.ne.s32.totalorder %s181, %s183
    %p190 = scmp.eq.s32.totalorder %s21, 1
    %p191 = por %p189, %p190
    %p192 = scmp.ne.s32.totalorder %s183, %s184
    %p193 = scmp.eq.s32.totalorder %s21, 0
    %p194 = por %p192, %p193
    %p195 = scmp.ne.s32.totalorder %s183, %s184
    %p196 = scmp.eq.s32.totalorder %s22, 1
    %p197 = por %p195, %p196
    %p199 = scmp.ne.s32.totalorder %s184, %s198
    %p200 = scmp.eq.s32.totalorder %s22, 0
    %p201 = por %p199, %p200
    %s203 = sadd.s32 %s202, 1
    %p206 = scmp.eq.s32.totalorder %s16, 1
    %p207 = scmp.ne.s32.totalorder %s202, %s204
    %p208 = scmp.eq.s32.totalorder %s16, 0
    %p209 = por %p207, %p208
    %p210 = scmp.ne.s32.totalorder %s202, %s204
    %p211 = scmp.eq.s32.totalorder %s21, 1
    %p212 = por %p210, %p211
    %p213 = scmp.ne.s32.totalorder %s204, %s205
    %p214 = scmp.eq.s32.totalorder %s21, 0
    %p215 = por %p213, %p214
    %p216 = scmp.ne.s32.totalorder %s204, %s205
    %p217 = scmp.eq.s32.totalorder %s22, 1
    %p218 = por %p216, %p217
    %p220 = scmp.ne.s32.totalorder %s205, %s219
    %p221 = scmp.eq.s32.totalorder %s22, 0
    %p222 = por %p220, %p221
    %s224 = sadd.s32 %s223, 1
    %p227 = scmp.eq.s32.totalorder %s16, 1
    %p228 = scmp.ne.s32.totalorder %s223, %s225
    %p229 = scmp.eq.s32.totalorder %s16, 0
    %p230 = por %p228, %p229
    %p231 = scmp.ne.s32.totalorder %s223, %s225
    %p232 = scmp.eq.s32.totalorder %s21, 1
    %p233 = por %p231, %p232
    %p234 = scmp.ne.s32.totalorder %s225, %s226
    %p235 = scmp.eq.s32.totalorder %s21, 0
    %p236 = por %p234, %p235
    %p237 = scmp.ne.s32.totalorder %s225, %s226
    %p238 = scmp.eq.s32.totalorder %s22, 1
    %p239 = por %p237, %p238
    %p241 = scmp.ne.s32.totalorder %s226, %s240
    %p242 = scmp.eq.s32.totalorder %s22, 0
    %p243 = por %p241, %p242
    %s244 = ssub.s32 %s16, %s23
    %p245 = scmp.eq.s32.totalorder %s244, 0
    %s247 = sadd.s32 %s246, 1
    %s248 = scalar_select %p245, %s246, %s247
    %p251 = pneg %p245
    %p252 = scmp.eq.s32.totalorder %s16, 1
    %p253 = por %p251, %p252
    %p254 = scmp.ne.s32.totalorder %s246, %s249
    %p255 = scmp.eq.s32.totalorder %s16, 0
    %p256 = por %p254, %p255
    %p257 = scmp.ne.s32.totalorder %s246, %s249
    %p258 = scmp.eq.s32.totalorder %s21, 1
    %p259 = por %p257, %p258
    %p260 = scmp.ne.s32.totalorder %s249, %s250
    %p261 = scmp.eq.s32.totalorder %s21, 0
    %p262 = por %p260, %p261
    %p263 = scmp.ne.s32.totalorder %s249, %s250
    %p264 = scmp.eq.s32.totalorder %s22, 1
    %p265 = por %p263, %p264
    %p267 = scmp.ne.s32.totalorder %s250, %s266
    %p268 = scmp.eq.s32.totalorder %s22, 0
    %p269 = por %p267, %p268
    %p270 = scmp.le.s32.totalorder 1, %s16
    %p271 = scmp.lt.s32.totalorder %s16, 3
    %p272 = pnand %p270, %p271
    %p273 = pneg %p272
    // Predicated region
    $region9: #{forward.1} parent=5 // pred_check
      _
    $region10: #{forward.1} parent=5 // pred_check_branch
      %275 = sbr.rel (%p272) target = $region12
    $region11: #{forward.1} parent=5 // pred_region
      %s276 = ssub.s32 %s16, 1
      // Predicated region
      $region13: #{forward.1} parent=11 // pred_check
        %p277 = pneg %p89
      $region14: #{forward.1} parent=11 // pred_check_branch
        %279 = sbr.rel (%p277) target = $region16
      $region15: #{forward.1} parent=11 // pred_region
        _
      $region16: #{forward.1} parent=11 // pred_fallthru
        _
      // Predicated region
      $region17: #{forward.1} parent=11 // pred_check
        %p280 = pneg %p110
      $region18: #{forward.1} parent=11 // pred_check_branch
        %282 = sbr.rel (%p280) target = $region20
      $region19: #{forward.1} parent=11 // pred_region
        _
      $region20: #{forward.1} parent=11 // pred_fallthru
        _
      // Predicated region
      $region21: #{forward.1} parent=11 // pred_check
        %p283 = pneg %p131
      $region22: #{forward.1} parent=11 // pred_check_branch
        %285 = sbr.rel (%p283) target = $region24
      $region23: #{forward.1} parent=11 // pred_region
        _
      $region24: #{forward.1} parent=11 // pred_fallthru
        _
      // Predicated region
      $region25: #{forward.1} parent=11 // pred_check
        %p286 = pneg %p152
      $region26: #{forward.1} parent=11 // pred_check_branch
        %288 = sbr.rel (%p286) target = $region28
      $region27: #{forward.1} parent=11 // pred_region
        _
      $region28: #{forward.1} parent=11 // pred_fallthru
        _
      // Predicated region
      $region29: #{forward.1} parent=11 // pred_check
        %p289 = pneg %p173
      $region30: #{forward.1} parent=11 // pred_check_branch
        %291 = sbr.rel (%p289) target = $region32
      $region31: #{forward.1} parent=11 // pred_region
        _
      $region32: #{forward.1} parent=11 // pred_fallthru
        _
      // Predicated region
      $region33: #{forward.1} parent=11 // pred_check
        %p292 = pneg %p194
      $region34: #{forward.1} parent=11 // pred_check_branch
        %294 = sbr.rel (%p292) target = $region36
      $region35: #{forward.1} parent=11 // pred_region
        _
      $region36: #{forward.1} parent=11 // pred_fallthru
        _
      // Predicated region
      $region37: #{forward.1} parent=11 // pred_check
        %p295 = pneg %p215
      $region38: #{forward.1} parent=11 // pred_check_branch
        %297 = sbr.rel (%p295) target = $region40
      $region39: #{forward.1} parent=11 // pred_region
        _
      $region40: #{forward.1} parent=11 // pred_fallthru
        _
      // Predicated region
      $region41: #{forward.1} parent=11 // pred_check
        %p298 = pneg %p236
      $region42: #{forward.1} parent=11 // pred_check_branch
        %300 = sbr.rel (%p298) target = $region44
      $region43: #{forward.1} parent=11 // pred_region
        _
      $region44: #{forward.1} parent=11 // pred_fallthru
        _
    $region12: #{forward.1} parent=5 // pred_fallthru
      _
    %p301 = scmp.lt.s32.totalorder %s16, 2
    // Predicated region
    $region45: #{forward.1} parent=5 // pred_check
      %p302 = pneg %p301
    $region46: #{forward.1} parent=5 // pred_check_branch
      %304 = sbr.rel (%p302) target = $region48
    $region47: #{forward.1} parent=5 // pred_region
      // Predicated region
      $region49: #{forward.1} parent=47 // pred_check
        %p305 = pneg %p36
      $region50: #{forward.1} parent=47 // pred_check_branch
        %307 = sbr.rel (%p305) target = $region52
      $region51: #{forward.1} parent=47 // pred_region
        %s308 = smul.u32 2, %s16
        %p309 = scmp.lt.s32.totalorder %s308, 3
        %s310 = scalar_select %p309, %s308, 3
        %s311 = smul.addr %s310, 8
        %s312 = scalar_lea.vmem %s0, %s311
        %s313 = smul.u32 2, %s16
      $region52: #{forward.1} parent=47 // pred_fallthru
        _
      // Predicated region
      $region53: #{forward.1} parent=47 // pred_check
        %p314 = pneg %p62
      $region54: #{forward.1} parent=47 // pred_check_branch
        %316 = sbr.rel (%p314) target = $region56
      $region55: #{forward.1} parent=47 // pred_region
        %s317 = smul.u32 2, %s16
        %p318 = scmp.lt.s32.totalorder %s317, 3
        %s319 = scalar_select %p318, %s317, 3
        %s320 = smul.addr %s319, 8
        %s321 = scalar_lea.vmem %s1, %s320
        %s322 = smul.u32 2, %s16
      $region56: #{forward.1} parent=47 // pred_fallthru
        _
    $region48: #{forward.1} parent=5 // pred_fallthru
      _
    %p323 = scmp.le.s32.totalorder 1, %s16
    %p324 = scmp.lt.s32.totalorder %s16, 3
    %p325 = pnand %p323, %p324
    %p326 = pneg %p325
    // Predicated region
    $region57: #{forward.1} parent=5 // pred_check
      _
    $region58: #{forward.1} parent=5 // pred_check_branch
      %328 = sbr.rel (%p325) target = $region60
    $region59: #{forward.1} parent=5 // pred_region
      %s329 = ssub.s32 %s16, 1
      %s330 = smul.u32 2, %s21
      %p331 = scmp.lt.s32.totalorder %s330, 3
      %s332 = scalar_select %p331, %s330, 3
      %s333 = smul.addr %s332, 8
      %s334 = scalar_lea.vmem %s0, %s333
      %p335 = pneg %p42
      %p336 = pneg %p39
      %s337 = smul.u32 2, %s21
      %p338 = scmp.lt.s32.totalorder %s337, 3
      %s339 = scalar_select %p338, %s337, 3
      %s340 = smul.addr %s339, 8
      %s341 = scalar_lea.vmem %s1, %s340
      %p342 = pneg %p68
      %p343 = pneg %p65
      %p344 = pneg %p89
      %p345 = pneg %p86
      %p346 = pneg %p110
      %p347 = pneg %p107
      %p348 = pneg %p131
      %p349 = pneg %p128
      %p350 = pneg %p152
      %p351 = pneg %p149
      %p352 = pneg %p173
      %p353 = pneg %p170
      %p354 = pneg %p194
      %p355 = pneg %p191
      %p356 = pneg %p215
      %p357 = pneg %p212
      %p358 = pneg %p236
      %p359 = pneg %p233
      %p360 = pneg %p262
      %p361 = pneg %p259
      %p362 = scmp.lt.s32.totalorder %s21, 1
      %s363 = scalar_select %p362, %s21, 1
      %s364 = smul.addr %s363, 8
      %s365 = scalar_lea.vmem %s10, %s364
      %s366 = smul.u32 2, %s21
      %p367 = scmp.lt.s32.totalorder %s366, 3
      %s368 = scalar_select %p367, %s366, 3
      %s369 = smul.addr %s368, 8
      %s370 = scalar_lea.vmem %s0, %s369
      %s371 = smul.u32 2, %s21
      %s372 = smul.u32 2, %s21
      %p373 = scmp.lt.s32.totalorder %s372, 3
      %s374 = scalar_select %p373, %s372, 3
      %s375 = smul.addr %s374, 8
      %s376 = scalar_lea.vmem %s1, %s375
      %s377 = smul.u32 2, %s21
      %p378 = scmp.lt.s32.totalorder %s21, 1
      %s379 = scalar_select %p378, %s21, 1
      %s380 = smul.addr %s379, 8
      %s381 = scalar_lea.vmem %s10, %s380
      %v382 = vld [vmem:[%s370] sm:$0xff]
      %v383 = vld [vmem:[%s370 + $0x8] sm:$0xff]
      %v384 = vld [vmem:[%s2] sm:$0xff]
      %v385 = vld [vmem:[%s2 + $0x8] sm:$0x3]
      %vm386 = vcmask 80896
      %v388 = vsel %vm386, %v382, 0
      %v391 = vsel %vm386, %v383, 0
      %vm393 = vcmask 1041408
      %v395 = vsel %vm393, %v385, 0
      %397 = vmatpush.msra.mxu0 0.0
      %398 = vmatpush.msra.mxu0 0.0
      %399 = vmatpush.msra.mxu0 0.0
      %400 = vmatpush.msra.mxu0 0.0
      %401 = vmatpush.msra.mxu0 0.0
      %402 = vmatpush.msra.mxu0 0.0
      %403 = vmatpush.msra.mxu0 0.0
      %404 = vmatpush.msra.mxu0 0.0
      %405 = vmatpush.msra.mxu0 0.0
      %406 = vmatpush.msra.mxu0 0.0
      %407 = vmatpush.msra.mxu0 0.0
      %408 = vmatpush.msra.mxu0 0.0
      %409 = vmatpush.msra.mxu0 0.0
      %410 = vmatpush.msra.mxu0 0.0
      %411 = vmatpush.msra.mxu0 %v395
      %412 = vmatpush.msra.mxu0 %v384
      %413 = vmatmul.f32.gmra.mxu0 %v388
      %v414 = vpop.f32.mrf.mxu0
      %v415 = vadd.f32 0.0, %v414
      %416 = vmatmul.f32.gmra.mxu0 %v391
      %v417 = vpop.f32.mrf.mxu0
      %v418 = vadd.f32 0.0, %v417
      %419 = vdwg.mxu0
      %v420 = vld [vmem:[%s376] sm:$0xff]
      %v421 = vld [vmem:[%s376 + $0x8] sm:$0xff]
      %s422 = scalar_lea.vmem %s2, 16
      %v423 = vld [vmem:[%s422] sm:$0xff]
      %v424 = vld [vmem:[%s422 + $0x8] sm:$0x3]
      %v426 = vsel %vm386, %v420, 0
      %v429 = vsel %vm386, %v421, 0
      %v432 = vsel %vm393, %v424, 0
      %434 = vmatpush.msra.mxu0 0.0
      %435 = vmatpush.msra.mxu0 0.0
      %436 = vmatpush.msra.mxu0 0.0
      %437 = vmatpush.msra.mxu0 0.0
      %438 = vmatpush.msra.mxu0 0.0
      %439 = vmatpush.msra.mxu0 0.0
      %440 = vmatpush.msra.mxu0 0.0
      %441 = vmatpush.msra.mxu0 0.0
      %442 = vmatpush.msra.mxu0 0.0
      %443 = vmatpush.msra.mxu0 0.0
      %444 = vmatpush.msra.mxu0 0.0
      %445 = vmatpush.msra.mxu0 0.0
      %446 = vmatpush.msra.mxu0 0.0
      %447 = vmatpush.msra.mxu0 0.0
      %448 = vmatpush.msra.mxu0 %v432
      %449 = vmatpush.msra.mxu0 %v423
      %450 = vmatmul.f32.gmra.mxu0 %v426
      %v451 = vpop.f32.mrf.mxu0
      %v452 = vadd.f32 0.0, %v451
      %453 = vmatmul.f32.gmra.mxu0 %v429
      %v454 = vpop.f32.mrf.mxu0
      %v455 = vadd.f32 0.0, %v454
      %456 = vdwg.mxu0
      %v457 = vld [vmem:[%s3] sm:$0xff]
      %v458 = vld [vmem:[%s3 + $0x8] sm:$0xff]
      %v459 = vld [vmem:[%s3 + $0x10] sm:$0xff]
      %v460 = vld [vmem:[%s3 + $0x18] sm:$0xff]
      %v461 = vld [vmem:[%s4] sm:$0x3]
      %v462 = vperm.slane %v461, 0
      %vm463 = vcmask 261120
      %v465 = vsel %vm463, %v415, 0
      %v468 = vsel %vm463, %v418, 0
      %470 = vmatpush.msra.mxu0 0.0
      %471 = vmatpush.msra.mxu0 0.0
      %472 = vmatpush.msra.mxu0 0.0
      %473 = vmatpush.msra.mxu0 0.0
      %474 = vmatpush.msra.mxu0 0.0
      %475 = vmatpush.msra.mxu0 0.0
      %476 = vmatpush.msra.mxu0 0.0
      %477 = vmatpush.msra.mxu0 0.0
      %478 = vmatpush.msra.mxu0 0.0
      %479 = vmatpush.msra.mxu0 0.0
      %480 = vmatpush.msra.mxu0 0.0
      %481 = vmatpush.msra.mxu0 0.0
      %482 = vmatpush.msra.mxu0 %v460
      %483 = vmatpush.msra.mxu0 %v459
      %484 = vmatpush.msra.mxu0 %v458
      %485 = vmatpush.msra.mxu0 %v457
      %486 = vmatmul.f32.gmra.mxu0 %v465
      %v487 = vpop.f32.mrf.mxu0
      %v488 = vadd.f32 %v462, %v487
      %489 = vmatmul.f32.gmra.mxu0 %v468
      %v490 = vpop.f32.mrf.mxu0
      %v491 = vadd.f32 %v462, %v490
      %492 = vdwg.mxu0
      %495 = vrot.lane.b32.xlu0 %v488, 120
      %v496 = vpop.permute.xlu0 %495
      %497 = vrot.lane.b32.xlu0 %v491, 120
      %v498 = vpop.permute.xlu0 %497
      %499 = vrot.lane.b32.xlu0 %v488, 112
      %v500 = vpop.permute.xlu0 %499
      %501 = vrot.lane.b32.xlu0 %v491, 112
      %v502 = vpop.permute.xlu0 %501
      %503 = vrot.lane.b32.xlu0 %v488, 104
      %v504 = vpop.permute.xlu0 %503
      %505 = vrot.lane.b32.xlu0 %v491, 104
      %v506 = vpop.permute.xlu0 %505
      %507 = vrot.lane.b32.xlu0 %v488, 96
      %v508 = vpop.permute.xlu0 %507
      %509 = vrot.lane.b32.xlu0 %v491, 96
      %v510 = vpop.permute.xlu0 %509
      %vm511 = vcmask 64512
      %v512 = vsel %vm511, %v488, 0
      %v514 = vsel %vm511, %v491, 0
      %v516 = vsel %vm511, %v508, 0
      %v518 = vsel %vm511, %v510, 0
      %520 = vmatpush.xpose.msra.mxu0 0.0
      %521 = vmatpush.xpose.msra.mxu0 0.0
      %522 = vmatpush.xpose.msra.mxu0 0.0
      %523 = vmatpush.xpose.msra.mxu0 0.0
      %524 = vmatpush.xpose.msra.mxu0 0.0
      %525 = vmatpush.xpose.msra.mxu0 0.0
      %526 = vmatpush.xpose.msra.mxu0 0.0
      %527 = vmatpush.xpose.msra.mxu0 0.0
      %528 = vmatpush.xpose.msra.mxu0 0.0
      %529 = vmatpush.xpose.msra.mxu0 0.0
      %530 = vmatpush.xpose.msra.mxu0 0.0
      %531 = vmatpush.xpose.msra.mxu0 0.0
      %532 = vmatpush.xpose.msra.mxu0 0.0
      %533 = vmatpush.xpose.msra.mxu0 0.0
      %534 = vmatpush.xpose.msra.mxu0 %v518
      %535 = vmatpush.xpose.msra.mxu0 %v516
      %536 = vmatmul.f32.gmra.mxu0 %v512
      %v537 = vpop.f32.mrf.mxu0
      %v538 = vadd.f32 0.0, %v537
      %539 = vmatmul.f32.gmra.mxu0 %v514
      %v540 = vpop.f32.mrf.mxu0
      %v541 = vadd.f32 0.0, %v540
      %542 = vdwg.mxu0
      %543 = vrot.lane.b32.xlu0 %v496, 96
      %v544 = vpop.permute.xlu0 %543
      %545 = vrot.lane.b32.xlu0 %v498, 96
      %v546 = vpop.permute.xlu0 %545
      %v547 = vsel %vm511, %v496, 0
      %v549 = vsel %vm511, %v498, 0
      %v551 = vsel %vm511, %v544, 0
      %v553 = vsel %vm511, %v546, 0
      %555 = vmatpush.xpose.msra.mxu0 0.0
      %556 = vmatpush.xpose.msra.mxu0 0.0
      %557 = vmatpush.xpose.msra.mxu0 0.0
      %558 = vmatpush.xpose.msra.mxu0 0.0
      %559 = vmatpush.xpose.msra.mxu0 0.0
      %560 = vmatpush.xpose.msra.mxu0 0.0
      %561 = vmatpush.xpose.msra.mxu0 0.0
      %562 = vmatpush.xpose.msra.mxu0 0.0
      %563 = vmatpush.xpose.msra.mxu0 0.0
      %564 = vmatpush.xpose.msra.mxu0 0.0
      %565 = vmatpush.xpose.msra.mxu0 0.0
      %566 = vmatpush.xpose.msra.mxu0 0.0
      %567 = vmatpush.xpose.msra.mxu0 0.0
      %568 = vmatpush.xpose.msra.mxu0 0.0
      %569 = vmatpush.xpose.msra.mxu0 %v553
      %570 = vmatpush.xpose.msra.mxu0 %v551
      %571 = vmatmul.f32.gmra.mxu0 %v547
      %v572 = vpop.f32.mrf.mxu0
      %v573 = vadd.f32 0.0, %v572
      %574 = vmatmul.f32.gmra.mxu0 %v549
      %v575 = vpop.f32.mrf.mxu0
      %v576 = vadd.f32 0.0, %v575
      %577 = vdwg.mxu0
      %578 = vrot.lane.b32.xlu0 %v500, 96
      %v579 = vpop.permute.xlu0 %578
      %580 = vrot.lane.b32.xlu0 %v502, 96
      %v581 = vpop.permute.xlu0 %580
      %v582 = vsel %vm511, %v500, 0
      %v584 = vsel %vm511, %v502, 0
      %v586 = vsel %vm511, %v579, 0
      %v588 = vsel %vm511, %v581, 0
      %590 = vmatpush.xpose.msra.mxu0 0.0
      %591 = vmatpush.xpose.msra.mxu0 0.0
      %592 = vmatpush.xpose.msra.mxu0 0.0
      %593 = vmatpush.xpose.msra.mxu0 0.0
      %594 = vmatpush.xpose.msra.mxu0 0.0
      %595 = vmatpush.xpose.msra.mxu0 0.0
      %596 = vmatpush.xpose.msra.mxu0 0.0
      %597 = vmatpush.xpose.msra.mxu0 0.0
      %598 = vmatpush.xpose.msra.mxu0 0.0
      %599 = vmatpush.xpose.msra.mxu0 0.0
      %600 = vmatpush.xpose.msra.mxu0 0.0
      %601 = vmatpush.xpose.msra.mxu0 0.0
      %602 = vmatpush.xpose.msra.mxu0 0.0
      %603 = vmatpush.xpose.msra.mxu0 0.0
      %604 = vmatpush.xpose.msra.mxu0 %v588
      %605 = vmatpush.xpose.msra.mxu0 %v586
      %606 = vmatmul.f32.gmra.mxu0 %v582
      %v607 = vpop.f32.mrf.mxu0
      %v608 = vadd.f32 0.0, %v607
      %609 = vmatmul.f32.gmra.mxu0 %v584
      %v610 = vpop.f32.mrf.mxu0
      %v611 = vadd.f32 0.0, %v610
      %612 = vdwg.mxu0
      %613 = vrot.lane.b32.xlu0 %v504, 96
      %v614 = vpop.permute.xlu0 %613
      %615 = vrot.lane.b32.xlu0 %v506, 96
      %v616 = vpop.permute.xlu0 %615
      %v617 = vsel %vm511, %v504, 0
      %v619 = vsel %vm511, %v506, 0
      %v621 = vsel %vm511, %v614, 0
      %v623 = vsel %vm511, %v616, 0
      %625 = vmatpush.xpose.msra.mxu0 0.0
      %626 = vmatpush.xpose.msra.mxu0 0.0
      %627 = vmatpush.xpose.msra.mxu0 0.0
      %628 = vmatpush.xpose.msra.mxu0 0.0
      %629 = vmatpush.xpose.msra.mxu0 0.0
      %630 = vmatpush.xpose.msra.mxu0 0.0
      %631 = vmatpush.xpose.msra.mxu0 0.0
      %632 = vmatpush.xpose.msra.mxu0 0.0
      %633 = vmatpush.xpose.msra.mxu0 0.0
      %634 = vmatpush.xpose.msra.mxu0 0.0
      %635 = vmatpush.xpose.msra.mxu0 0.0
      %636 = vmatpush.xpose.msra.mxu0 0.0
      %637 = vmatpush.xpose.msra.mxu0 0.0
      %638 = vmatpush.xpose.msra.mxu0 0.0
      %639 = vmatpush.xpose.msra.mxu0 %v623
      %640 = vmatpush.xpose.msra.mxu0 %v621
      %641 = vmatmul.f32.gmra.mxu0 %v617
      %v642 = vpop.f32.mrf.mxu0
      %v643 = vadd.f32 0.0, %v642
      %644 = vmatmul.f32.gmra.mxu0 %v619
      %v645 = vpop.f32.mrf.mxu0
      %v646 = vadd.f32 0.0, %v645
      %647 = vdwg.mxu0
      %v648 = vmul.f32 %v538, 0.35355338
      %v649 = vmul.f32 %v541, 0.35355338
      %v650 = vmul.f32 %v573, 0.35355338
      %v651 = vmul.f32 %v576, 0.35355338
      %v652 = vmul.f32 %v608, 0.35355338
      %v653 = vmul.f32 %v611, 0.35355338
      %v654 = vmul.f32 %v643, 0.35355338
      %v655 = vmul.f32 %v646, 0.35355338
      %vm656 = vcmask 130048
      %v657 = vsel %vm656, %v648, -inf
      %658 = vmax.xlane.f32.xlu0 %v657
      %v659 = vpop.xlane.xlu0 %658
      %v660 = vsel %vm656, %v649, -inf
      %661 = vmax.xlane.f32.xlu0 %v660
      %v662 = vpop.xlane.xlu0 %661
      %v663 = vsel %vm656, %v650, -inf
      %664 = vmax.xlane.f32.xlu0 %v663
      %v665 = vpop.xlane.xlu0 %664
      %v666 = vsel %vm656, %v651, -inf
      %667 = vmax.xlane.f32.xlu0 %v666
      %v668 = vpop.xlane.xlu0 %667
      %v669 = vsel %vm656, %v652, -inf
      %670 = vmax.xlane.f32.xlu0 %v669
      %v671 = vpop.xlane.xlu0 %670
      %v672 = vsel %vm656, %v653, -inf
      %673 = vmax.xlane.f32.xlu0 %v672
      %v674 = vpop.xlane.xlu0 %673
      %v675 = vsel %vm656, %v654, -inf
      %676 = vmax.xlane.f32.xlu0 %v675
      %v677 = vpop.xlane.xlu0 %676
      %v678 = vsel %vm656, %v655, -inf
      %679 = vmax.xlane.f32.xlu0 %v678
      %v680 = vpop.xlane.xlu0 %679
      %v681 = vsub.f32 %v648, %v659
      %v682 = vsub.f32 %v649, %v662
      %v683 = vsub.f32 %v650, %v665
      %v684 = vsub.f32 %v651, %v668
      %v685 = vsub.f32 %v652, %v671
      %v686 = vsub.f32 %v653, %v674
      %v687 = vsub.f32 %v654, %v677
      %v688 = vsub.f32 %v655, %v680
      %v689 = vmul.f32 %v681, 1.442695
      %v690 = vpow.pop %v689
      %v691 = vmul.f32 %v682, 1.442695
      %v692 = vpow.pop %v691
      %v693 = vmul.f32 %v683, 1.442695
      %v694 = vpow.pop %v693
      %v695 = vmul.f32 %v684, 1.442695
      %v696 = vpow.pop %v695
      %v697 = vmul.f32 %v685, 1.442695
      %v698 = vpow.pop %v697
      %v699 = vmul.f32 %v686, 1.442695
      %v700 = vpow.pop %v699
      %v701 = vmul.f32 %v687, 1.442695
      %v702 = vpow.pop %v701
      %v703 = vmul.f32 %v688, 1.442695
      %v704 = vpow.pop %v703
      %v705 = vsel %vm656, %v690, 0.0
      %706 = vadd.xlane.f32.xlu0 %v705
      %v707 = vpop.xlane.xlu0 %706
      %v708 = vsel %vm656, %v692, 0.0
      %709 = vadd.xlane.f32.xlu0 %v708
      %v710 = vpop.xlane.xlu0 %709
      %v711 = vsel %vm656, %v694, 0.0
      %712 = vadd.xlane.f32.xlu0 %v711
      %v713 = vpop.xlane.xlu0 %712
      %v714 = vsel %vm656, %v696, 0.0
      %715 = vadd.xlane.f32.xlu0 %v714
      %v716 = vpop.xlane.xlu0 %715
      %v717 = vsel %vm656, %v698, 0.0
      %718 = vadd.xlane.f32.xlu0 %v717
      %v719 = vpop.xlane.xlu0 %718
      %v720 = vsel %vm656, %v700, 0.0
      %721 = vadd.xlane.f32.xlu0 %v720
      %v722 = vpop.xlane.xlu0 %721
      %v723 = vsel %vm656, %v702, 0.0
      %724 = vadd.xlane.f32.xlu0 %v723
      %v725 = vpop.xlane.xlu0 %724
      %v726 = vsel %vm656, %v704, 0.0
      %727 = vadd.xlane.f32.xlu0 %v726
      %v728 = vpop.xlane.xlu0 %727
      %v729 = vrcp.pop %v707
      %v730 = vrcp.pop %v710
      %v731 = vrcp.pop %v713
      %v732 = vrcp.pop %v716
      %v733 = vrcp.pop %v719
      %v734 = vrcp.pop %v722
      %v735 = vrcp.pop %v725
      %v736 = vrcp.pop %v728
      %v737 = vmul.f32 %v690, %v729
      %v738 = vmul.f32 %v692, %v730
      %v739 = vmul.f32 %v694, %v731
      %v740 = vmul.f32 %v696, %v732
      %v741 = vmul.f32 %v698, %v733
      %v742 = vmul.f32 %v700, %v734
      %v743 = vmul.f32 %v702, %v735
      %v744 = vmul.f32 %v704, %v736
      %745 = vrot.lane.b32.xlu0 %v488, 64
      %v746 = vpop.permute.xlu0 %745
      %747 = vrot.lane.b32.xlu0 %v491, 64
      %v748 = vpop.permute.xlu0 %747
      %v752 = vsel %vm656, %v737, 0
      %v755 = vsel %vm656, %v738, 0
      %757 = vmatpush.msra.mxu0 0.0
      %758 = vmatpush.msra.mxu0 0.0
      %759 = vmatpush.msra.mxu0 0.0
      %760 = vmatpush.msra.mxu0 0.0
      %761 = vmatpush.msra.mxu0 0.0
      %762 = vmatpush.msra.mxu0 0.0
      %763 = vmatpush.msra.mxu0 0.0
      %764 = vmatpush.msra.mxu0 0.0
      %765 = vmatpush.msra.mxu0 0.0
      %766 = vmatpush.msra.mxu0 0.0
      %767 = vmatpush.msra.mxu0 0.0
      %768 = vmatpush.msra.mxu0 0.0
      %769 = vmatpush.msra.mxu0 0.0
      %770 = vmatpush.msra.mxu0 0.0
      %771 = vmatpush.msra.mxu0 %v748
      %772 = vmatpush.msra.mxu0 %v746
      %773 = vmatmul.f32.gmra.mxu0 %v752
      %v774 = vpop.f32.mrf.mxu0
      %v775 = vadd.f32 0.0, %v774
      %776 = vmatmul.f32.gmra.mxu0 %v755
      %v777 = vpop.f32.mrf.mxu0
      %v778 = vadd.f32 0.0, %v777
      %779 = vdwg.mxu0
      %780 = vrot.lane.b32.xlu0 %v496, 64
      %v781 = vpop.permute.xlu0 %780
      %782 = vrot.lane.b32.xlu0 %v498, 64
      %v783 = vpop.permute.xlu0 %782
      %v787 = vsel %vm656, %v739, 0
      %v790 = vsel %vm656, %v740, 0
      %792 = vmatpush.msra.mxu0 0.0
      %793 = vmatpush.msra.mxu0 0.0
      %794 = vmatpush.msra.mxu0 0.0
      %795 = vmatpush.msra.mxu0 0.0
      %796 = vmatpush.msra.mxu0 0.0
      %797 = vmatpush.msra.mxu0 0.0
      %798 = vmatpush.msra.mxu0 0.0
      %799 = vmatpush.msra.mxu0 0.0
      %800 = vmatpush.msra.mxu0 0.0
      %801 = vmatpush.msra.mxu0 0.0
      %802 = vmatpush.msra.mxu0 0.0
      %803 = vmatpush.msra.mxu0 0.0
      %804 = vmatpush.msra.mxu0 0.0
      %805 = vmatpush.msra.mxu0 0.0
      %806 = vmatpush.msra.mxu0 %v783
      %807 = vmatpush.msra.mxu0 %v781
      %808 = vmatmul.f32.gmra.mxu0 %v787
      %v809 = vpop.f32.mrf.mxu0
      %v810 = vadd.f32 0.0, %v809
      %811 = vmatmul.f32.gmra.mxu0 %v790
      %v812 = vpop.f32.mrf.mxu0
      %v813 = vadd.f32 0.0, %v812
      %814 = vdwg.mxu0
      %815 = vrot.lane.b32.xlu0 %v500, 64
      %v816 = vpop.permute.xlu0 %815
      %817 = vrot.lane.b32.xlu0 %v502, 64
      %v818 = vpop.permute.xlu0 %817
      %v822 = vsel %vm656, %v741, 0
      %v825 = vsel %vm656, %v742, 0
      %827 = vmatpush.msra.mxu0 0.0
      %828 = vmatpush.msra.mxu0 0.0
      %829 = vmatpush.msra.mxu0 0.0
      %830 = vmatpush.msra.mxu0 0.0
      %831 = vmatpush.msra.mxu0 0.0
      %832 = vmatpush.msra.mxu0 0.0
      %833 = vmatpush.msra.mxu0 0.0
      %834 = vmatpush.msra.mxu0 0.0
      %835 = vmatpush.msra.mxu0 0.0
      %836 = vmatpush.msra.mxu0 0.0
      %837 = vmatpush.msra.mxu0 0.0
      %838 = vmatpush.msra.mxu0 0.0
      %839 = vmatpush.msra.mxu0 0.0
      %840 = vmatpush.msra.mxu0 0.0
      %841 = vmatpush.msra.mxu0 %v818
      %842 = vmatpush.msra.mxu0 %v816
      %843 = vmatmul.f32.gmra.mxu0 %v822
      %v844 = vpop.f32.mrf.mxu0
      %v845 = vadd.f32 0.0, %v844
      %846 = vmatmul.f32.gmra.mxu0 %v825
      %v847 = vpop.f32.mrf.mxu0
      %v848 = vadd.f32 0.0, %v847
      %849 = vdwg.mxu0
      %850 = vrot.lane.b32.xlu0 %v504, 64
      %v851 = vpop.permute.xlu0 %850
      %852 = vrot.lane.b32.xlu0 %v506, 64
      %v853 = vpop.permute.xlu0 %852
      %v857 = vsel %vm656, %v743, 0
      %v860 = vsel %vm656, %v744, 0
      %862 = vmatpush.msra.mxu0 0.0
      %863 = vmatpush.msra.mxu0 0.0
      %864 = vmatpush.msra.mxu0 0.0
      %865 = vmatpush.msra.mxu0 0.0
      %866 = vmatpush.msra.mxu0 0.0
      %867 = vmatpush.msra.mxu0 0.0
      %868 = vmatpush.msra.mxu0 0.0
      %869 = vmatpush.msra.mxu0 0.0
      %870 = vmatpush.msra.mxu0 0.0
      %871 = vmatpush.msra.mxu0 0.0
      %872 = vmatpush.msra.mxu0 0.0
      %873 = vmatpush.msra.mxu0 0.0
      %874 = vmatpush.msra.mxu0 0.0
      %875 = vmatpush.msra.mxu0 0.0
      %876 = vmatpush.msra.mxu0 %v853
      %877 = vmatpush.msra.mxu0 %v851
      %878 = vmatmul.f32.gmra.mxu0 %v857
      %v879 = vpop.f32.mrf.mxu0
      %v880 = vadd.f32 0.0, %v879
      %881 = vmatmul.f32.gmra.mxu0 %v860
      %v882 = vpop.f32.mrf.mxu0
      %v883 = vadd.f32 0.0, %v882
      %884 = vdwg.mxu0
      %887 = vrot.lane.b32.xlu0 %v810, 8
      %v888 = vpop.permute.xlu0 %887
      %889 = vrot.lane.b32.xlu0 %v813, 8
      %v890 = vpop.permute.xlu0 %889
      %895 = vrot.lane.b32.xlu0 %v845, 16
      %v896 = vpop.permute.xlu0 %895
      %897 = vrot.lane.b32.xlu0 %v848, 16
      %v898 = vpop.permute.xlu0 %897
      %903 = vrot.lane.b32.xlu0 %v880, 24
      %v904 = vpop.permute.xlu0 %903
      %905 = vrot.lane.b32.xlu0 %v883, 24
      %v906 = vpop.permute.xlu0 %905
      %v909 = vsel %vm511, %v775, %v888
      %v910 = vsel %vm511, %v778, %v890
      %v911 = vsel %vm656, %v909, %v896
      %v912 = vsel %vm656, %v910, %v898
      %vm913 = vcmask 195584
      %v914 = vsel %vm913, %v911, %v904
      %v915 = vsel %vm913, %v912, %v906
      %v916 = vperm.slane %v461, 1
      %v918 = vsel %vm463, %v914, 0
      %v921 = vsel %vm463, %v915, 0
      %923 = vmatpush.msra.mxu0 0.0
      %924 = vmatpush.msra.mxu0 0.0
      %925 = vmatpush.msra.mxu0 0.0
      %926 = vmatpush.msra.mxu0 0.0
      %927 = vmatpush.msra.mxu0 0.0
      %928 = vmatpush.msra.mxu0 0.0
      %929 = vmatpush.msra.mxu0 0.0
      %930 = vmatpush.msra.mxu0 0.0
      %931 = vmatpush.msra.mxu0 0.0
      %932 = vmatpush.msra.mxu0 0.0
      %933 = vmatpush.msra.mxu0 0.0
      %934 = vmatpush.msra.mxu0 0.0
      %935 = vmatpush.msra.mxu0 %v460
      %936 = vmatpush.msra.mxu0 %v459
      %937 = vmatpush.msra.mxu0 %v458
      %938 = vmatpush.msra.mxu0 %v457
      %939 = vmatmul.f32.gmra.mxu0 %v918
      %v940 = vpop.f32.mrf.mxu0
      %v941 = vadd.f32 %v916, %v940
      %942 = vmatmul.f32.gmra.mxu0 %v921
      %v943 = vpop.f32.mrf.mxu0
      %v944 = vadd.f32 %v916, %v943
      %945 = vdwg.mxu0
      %948 = vrot.lane.b32.xlu0 %v941, 32
      %v949 = vpop.permute.xlu0 %948
      %950 = vrot.lane.b32.xlu0 %v944, 32
      %v951 = vpop.permute.xlu0 %950
      %v954 = vadd.f32 %v415, %v949
      %v955 = vadd.f32 %v418, %v951
      %v956 = vld [vmem:[%s5] sm:$0x3]
      %v957 = vsel %vm463, %v954, 0.0
      %958 = vadd.xlane.f32.xlu0 %v957
      %v959 = vpop.xlane.xlu0 %958
      %v960 = vsel %vm463, %v955, 0.0
      %961 = vadd.xlane.f32.xlu0 %v960
      %v962 = vpop.xlane.xlu0 %961
      %v963 = vrcp.pop 32.0
      %v964 = vmul.f32 32.0, %v963
      %v965 = vsub.f32 1.0, %v964
      %v966 = vmul.f32 %v963, %v965
      %v967 = vadd.f32 %v963, %v966
      %vm968 = vweird.f32 %v963
      %v969 = vsel %vm968, %v963, %v967
      %v970 = vmul.f32 %v959, %v969
      %v971 = vmul.f32 %v962, %v969
      %v972 = vsub.f32 %v954, %v970
      %v973 = vsub.f32 %v955, %v971
      %v974 = vmul.f32 %v972, %v972
      %v975 = vmul.f32 %v973, %v973
      %v976 = vsel %vm463, %v974, 0.0
      %977 = vadd.xlane.f32.xlu0 %v976
      %v978 = vpop.xlane.xlu0 %977
      %v979 = vsel %vm463, %v975, 0.0
      %980 = vadd.xlane.f32.xlu0 %v979
      %v981 = vpop.xlane.xlu0 %980
      %v982 = vmul.f32 %v978, %v969
      %v983 = vmul.f32 %v981, %v969
      %v984 = vadd.f32 %v982, 1e-05
      %v985 = vadd.f32 %v983, 1e-05
      %v986 = vrsqrt.pop %v984
      %v987 = vmul.f32 %v986, %v984
      %v988 = vmul.f32 %v987, %v986
      %v989 = vmul.f32 0.5, %v988
      %v990 = vsub.f32 1.5, %v989
      %v991 = vmul.f32 %v986, %v990
      %vm992 = vweird.f32 %v984
      %vm993 = vweird.f32 %v986
      %vm994 = vmor %vm992, %vm993
      %v995 = vsel %vm994, %v986, %v991
      %v996 = vrsqrt.pop %v985
      %v997 = vmul.f32 %v996, %v985
      %v998 = vmul.f32 %v997, %v996
      %v999 = vmul.f32 0.5, %v998
      %v1000 = vsub.f32 1.5, %v999
      %v1001 = vmul.f32 %v996, %v1000
      %vm1002 = vweird.f32 %v985
      %vm1003 = vweird.f32 %v996
      %vm1004 = vmor %vm1002, %vm1003
      %v1005 = vsel %vm1004, %v996, %v1001
      %v1006 = vmul.f32 %v972, %v995
      %v1007 = vmul.f32 %v973, %v1005
      %v1008 = vperm.slane %v956, 0
      %v1009 = vmul.f32 %v1006, %v1008
      %v1010 = vmul.f32 %v1007, %v1008
      %v1011 = vperm.slane %v956, 1
      %v1012 = vadd.f32 %v1009, %v1011
      %v1013 = vadd.f32 %v1010, %v1011
      %v1014 = vld [vmem:[%s6] sm:$0xff]
      %v1015 = vld [vmem:[%s6 + $0x8] sm:$0xff]
      %v1016 = vld [vmem:[%s6 + $0x10] sm:$0xff]
      %v1017 = vld [vmem:[%s6 + $0x18] sm:$0xff]
      %v1018 = vld [vmem:[%s7] sm:$0xff]
      %v1019 = vld [vmem:[%s7 + $0x8] sm:$0xff]
      %v1020 = vld [vmem:[%s7 + $0x10] sm:$0xff]
      %v1021 = vld [vmem:[%s7 + $0x18] sm:$0xff]
      %v1022 = vld [vmem:[%s7 + $0x20] sm:$0xff]
      %v1023 = vld [vmem:[%s7 + $0x28] sm:$0xff]
      %v1024 = vld [vmem:[%s7 + $0x30] sm:$0xff]
      %v1025 = vld [vmem:[%s7 + $0x38] sm:$0xff]
      %v1026 = vld [vmem:[%s8] sm:$0x3]
      %v1027 = vperm.slane %v1026, 0
      %v1029 = vsel %vm463, %v1012, 0
      %v1032 = vsel %vm463, %v1013, 0
      %1034 = vmatpush.msra.mxu0 0.0
      %1035 = vmatpush.msra.mxu0 0.0
      %1036 = vmatpush.msra.mxu0 0.0
      %1037 = vmatpush.msra.mxu0 0.0
      %1038 = vmatpush.msra.mxu0 0.0
      %1039 = vmatpush.msra.mxu0 0.0
      %1040 = vmatpush.msra.mxu0 0.0
      %1041 = vmatpush.msra.mxu0 0.0
      %1042 = vmatpush.msra.mxu0 0.0
      %1043 = vmatpush.msra.mxu0 0.0
      %1044 = vmatpush.msra.mxu0 0.0
      %1045 = vmatpush.msra.mxu0 0.0
      %1046 = vmatpush.msra.mxu0 %v1017
      %1047 = vmatpush.msra.mxu0 %v1016
      %1048 = vmatpush.msra.mxu0 %v1015
      %1049 = vmatpush.msra.mxu0 %v1014
      %1050 = vmatmul.f32.gmra.mxu0 %v1029
      %v1051 = vpop.f32.mrf.mxu0
      %v1052 = vadd.f32 %v1027, %v1051
      %1053 = vmatmul.f32.gmra.mxu0 %v1032
      %v1054 = vpop.f32.mrf.mxu0
      %v1055 = vadd.f32 %v1027, %v1054
      %1056 = vdwg.mxu0
      %v1057 = vmax.f32 %v1052, 0.0
      %v1058 = vmax.f32 %v1055, 0.0
      %v1059 = vperm.slane %v1026, 1
      %vm1060 = vcmask 523264
      %v1062 = vsel %vm1060, %v1057, 0
      %v1065 = vsel %vm1060, %v1058, 0
      %1067 = vmatpush.msra.mxu0 0.0
      %1068 = vmatpush.msra.mxu0 0.0
      %1069 = vmatpush.msra.mxu0 0.0
      %1070 = vmatpush.msra.mxu0 0.0
      %1071 = vmatpush.msra.mxu0 0.0
      %1072 = vmatpush.msra.mxu0 0.0
      %1073 = vmatpush.msra.mxu0 0.0
      %1074 = vmatpush.msra.mxu0 0.0
      %1075 = vmatpush.msra.mxu0 %v1025
      %1076 = vmatpush.msra.mxu0 %v1024
      %1077 = vmatpush.msra.mxu0 %v1023
      %1078 = vmatpush.msra.mxu0 %v1022
      %1079 = vmatpush.msra.mxu0 %v1021
      %1080 = vmatpush.msra.mxu0 %v1020
      %1081 = vmatpush.msra.mxu0 %v1019
      %1082 = vmatpush.msra.mxu0 %v1018
      %1083 = vmatmul.f32.gmra.mxu0 %v1062
      %v1084 = vpop.f32.mrf.mxu0
      %v1085 = vadd.f32 %v1059, %v1084
      %1086 = vmatmul.f32.gmra.mxu0 %v1065
      %v1087 = vpop.f32.mrf.mxu0
      %v1088 = vadd.f32 %v1059, %v1087
      %1089 = vdwg.mxu0
      %v1090 = vadd.f32 %v1012, %v1085
      %v1091 = vadd.f32 %v1013, %v1088
      %s1092 = scalar_lea.vmem %s5, 2
      %v1093 = vld [vmem:[%s1092] sm:$0x3]
      %v1094 = vsel %vm463, %v1090, 0.0
      %1095 = vadd.xlane.f32.xlu0 %v1094
      %v1096 = vpop.xlane.xlu0 %1095
      %v1097 = vsel %vm463, %v1091, 0.0
      %1098 = vadd.xlane.f32.xlu0 %v1097
      %v1099 = vpop.xlane.xlu0 %1098
      %v1100 = vmul.f32 %v1096, %v969
      %v1101 = vmul.f32 %v1099, %v969
      %v1102 = vsub.f32 %v1090, %v1100
      %v1103 = vsub.f32 %v1091, %v1101
      %v1104 = vmul.f32 %v1102, %v1102
      %v1105 = vmul.f32 %v1103, %v1103
      %v1106 = vsel %vm463, %v1104, 0.0
      %1107 = vadd.xlane.f32.xlu0 %v1106
      %v1108 = vpop.xlane.xlu0 %1107
      %v1109 = vsel %vm463, %v1105, 0.0
      %1110 = vadd.xlane.f32.xlu0 %v1109
      %v1111 = vpop.xlane.xlu0 %1110
      %v1112 = vmul.f32 %v1108, %v969
      %v1113 = vmul.f32 %v1111, %v969
      %v1114 = vadd.f32 %v1112, 1e-05
      %v1115 = vadd.f32 %v1113, 1e-05
      %v1116 = vrsqrt.pop %v1114
      %v1117 = vmul.f32 %v1116, %v1114
      %v1118 = vmul.f32 %v1117, %v1116
      %v1119 = vmul.f32 0.5, %v1118
      %v1120 = vsub.f32 1.5, %v1119
      %v1121 = vmul.f32 %v1116, %v1120
      %vm1122 = vweird.f32 %v1114
      %vm1123 = vweird.f32 %v1116
      %vm1124 = vmor %vm1122, %vm1123
      %v1125 = vsel %vm1124, %v1116, %v1121
      %v1126 = vrsqrt.pop %v1115
      %v1127 = vmul.f32 %v1126, %v1115
      %v1128 = vmul.f32 %v1127, %v1126
      %v1129 = vmul.f32 0.5, %v1128
      %v1130 = vsub.f32 1.5, %v1129
      %v1131 = vmul.f32 %v1126, %v1130
      %vm1132 = vweird.f32 %v1115
      %vm1133 = vweird.f32 %v1126
      %vm1134 = vmor %vm1132, %vm1133
      %v1135 = vsel %vm1134, %v1126, %v1131
      %v1136 = vmul.f32 %v1102, %v1125
      %v1137 = vmul.f32 %v1103, %v1135
      %v1138 = vperm.slane %v1093, 0
      %v1139 = vmul.f32 %v1136, %v1138
      %v1140 = vmul.f32 %v1137, %v1138
      %v1141 = vperm.slane %v1093, 1
      %v1142 = vadd.f32 %v1139, %v1141
      %v1143 = vadd.f32 %v1140, %v1141
      %s1144 = scalar_lea.vmem %s3, 32
      %v1145 = vld [vmem:[%s1144] sm:$0xff]
      %v1146 = vld [vmem:[%s1144 + $0x8] sm:$0xff]
      %v1147 = vld [vmem:[%s1144 + $0x10] sm:$0xff]
      %v1148 = vld [vmem:[%s1144 + $0x18] sm:$0xff]
      %s1149 = scalar_lea.vmem %s4, 2
      %v1150 = vld [vmem:[%s1149] sm:$0x3]
      %v1151 = vperm.slane %v1150, 0
      %v1153 = vsel %vm463, %v1142, 0
      %v1156 = vsel %vm463, %v1143, 0
      %1158 = vmatpush.msra.mxu0 0.0
      %1159 = vmatpush.msra.mxu0 0.0
      %1160 = vmatpush.msra.mxu0 0.0
      %1161 = vmatpush.msra.mxu0 0.0
      %1162 = vmatpush.msra.mxu0 0.0
      %1163 = vmatpush.msra.mxu0 0.0
      %1164 = vmatpush.msra.mxu0 0.0
      %1165 = vmatpush.msra.mxu0 0.0
      %1166 = vmatpush.msra.mxu0 0.0
      %1167 = vmatpush.msra.mxu0 0.0
      %1168 = vmatpush.msra.mxu0 0.0
      %1169 = vmatpush.msra.mxu0 0.0
      %1170 = vmatpush.msra.mxu0 %v1148
      %1171 = vmatpush.msra.mxu0 %v1147
      %1172 = vmatpush.msra.mxu0 %v1146
      %1173 = vmatpush.msra.mxu0 %v1145
      %1174 = vmatmul.f32.gmra.mxu0 %v1153
      %v1175 = vpop.f32.mrf.mxu0
      %v1176 = vadd.f32 %v1151, %v1175
      %1177 = vmatmul.f32.gmra.mxu0 %v1156
      %v1178 = vpop.f32.mrf.mxu0
      %v1179 = vadd.f32 %v1151, %v1178
      %1180 = vdwg.mxu0
      %1183 = vrot.lane.b32.xlu0 %v1176, 120
      %v1184 = vpop.permute.xlu0 %1183
      %1185 = vrot.lane.b32.xlu0 %v1179, 120
      %v1186 = vpop.permute.xlu0 %1185
      %1187 = vrot.lane.b32.xlu0 %v1176, 112
      %v1188 = vpop.permute.xlu0 %1187
      %1189 = vrot.lane.b32.xlu0 %v1179, 112
      %v1190 = vpop.permute.xlu0 %1189
      %1191 = vrot.lane.b32.xlu0 %v1176, 104
      %v1192 = vpop.permute.xlu0 %1191
      %1193 = vrot.lane.b32.xlu0 %v1179, 104
      %v1194 = vpop.permute.xlu0 %1193
      %1195 = vrot.lane.b32.xlu0 %v1176, 96
      %v1196 = vpop.permute.xlu0 %1195
      %1197 = vrot.lane.b32.xlu0 %v1179, 96
      %v1198 = vpop.permute.xlu0 %1197
      %v1199 = vsel %vm511, %v1176, 0
      %v1201 = vsel %vm511, %v1179, 0
      %v1203 = vsel %vm511, %v1196, 0
      %v1205 = vsel %vm511, %v1198, 0
      %1207 = vmatpush.xpose.msra.mxu0 0.0
      %1208 = vmatpush.xpose.msra.mxu0 0.0
      %1209 = vmatpush.xpose.msra.mxu0 0.0
      %1210 = vmatpush.xpose.msra.mxu0 0.0
      %1211 = vmatpush.xpose.msra.mxu0 0.0
      %1212 = vmatpush.xpose.msra.mxu0 0.0
      %1213 = vmatpush.xpose.msra.mxu0 0.0
      %1214 = vmatpush.xpose.msra.mxu0 0.0
      %1215 = vmatpush.xpose.msra.mxu0 0.0
      %1216 = vmatpush.xpose.msra.mxu0 0.0
      %1217 = vmatpush.xpose.msra.mxu0 0.0
      %1218 = vmatpush.xpose.msra.mxu0 0.0
      %1219 = vmatpush.xpose.msra.mxu0 0.0
      %1220 = vmatpush.xpose.msra.mxu0 0.0
      %1221 = vmatpush.xpose.msra.mxu0 %v1205
      %1222 = vmatpush.xpose.msra.mxu0 %v1203
      %1223 = vmatmul.f32.gmra.mxu0 %v1199
      %v1224 = vpop.f32.mrf.mxu0
      %v1225 = vadd.f32 0.0, %v1224
      %1226 = vmatmul.f32.gmra.mxu0 %v1201
      %v1227 = vpop.f32.mrf.mxu0
      %v1228 = vadd.f32 0.0, %v1227
      %1229 = vdwg.mxu0
      %1230 = vrot.lane.b32.xlu0 %v1184, 96
      %v1231 = vpop.permute.xlu0 %1230
      %1232 = vrot.lane.b32.xlu0 %v1186, 96
      %v1233 = vpop.permute.xlu0 %1232
      %v1234 = vsel %vm511, %v1184, 0
      %v1236 = vsel %vm511, %v1186, 0
      %v1238 = vsel %vm511, %v1231, 0
      %v1240 = vsel %vm511, %v1233, 0
      %1242 = vmatpush.xpose.msra.mxu0 0.0
      %1243 = vmatpush.xpose.msra.mxu0 0.0
      %1244 = vmatpush.xpose.msra.mxu0 0.0
      %1245 = vmatpush.xpose.msra.mxu0 0.0
      %1246 = vmatpush.xpose.msra.mxu0 0.0
      %1247 = vmatpush.xpose.msra.mxu0 0.0
      %1248 = vmatpush.xpose.msra.mxu0 0.0
      %1249 = vmatpush.xpose.msra.mxu0 0.0
      %1250 = vmatpush.xpose.msra.mxu0 0.0
      %1251 = vmatpush.xpose.msra.mxu0 0.0
      %1252 = vmatpush.xpose.msra.mxu0 0.0
      %1253 = vmatpush.xpose.msra.mxu0 0.0
      %1254 = vmatpush.xpose.msra.mxu0 0.0
      %1255 = vmatpush.xpose.msra.mxu0 0.0
      %1256 = vmatpush.xpose.msra.mxu0 %v1240
      %1257 = vmatpush.xpose.msra.mxu0 %v1238
      %1258 = vmatmul.f32.gmra.mxu0 %v1234
      %v1259 = vpop.f32.mrf.mxu0
      %v1260 = vadd.f32 0.0, %v1259
      %1261 = vmatmul.f32.gmra.mxu0 %v1236
      %v1262 = vpop.f32.mrf.mxu0
      %v1263 = vadd.f32 0.0, %v1262
      %1264 = vdwg.mxu0
      %1265 = vrot.lane.b32.xlu0 %v1188, 96
      %v1266 = vpop.permute.xlu0 %1265
      %1267 = vrot.lane.b32.xlu0 %v1190, 96
      %v1268 = vpop.permute.xlu0 %1267
      %v1269 = vsel %vm511, %v1188, 0
      %v1271 = vsel %vm511, %v1190, 0
      %v1273 = vsel %vm511, %v1266, 0
      %v1275 = vsel %vm511, %v1268, 0
      %1277 = vmatpush.xpose.msra.mxu0 0.0
      %1278 = vmatpush.xpose.msra.mxu0 0.0
      %1279 = vmatpush.xpose.msra.mxu0 0.0
      %1280 = vmatpush.xpose.msra.mxu0 0.0
      %1281 = vmatpush.xpose.msra.mxu0 0.0
      %1282 = vmatpush.xpose.msra.mxu0 0.0
      %1283 = vmatpush.xpose.msra.mxu0 0.0
      %1284 = vmatpush.xpose.msra.mxu0 0.0
      %1285 = vmatpush.xpose.msra.mxu0 0.0
      %1286 = vmatpush.xpose.msra.mxu0 0.0
      %1287 = vmatpush.xpose.msra.mxu0 0.0
      %1288 = vmatpush.xpose.msra.mxu0 0.0
      %1289 = vmatpush.xpose.msra.mxu0 0.0
      %1290 = vmatpush.xpose.msra.mxu0 0.0
      %1291 = vmatpush.xpose.msra.mxu0 %v1275
      %1292 = vmatpush.xpose.msra.mxu0 %v1273
      %1293 = vmatmul.f32.gmra.mxu0 %v1269
      %v1294 = vpop.f32.mrf.mxu0
      %v1295 = vadd.f32 0.0, %v1294
      %1296 = vmatmul.f32.gmra.mxu0 %v1271
      %v1297 = vpop.f32.mrf.mxu0
      %v1298 = vadd.f32 0.0, %v1297
      %1299 = vdwg.mxu0
      %1300 = vrot.lane.b32.xlu0 %v1192, 96
      %v1301 = vpop.permute.xlu0 %1300
      %1302 = vrot.lane.b32.xlu0 %v1194, 96
      %v1303 = vpop.permute.xlu0 %1302
      %v1304 = vsel %vm511, %v1192, 0
      %v1306 = vsel %vm511, %v1194, 0
      %v1308 = vsel %vm511, %v1301, 0
      %v1310 = vsel %vm511, %v1303, 0
      %1312 = vmatpush.xpose.msra.mxu0 0.0
      %1313 = vmatpush.xpose.msra.mxu0 0.0
      %1314 = vmatpush.xpose.msra.mxu0 0.0
      %1315 = vmatpush.xpose.msra.mxu0 0.0
      %1316 = vmatpush.xpose.msra.mxu0 0.0
      %1317 = vmatpush.xpose.msra.mxu0 0.0
      %1318 = vmatpush.xpose.msra.mxu0 0.0
      %1319 = vmatpush.xpose.msra.mxu0 0.0
      %1320 = vmatpush.xpose.msra.mxu0 0.0
      %1321 = vmatpush.xpose.msra.mxu0 0.0
      %1322 = vmatpush.xpose.msra.mxu0 0.0
      %1323 = vmatpush.xpose.msra.mxu0 0.0
      %1324 = vmatpush.xpose.msra.mxu0 0.0
      %1325 = vmatpush.xpose.msra.mxu0 0.0
      %1326 = vmatpush.xpose.msra.mxu0 %v1310
      %1327 = vmatpush.xpose.msra.mxu0 %v1308
      %1328 = vmatmul.f32.gmra.mxu0 %v1304
      %v1329 = vpop.f32.mrf.mxu0
      %v1330 = vadd.f32 0.0, %v1329
      %1331 = vmatmul.f32.gmra.mxu0 %v1306
      %v1332 = vpop.f32.mrf.mxu0
      %v1333 = vadd.f32 0.0, %v1332
      %1334 = vdwg.mxu0
      %v1335 = vmul.f32 %v1225, 0.35355338
      %v1336 = vmul.f32 %v1228, 0.35355338
      %v1337 = vmul.f32 %v1260, 0.35355338
      %v1338 = vmul.f32 %v1263, 0.35355338
      %v1339 = vmul.f32 %v1295, 0.35355338
      %v1340 = vmul.f32 %v1298, 0.35355338
      %v1341 = vmul.f32 %v1330, 0.35355338
      %v1342 = vmul.f32 %v1333, 0.35355338
      %v1343 = vsel %vm656, %v1335, -inf
      %1344 = vmax.xlane.f32.xlu0 %v1343
      %v1345 = vpop.xlane.xlu0 %1344
      %v1346 = vsel %vm656, %v1336, -inf
      %1347 = vmax.xlane.f32.xlu0 %v1346
      %v1348 = vpop.xlane.xlu0 %1347
      %v1349 = vsel %vm656, %v1337, -inf
      %1350 = vmax.xlane.f32.xlu0 %v1349
      %v1351 = vpop.xlane.xlu0 %1350
      %v1352 = vsel %vm656, %v1338, -inf
      %1353 = vmax.xlane.f32.xlu0 %v1352
      %v1354 = vpop.xlane.xlu0 %1353
      %v1355 = vsel %vm656, %v1339, -inf
      %1356 = vmax.xlane.f32.xlu0 %v1355
      %v1357 = vpop.xlane.xlu0 %1356
      %v1358 = vsel %vm656, %v1340, -inf
      %1359 = vmax.xlane.f32.xlu0 %v1358
      %v1360 = vpop.xlane.xlu0 %1359
      %v1361 = vsel %vm656, %v1341, -inf
      %1362 = vmax.xlane.f32.xlu0 %v1361
      %v1363 = vpop.xlane.xlu0 %1362
      %v1364 = vsel %vm656, %v1342, -inf
      %1365 = vmax.xlane.f32.xlu0 %v1364
      %v1366 = vpop.xlane.xlu0 %1365
      %v1367 = vsub.f32 %v1335, %v1345
      %v1368 = vsub.f32 %v1336, %v1348
      %v1369 = vsub.f32 %v1337, %v1351
      %v1370 = vsub.f32 %v1338, %v1354
      %v1371 = vsub.f32 %v1339, %v1357
      %v1372 = vsub.f32 %v1340, %v1360
      %v1373 = vsub.f32 %v1341, %v1363
      %v1374 = vsub.f32 %v1342, %v1366
      %v1375 = vmul.f32 %v1367, 1.442695
      %v1376 = vpow.pop %v1375
      %v1377 = vmul.f32 %v1368, 1.442695
      %v1378 = vpow.pop %v1377
      %v1379 = vmul.f32 %v1369, 1.442695
      %v1380 = vpow.pop %v1379
      %v1381 = vmul.f32 %v1370, 1.442695
      %v1382 = vpow.pop %v1381
      %v1383 = vmul.f32 %v1371, 1.442695
      %v1384 = vpow.pop %v1383
      %v1385 = vmul.f32 %v1372, 1.442695
      %v1386 = vpow.pop %v1385
      %v1387 = vmul.f32 %v1373, 1.442695
      %v1388 = vpow.pop %v1387
      %v1389 = vmul.f32 %v1374, 1.442695
      %v1390 = vpow.pop %v1389
      %v1391 = vsel %vm656, %v1376, 0.0
      %1392 = vadd.xlane.f32.xlu0 %v1391
      %v1393 = vpop.xlane.xlu0 %1392
      %v1394 = vsel %vm656, %v1378, 0.0
      %1395 = vadd.xlane.f32.xlu0 %v1394
      %v1396 = vpop.xlane.xlu0 %1395
      %v1397 = vsel %vm656, %v1380, 0.0
      %1398 = vadd.xlane.f32.xlu0 %v1397
      %v1399 = vpop.xlane.xlu0 %1398
      %v1400 = vsel %vm656, %v1382, 0.0
      %1401 = vadd.xlane.f32.xlu0 %v1400
      %v1402 = vpop.xlane.xlu0 %1401
      %v1403 = vsel %vm656, %v1384, 0.0
      %1404 = vadd.xlane.f32.xlu0 %v1403
      %v1405 = vpop.xlane.xlu0 %1404
      %v1406 = vsel %vm656, %v1386, 0.0
      %1407 = vadd.xlane.f32.xlu0 %v1406
      %v1408 = vpop.xlane.xlu0 %1407
      %v1409 = vsel %vm656, %v1388, 0.0
      %1410 = vadd.xlane.f32.xlu0 %v1409
      %v1411 = vpop.xlane.xlu0 %1410
      %v1412 = vsel %vm656, %v1390, 0.0
      %1413 = vadd.xlane.f32.xlu0 %v1412
      %v1414 = vpop.xlane.xlu0 %1413
      %v1415 = vrcp.pop %v1393
      %v1416 = vrcp.pop %v1396
      %v1417 = vrcp.pop %v1399
      %v1418 = vrcp.pop %v1402
      %v1419 = vrcp.pop %v1405
      %v1420 = vrcp.pop %v1408
      %v1421 = vrcp.pop %v1411
      %v1422 = vrcp.pop %v1414
      %v1423 = vmul.f32 %v1376, %v1415
      %v1424 = vmul.f32 %v1378, %v1416
      %v1425 = vmul.f32 %v1380, %v1417
      %v1426 = vmul.f32 %v1382, %v1418
      %v1427 = vmul.f32 %v1384, %v1419
      %v1428 = vmul.f32 %v1386, %v1420
      %v1429 = vmul.f32 %v1388, %v1421
      %v1430 = vmul.f32 %v1390, %v1422
      %1431 = vrot.lane.b32.xlu0 %v1176, 64
      %v1432 = vpop.permute.xlu0 %1431
      %1433 = vrot.lane.b32.xlu0 %v1179, 64
      %v1434 = vpop.permute.xlu0 %1433
      %v1438 = vsel %vm656, %v1423, 0
      %v1441 = vsel %vm656, %v1424, 0
      %1443 = vmatpush.msra.mxu0 0.0
      %1444 = vmatpush.msra.mxu0 0.0
      %1445 = vmatpush.msra.mxu0 0.0
      %1446 = vmatpush.msra.mxu0 0.0
      %1447 = vmatpush.msra.mxu0 0.0
      %1448 = vmatpush.msra.mxu0 0.0
      %1449 = vmatpush.msra.mxu0 0.0
      %1450 = vmatpush.msra.mxu0 0.0
      %1451 = vmatpush.msra.mxu0 0.0
      %1452 = vmatpush.msra.mxu0 0.0
      %1453 = vmatpush.msra.mxu0 0.0
      %1454 = vmatpush.msra.mxu0 0.0
      %1455 = vmatpush.msra.mxu0 0.0
      %1456 = vmatpush.msra.mxu0 0.0
      %1457 = vmatpush.msra.mxu0 %v1434
      %1458 = vmatpush.msra.mxu0 %v1432
      %1459 = vmatmul.f32.gmra.mxu0 %v1438
      %v1460 = vpop.f32.mrf.mxu0
      %v1461 = vadd.f32 0.0, %v1460
      %1462 = vmatmul.f32.gmra.mxu0 %v1441
      %v1463 = vpop.f32.mrf.mxu0
      %v1464 = vadd.f32 0.0, %v1463
      %1465 = vdwg.mxu0
      %1466 = vrot.lane.b32.xlu0 %v1184, 64
      %v1467 = vpop.permute.xlu0 %1466
      %1468 = vrot.lane.b32.xlu0 %v1186, 64
      %v1469 = vpop.permute.xlu0 %1468
      %v1473 = vsel %vm656, %v1425, 0
      %v1476 = vsel %vm656, %v1426, 0
      %1478 = vmatpush.msra.mxu0 0.0
      %1479 = vmatpush.msra.mxu0 0.0
      %1480 = vmatpush.msra.mxu0 0.0
      %1481 = vmatpush.msra.mxu0 0.0
      %1482 = vmatpush.msra.mxu0 0.0
      %1483 = vmatpush.msra.mxu0 0.0
      %1484 = vmatpush.msra.mxu0 0.0
      %1485 = vmatpush.msra.mxu0 0.0
      %1486 = vmatpush.msra.mxu0 0.0
      %1487 = vmatpush.msra.mxu0 0.0
      %1488 = vmatpush.msra.mxu0 0.0
      %1489 = vmatpush.msra.mxu0 0.0
      %1490 = vmatpush.msra.mxu0 0.0
      %1491 = vmatpush.msra.mxu0 0.0
      %1492 = vmatpush.msra.mxu0 %v1469
      %1493 = vmatpush.msra.mxu0 %v1467
      %1494 = vmatmul.f32.gmra.mxu0 %v1473
      %v1495 = vpop.f32.mrf.mxu0
      %v1496 = vadd.f32 0.0, %v1495
      %1497 = vmatmul.f32.gmra.mxu0 %v1476
      %v1498 = vpop.f32.mrf.mxu0
      %v1499 = vadd.f32 0.0, %v1498
      %1500 = vdwg.mxu0
      %1501 = vrot.lane.b32.xlu0 %v1188, 64
      %v1502 = vpop.permute.xlu0 %1501
      %1503 = vrot.lane.b32.xlu0 %v1190, 64
      %v1504 = vpop.permute.xlu0 %1503
      %v1508 = vsel %vm656, %v1427, 0
      %v1511 = vsel %vm656, %v1428, 0
      %1513 = vmatpush.msra.mxu0 0.0
      %1514 = vmatpush.msra.mxu0 0.0
      %1515 = vmatpush.msra.mxu0 0.0
      %1516 = vmatpush.msra.mxu0 0.0
      %1517 = vmatpush.msra.mxu0 0.0
      %1518 = vmatpush.msra.mxu0 0.0
      %1519 = vmatpush.msra.mxu0 0.0
      %1520 = vmatpush.msra.mxu0 0.0
      %1521 = vmatpush.msra.mxu0 0.0
      %1522 = vmatpush.msra.mxu0 0.0
      %1523 = vmatpush.msra.mxu0 0.0
      %1524 = vmatpush.msra.mxu0 0.0
      %1525 = vmatpush.msra.mxu0 0.0
      %1526 = vmatpush.msra.mxu0 0.0
      %1527 = vmatpush.msra.mxu0 %v1504
      %1528 = vmatpush.msra.mxu0 %v1502
      %1529 = vmatmul.f32.gmra.mxu0 %v1508
      %v1530 = vpop.f32.mrf.mxu0
      %v1531 = vadd.f32 0.0, %v1530
      %1532 = vmatmul.f32.gmra.mxu0 %v1511
      %v1533 = vpop.f32.mrf.mxu0
      %v1534 = vadd.f32 0.0, %v1533
      %1535 = vdwg.mxu0
      %1536 = vrot.lane.b32.xlu0 %v1192, 64
      %v1537 = vpop.permute.xlu0 %1536
      %1538 = vrot.lane.b32.xlu0 %v1194, 64
      %v1539 = vpop.permute.xlu0 %1538
      %v1543 = vsel %vm656, %v1429, 0
      %v1546 = vsel %vm656, %v1430, 0
      %1548 = vmatpush.msra.mxu0 0.0
      %1549 = vmatpush.msra.mxu0 0.0
      %1550 = vmatpush.msra.mxu0 0.0
      %1551 = vmatpush.msra.mxu0 0.0
      %1552 = vmatpush.msra.mxu0 0.0
      %1553 = vmatpush.msra.mxu0 0.0
      %1554 = vmatpush.msra.mxu0 0.0
      %1555 = vmatpush.msra.mxu0 0.0
      %1556 = vmatpush.msra.mxu0 0.0
      %1557 = vmatpush.msra.mxu0 0.0
      %1558 = vmatpush.msra.mxu0 0.0
      %1559 = vmatpush.msra.mxu0 0.0
      %1560 = vmatpush.msra.mxu0 0.0
      %1561 = vmatpush.msra.mxu0 0.0
      %1562 = vmatpush.msra.mxu0 %v1539
      %1563 = vmatpush.msra.mxu0 %v1537
      %1564 = vmatmul.f32.gmra.mxu0 %v1543
      %v1565 = vpop.f32.mrf.mxu0
      %v1566 = vadd.f32 0.0, %v1565
      %1567 = vmatmul.f32.gmra.mxu0 %v1546
      %v1568 = vpop.f32.mrf.mxu0
      %v1569 = vadd.f32 0.0, %v1568
      %1570 = vdwg.mxu0
      %1573 = vrot.lane.b32.xlu0 %v1496, 8
      %v1574 = vpop.permute.xlu0 %1573
      %1575 = vrot.lane.b32.xlu0 %v1499, 8
      %v1576 = vpop.permute.xlu0 %1575
      %1581 = vrot.lane.b32.xlu0 %v1531, 16
      %v1582 = vpop.permute.xlu0 %1581
      %1583 = vrot.lane.b32.xlu0 %v1534, 16
      %v1584 = vpop.permute.xlu0 %1583
      %1589 = vrot.lane.b32.xlu0 %v1566, 24
      %v1590 = vpop.permute.xlu0 %1589
      %1591 = vrot.lane.b32.xlu0 %v1569, 24
      %v1592 = vpop.permute.xlu0 %1591
      %v1595 = vsel %vm511, %v1461, %v1574
      %v1596 = vsel %vm511, %v1464, %v1576
      %v1597 = vsel %vm656, %v1595, %v1582
      %v1598 = vsel %vm656, %v1596, %v1584
      %v1599 = vsel %vm913, %v1597, %v1590
      %v1600 = vsel %vm913, %v1598, %v1592
      %v1601 = vperm.slane %v1150, 1
      %v1603 = vsel %vm463, %v1599, 0
      %v1606 = vsel %vm463, %v1600, 0
      %1608 = vmatpush.msra.mxu0 0.0
      %1609 = vmatpush.msra.mxu0 0.0
      %1610 = vmatpush.msra.mxu0 0.0
      %1611 = vmatpush.msra.mxu0 0.0
      %1612 = vmatpush.msra.mxu0 0.0
      %1613 = vmatpush.msra.mxu0 0.0
      %1614 = vmatpush.msra.mxu0 0.0
      %1615 = vmatpush.msra.mxu0 0.0
      %1616 = vmatpush.msra.mxu0 0.0
      %1617 = vmatpush.msra.mxu0 0.0
      %1618 = vmatpush.msra.mxu0 0.0
      %1619 = vmatpush.msra.mxu0 0.0
      %1620 = vmatpush.msra.mxu0 %v1148
      %1621 = vmatpush.msra.mxu0 %v1147
      %1622 = vmatpush.msra.mxu0 %v1146
      %1623 = vmatpush.msra.mxu0 %v1145
      %1624 = vmatmul.f32.gmra.mxu0 %v1603
      %v1625 = vpop.f32.mrf.mxu0
      %v1626 = vadd.f32 %v1601, %v1625
      %1627 = vmatmul.f32.gmra.mxu0 %v1606
      %v1628 = vpop.f32.mrf.mxu0
      %v1629 = vadd.f32 %v1601, %v1628
      %1630 = vdwg.mxu0
      %1633 = vrot.lane.b32.xlu0 %v1626, 32
      %v1634 = vpop.permute.xlu0 %1633
      %1635 = vrot.lane.b32.xlu0 %v1629, 32
      %v1636 = vpop.permute.xlu0 %1635
      %v1639 = vadd.f32 %v1142, %v1634
      %v1640 = vadd.f32 %v1143, %v1636
      %s1641 = scalar_lea.vmem %s5, 4
      %v1642 = vld [vmem:[%s1641] sm:$0x3]
      %v1643 = vsel %vm463, %v1639, 0.0
      %1644 = vadd.xlane.f32.xlu0 %v1643
      %v1645 = vpop.xlane.xlu0 %1644
      %v1646 = vsel %vm463, %v1640, 0.0
      %1647 = vadd.xlane.f32.xlu0 %v1646
      %v1648 = vpop.xlane.xlu0 %1647
      %v1649 = vmul.f32 %v1645, %v969
      %v1650 = vmul.f32 %v1648, %v969
      %v1651 = vsub.f32 %v1639, %v1649
      %v1652 = vsub.f32 %v1640, %v1650
      %v1653 = vmul.f32 %v1651, %v1651
      %v1654 = vmul.f32 %v1652, %v1652
      %v1655 = vsel %vm463, %v1653, 0.0
      %1656 = vadd.xlane.f32.xlu0 %v1655
      %v1657 = vpop.xlane.xlu0 %1656
      %v1658 = vsel %vm463, %v1654, 0.0
      %1659 = vadd.xlane.f32.xlu0 %v1658
      %v1660 = vpop.xlane.xlu0 %1659
      %v1661 = vmul.f32 %v1657, %v969
      %v1662 = vmul.f32 %v1660, %v969
      %v1663 = vadd.f32 %v1661, 1e-05
      %v1664 = vadd.f32 %v1662, 1e-05
      %v1665 = vrsqrt.pop %v1663
      %v1666 = vmul.f32 %v1665, %v1663
      %v1667 = vmul.f32 %v1666, %v1665
      %v1668 = vmul.f32 0.5, %v1667
      %v1669 = vsub.f32 1.5, %v1668
      %v1670 = vmul.f32 %v1665, %v1669
      %vm1671 = vweird.f32 %v1663
      %vm1672 = vweird.f32 %v1665
      %vm1673 = vmor %vm1671, %vm1672
      %v1674 = vsel %vm1673, %v1665, %v1670
      %v1675 = vrsqrt.pop %v1664
      %v1676 = vmul.f32 %v1675, %v1664
      %v1677 = vmul.f32 %v1676, %v1675
      %v1678 = vmul.f32 0.5, %v1677
      %v1679 = vsub.f32 1.5, %v1678
      %v1680 = vmul.f32 %v1675, %v1679
      %vm1681 = vweird.f32 %v1664
      %vm1682 = vweird.f32 %v1675
      %vm1683 = vmor %vm1681, %vm1682
      %v1684 = vsel %vm1683, %v1675, %v1680
      %v1685 = vmul.f32 %v1651, %v1674
      %v1686 = vmul.f32 %v1652, %v1684
      %v1687 = vperm.slane %v1642, 0
      %v1688 = vmul.f32 %v1685, %v1687
      %v1689 = vmul.f32 %v1686, %v1687
      %v1690 = vperm.slane %v1642, 1
      %v1691 = vadd.f32 %v1688, %v1690
      %v1692 = vadd.f32 %v1689, %v1690
      %s1693 = scalar_lea.vmem %s6, 32
      %v1694 = vld [vmem:[%s1693] sm:$0xff]
      %v1695 = vld [vmem:[%s1693 + $0x8] sm:$0xff]
      %v1696 = vld [vmem:[%s1693 + $0x10] sm:$0xff]
      %v1697 = vld [vmem:[%s1693 + $0x18] sm:$0xff]
      %s1698 = scalar_lea.vmem %s7, 64
      %v1699 = vld [vmem:[%s1698] sm:$0xff]
      %v1700 = vld [vmem:[%s1698 + $0x8] sm:$0xff]
      %v1701 = vld [vmem:[%s1698 + $0x10] sm:$0xff]
      %v1702 = vld [vmem:[%s1698 + $0x18] sm:$0xff]
      %v1703 = vld [vmem:[%s1698 + $0x20] sm:$0xff]
      %v1704 = vld [vmem:[%s1698 + $0x28] sm:$0xff]
      %v1705 = vld [vmem:[%s1698 + $0x30] sm:$0xff]
      %v1706 = vld [vmem:[%s1698 + $0x38] sm:$0xff]
      %s1707 = scalar_lea.vmem %s8, 2
      %v1708 = vld [vmem:[%s1707] sm:$0x3]
      %v1709 = vperm.slane %v1708, 0
      %v1711 = vsel %vm463, %v1691, 0
      %v1714 = vsel %vm463, %v1692, 0
      %1716 = vmatpush.msra.mxu0 0.0
      %1717 = vmatpush.msra.mxu0 0.0
      %1718 = vmatpush.msra.mxu0 0.0
      %1719 = vmatpush.msra.mxu0 0.0
      %1720 = vmatpush.msra.mxu0 0.0
      %1721 = vmatpush.msra.mxu0 0.0
      %1722 = vmatpush.msra.mxu0 0.0
      %1723 = vmatpush.msra.mxu0 0.0
      %1724 = vmatpush.msra.mxu0 0.0
      %1725 = vmatpush.msra.mxu0 0.0
      %1726 = vmatpush.msra.mxu0 0.0
      %1727 = vmatpush.msra.mxu0 0.0
      %1728 = vmatpush.msra.mxu0 %v1697
      %1729 = vmatpush.msra.mxu0 %v1696
      %1730 = vmatpush.msra.mxu0 %v1695
      %1731 = vmatpush.msra.mxu0 %v1694
      %1732 = vmatmul.f32.gmra.mxu0 %v1711
      %v1733 = vpop.f32.mrf.mxu0
      %v1734 = vadd.f32 %v1709, %v1733
      %1735 = vmatmul.f32.gmra.mxu0 %v1714
      %v1736 = vpop.f32.mrf.mxu0
      %v1737 = vadd.f32 %v1709, %v1736
      %1738 = vdwg.mxu0
      %v1739 = vmax.f32 %v1734, 0.0
      %v1740 = vmax.f32 %v1737, 0.0
      %v1741 = vperm.slane %v1708, 1
      %v1743 = vsel %vm1060, %v1739, 0
      %v1746 = vsel %vm1060, %v1740, 0
      %1748 = vmatpush.msra.mxu0 0.0
      %1749 = vmatpush.msra.mxu0 0.0
      %1750 = vmatpush.msra.mxu0 0.0
      %1751 = vmatpush.msra.mxu0 0.0
      %1752 = vmatpush.msra.mxu0 0.0
      %1753 = vmatpush.msra.mxu0 0.0
      %1754 = vmatpush.msra.mxu0 0.0
      %1755 = vmatpush.msra.mxu0 0.0
      %1756 = vmatpush.msra.mxu0 %v1706
      %1757 = vmatpush.msra.mxu0 %v1705
      %1758 = vmatpush.msra.mxu0 %v1704
      %1759 = vmatpush.msra.mxu0 %v1703
      %1760 = vmatpush.msra.mxu0 %v1702
      %1761 = vmatpush.msra.mxu0 %v1701
      %1762 = vmatpush.msra.mxu0 %v1700
      %1763 = vmatpush.msra.mxu0 %v1699
      %1764 = vmatmul.f32.gmra.mxu0 %v1743
      %v1765 = vpop.f32.mrf.mxu0
      %v1766 = vadd.f32 %v1741, %v1765
      %1767 = vmatmul.f32.gmra.mxu0 %v1746
      %v1768 = vpop.f32.mrf.mxu0
      %v1769 = vadd.f32 %v1741, %v1768
      %1770 = vdwg.mxu0
      %v1771 = vadd.f32 %v1691, %v1766
      %v1772 = vadd.f32 %v1692, %v1769
      %s1773 = scalar_lea.vmem %s5, 6
      %v1774 = vld [vmem:[%s1773] sm:$0x3]
      %v1775 = vsel %vm463, %v1771, 0.0
      %1776 = vadd.xlane.f32.xlu0 %v1775
      %v1777 = vpop.xlane.xlu0 %1776
      %v1778 = vsel %vm463, %v1772, 0.0
      %1779 = vadd.xlane.f32.xlu0 %v1778
      %v1780 = vpop.xlane.xlu0 %1779
      %v1781 = vmul.f32 %v1777, %v969
      %v1782 = vmul.f32 %v1780, %v969
      %v1783 = vsub.f32 %v1771, %v1781
      %v1784 = vsub.f32 %v1772, %v1782
      %v1785 = vmul.f32 %v1783, %v1783
      %v1786 = vmul.f32 %v1784, %v1784
      %v1787 = vsel %vm463, %v1785, 0.0
      %1788 = vadd.xlane.f32.xlu0 %v1787
      %v1789 = vpop.xlane.xlu0 %1788
      %v1790 = vsel %vm463, %v1786, 0.0
      %1791 = vadd.xlane.f32.xlu0 %v1790
      %v1792 = vpop.xlane.xlu0 %1791
      %v1793 = vmul.f32 %v1789, %v969
      %v1794 = vmul.f32 %v1792, %v969
      %v1795 = vadd.f32 %v1793, 1e-05
      %v1796 = vadd.f32 %v1794, 1e-05
      %v1797 = vrsqrt.pop %v1795
      %v1798 = vmul.f32 %v1797, %v1795
      %v1799 = vmul.f32 %v1798, %v1797
      %v1800 = vmul.f32 0.5, %v1799
      %v1801 = vsub.f32 1.5, %v1800
      %v1802 = vmul.f32 %v1797, %v1801
      %vm1803 = vweird.f32 %v1795
      %vm1804 = vweird.f32 %v1797
      %vm1805 = vmor %vm1803, %vm1804
      %v1806 = vsel %vm1805, %v1797, %v1802
      %v1807 = vrsqrt.pop %v1796
      %v1808 = vmul.f32 %v1807, %v1796
      %v1809 = vmul.f32 %v1808, %v1807
      %v1810 = vmul.f32 0.5, %v1809
      %v1811 = vsub.f32 1.5, %v1810
      %v1812 = vmul.f32 %v1807, %v1811
      %vm1813 = vweird.f32 %v1796
      %vm1814 = vweird.f32 %v1807
      %vm1815 = vmor %vm1813, %vm1814
      %v1816 = vsel %vm1815, %v1807, %v1812
      %v1817 = vmul.f32 %v1783, %v1806
      %v1818 = vmul.f32 %v1784, %v1816
      %v1819 = vperm.slane %v1774, 0
      %v1820 = vmul.f32 %v1817, %v1819
      %v1821 = vmul.f32 %v1818, %v1819
      %v1822 = vperm.slane %v1774, 1
      %v1823 = vadd.f32 %v1820, %v1822
      %v1824 = vadd.f32 %v1821, %v1822
      %s1825 = scalar_lea.vmem %s5, 8
      %v1826 = vld [vmem:[%s1825] sm:$0x3]
      %v1827 = vsel %vm463, %v1823, 0.0
      %1828 = vadd.xlane.f32.xlu0 %v1827
      %v1829 = vpop.xlane.xlu0 %1828
      %v1830 = vsel %vm463, %v1824, 0.0
      %1831 = vadd.xlane.f32.xlu0 %v1830
      %v1832 = vpop.xlane.xlu0 %1831
      %v1833 = vmul.f32 %v1829, %v969
      %v1834 = vmul.f32 %v1832, %v969
      %v1835 = vsub.f32 %v1823, %v1833
      %v1836 = vsub.f32 %v1824, %v1834
      %v1837 = vmul.f32 %v1835, %v1835
      %v1838 = vmul.f32 %v1836, %v1836
      %v1839 = vsel %vm463, %v1837, 0.0
      %1840 = vadd.xlane.f32.xlu0 %v1839
      %v1841 = vpop.xlane.xlu0 %1840
      %v1842 = vsel %vm463, %v1838, 0.0
      %1843 = vadd.xlane.f32.xlu0 %v1842
      %v1844 = vpop.xlane.xlu0 %1843
      %v1845 = vmul.f32 %v1841, %v969
      %v1846 = vmul.f32 %v1844, %v969
      %v1847 = vadd.f32 %v1845, 1e-05
      %v1848 = vadd.f32 %v1846, 1e-05
      %v1849 = vrsqrt.pop %v1847
      %v1850 = vmul.f32 %v1849, %v1847
      %v1851 = vmul.f32 %v1850, %v1849
      %v1852 = vmul.f32 0.5, %v1851
      %v1853 = vsub.f32 1.5, %v1852
      %v1854 = vmul.f32 %v1849, %v1853
      %vm1855 = vweird.f32 %v1847
      %vm1856 = vweird.f32 %v1849
      %vm1857 = vmor %vm1855, %vm1856
      %v1858 = vsel %vm1857, %v1849, %v1854
      %v1859 = vrsqrt.pop %v1848
      %v1860 = vmul.f32 %v1859, %v1848
      %v1861 = vmul.f32 %v1860, %v1859
      %v1862 = vmul.f32 0.5, %v1861
      %v1863 = vsub.f32 1.5, %v1862
      %v1864 = vmul.f32 %v1859, %v1863
      %vm1865 = vweird.f32 %v1848
      %vm1866 = vweird.f32 %v1859
      %vm1867 = vmor %vm1865, %vm1866
      %v1868 = vsel %vm1867, %v1859, %v1864
      %v1869 = vmul.f32 %v1835, %v1858
      %v1870 = vmul.f32 %v1836, %v1868
      %v1871 = vperm.slane %v1826, 0
      %v1872 = vmul.f32 %v1869, %v1871
      %v1873 = vmul.f32 %v1870, %v1871
      %v1874 = vperm.slane %v1826, 1
      %v1875 = vadd.f32 %v1872, %v1874
      %v1876 = vadd.f32 %v1873, %v1874
      %s1877 = scalar_lea.vmem %s3, 64
      %v1878 = vld [vmem:[%s1877] sm:$0xff]
      %v1879 = vld [vmem:[%s1877 + $0x8] sm:$0xff]
      %v1880 = vld [vmem:[%s1877 + $0x10] sm:$0xff]
      %v1881 = vld [vmem:[%s1877 + $0x18] sm:$0xff]
      %s1882 = scalar_lea.vmem %s4, 4
      %v1883 = vld [vmem:[%s1882] sm:$0x3]
      %v1884 = vperm.slane %v1883, 0
      %v1886 = vsel %vm463, %v452, 0
      %v1889 = vsel %vm463, %v455, 0
      %1891 = vmatpush.msra.mxu0 0.0
      %1892 = vmatpush.msra.mxu0 0.0
      %1893 = vmatpush.msra.mxu0 0.0
      %1894 = vmatpush.msra.mxu0 0.0
      %1895 = vmatpush.msra.mxu0 0.0
      %1896 = vmatpush.msra.mxu0 0.0
      %1897 = vmatpush.msra.mxu0 0.0
      %1898 = vmatpush.msra.mxu0 0.0
      %1899 = vmatpush.msra.mxu0 0.0
      %1900 = vmatpush.msra.mxu0 0.0
      %1901 = vmatpush.msra.mxu0 0.0
      %1902 = vmatpush.msra.mxu0 0.0
      %1903 = vmatpush.msra.mxu0 %v1881
      %1904 = vmatpush.msra.mxu0 %v1880
      %1905 = vmatpush.msra.mxu0 %v1879
      %1906 = vmatpush.msra.mxu0 %v1878
      %1907 = vmatmul.f32.gmra.mxu0 %v1886
      %v1908 = vpop.f32.mrf.mxu0
      %v1909 = vadd.f32 %v1884, %v1908
      %1910 = vmatmul.f32.gmra.mxu0 %v1889
      %v1911 = vpop.f32.mrf.mxu0
      %v1912 = vadd.f32 %v1884, %v1911
      %1913 = vdwg.mxu0
      %1916 = vrot.lane.b32.xlu0 %v1909, 120
      %v1917 = vpop.permute.xlu0 %1916
      %1918 = vrot.lane.b32.xlu0 %v1912, 120
      %v1919 = vpop.permute.xlu0 %1918
      %1920 = vrot.lane.b32.xlu0 %v1909, 112
      %v1921 = vpop.permute.xlu0 %1920
      %1922 = vrot.lane.b32.xlu0 %v1912, 112
      %v1923 = vpop.permute.xlu0 %1922
      %1924 = vrot.lane.b32.xlu0 %v1909, 104
      %v1925 = vpop.permute.xlu0 %1924
      %1926 = vrot.lane.b32.xlu0 %v1912, 104
      %v1927 = vpop.permute.xlu0 %1926
      %1928 = vrot.lane.b32.xlu0 %v1909, 96
      %v1929 = vpop.permute.xlu0 %1928
      %1930 = vrot.lane.b32.xlu0 %v1912, 96
      %v1931 = vpop.permute.xlu0 %1930
      %v1932 = vsel %vm511, %v1909, 0
      %v1934 = vsel %vm511, %v1912, 0
      %v1936 = vsel %vm511, %v1929, 0
      %v1938 = vsel %vm511, %v1931, 0
      %1940 = vmatpush.xpose.msra.mxu0 0.0
      %1941 = vmatpush.xpose.msra.mxu0 0.0
      %1942 = vmatpush.xpose.msra.mxu0 0.0
      %1943 = vmatpush.xpose.msra.mxu0 0.0
      %1944 = vmatpush.xpose.msra.mxu0 0.0
      %1945 = vmatpush.xpose.msra.mxu0 0.0
      %1946 = vmatpush.xpose.msra.mxu0 0.0
      %1947 = vmatpush.xpose.msra.mxu0 0.0
      %1948 = vmatpush.xpose.msra.mxu0 0.0
      %1949 = vmatpush.xpose.msra.mxu0 0.0
      %1950 = vmatpush.xpose.msra.mxu0 0.0
      %1951 = vmatpush.xpose.msra.mxu0 0.0
      %1952 = vmatpush.xpose.msra.mxu0 0.0
      %1953 = vmatpush.xpose.msra.mxu0 0.0
      %1954 = vmatpush.xpose.msra.mxu0 %v1938
      %1955 = vmatpush.xpose.msra.mxu0 %v1936
      %1956 = vmatmul.f32.gmra.mxu0 %v1932
      %v1957 = vpop.f32.mrf.mxu0
      %v1958 = vadd.f32 0.0, %v1957
      %1959 = vmatmul.f32.gmra.mxu0 %v1934
      %v1960 = vpop.f32.mrf.mxu0
      %v1961 = vadd.f32 0.0, %v1960
      %1962 = vdwg.mxu0
      %1963 = vrot.lane.b32.xlu0 %v1917, 96
      %v1964 = vpop.permute.xlu0 %1963
      %1965 = vrot.lane.b32.xlu0 %v1919, 96
      %v1966 = vpop.permute.xlu0 %1965
      %v1967 = vsel %vm511, %v1917, 0
      %v1969 = vsel %vm511, %v1919, 0
      %v1971 = vsel %vm511, %v1964, 0
      %v1973 = vsel %vm511, %v1966, 0
      %1975 = vmatpush.xpose.msra.mxu0 0.0
      %1976 = vmatpush.xpose.msra.mxu0 0.0
      %1977 = vmatpush.xpose.msra.mxu0 0.0
      %1978 = vmatpush.xpose.msra.mxu0 0.0
      %1979 = vmatpush.xpose.msra.mxu0 0.0
      %1980 = vmatpush.xpose.msra.mxu0 0.0
      %1981 = vmatpush.xpose.msra.mxu0 0.0
      %1982 = vmatpush.xpose.msra.mxu0 0.0
      %1983 = vmatpush.xpose.msra.mxu0 0.0
      %1984 = vmatpush.xpose.msra.mxu0 0.0
      %1985 = vmatpush.xpose.msra.mxu0 0.0
      %1986 = vmatpush.xpose.msra.mxu0 0.0
      %1987 = vmatpush.xpose.msra.mxu0 0.0
      %1988 = vmatpush.xpose.msra.mxu0 0.0
      %1989 = vmatpush.xpose.msra.mxu0 %v1973
      %1990 = vmatpush.xpose.msra.mxu0 %v1971
      %1991 = vmatmul.f32.gmra.mxu0 %v1967
      %v1992 = vpop.f32.mrf.mxu0
      %v1993 = vadd.f32 0.0, %v1992
      %1994 = vmatmul.f32.gmra.mxu0 %v1969
      %v1995 = vpop.f32.mrf.mxu0
      %v1996 = vadd.f32 0.0, %v1995
      %1997 = vdwg.mxu0
      %1998 = vrot.lane.b32.xlu0 %v1921, 96
      %v1999 = vpop.permute.xlu0 %1998
      %2000 = vrot.lane.b32.xlu0 %v1923, 96
      %v2001 = vpop.permute.xlu0 %2000
      %v2002 = vsel %vm511, %v1921, 0
      %v2004 = vsel %vm511, %v1923, 0
      %v2006 = vsel %vm511, %v1999, 0
      %v2008 = vsel %vm511, %v2001, 0
      %2010 = vmatpush.xpose.msra.mxu0 0.0
      %2011 = vmatpush.xpose.msra.mxu0 0.0
      %2012 = vmatpush.xpose.msra.mxu0 0.0
      %2013 = vmatpush.xpose.msra.mxu0 0.0
      %2014 = vmatpush.xpose.msra.mxu0 0.0
      %2015 = vmatpush.xpose.msra.mxu0 0.0
      %2016 = vmatpush.xpose.msra.mxu0 0.0
      %2017 = vmatpush.xpose.msra.mxu0 0.0
      %2018 = vmatpush.xpose.msra.mxu0 0.0
      %2019 = vmatpush.xpose.msra.mxu0 0.0
      %2020 = vmatpush.xpose.msra.mxu0 0.0
      %2021 = vmatpush.xpose.msra.mxu0 0.0
      %2022 = vmatpush.xpose.msra.mxu0 0.0
      %2023 = vmatpush.xpose.msra.mxu0 0.0
      %2024 = vmatpush.xpose.msra.mxu0 %v2008
      %2025 = vmatpush.xpose.msra.mxu0 %v2006
      %2026 = vmatmul.f32.gmra.mxu0 %v2002
      %v2027 = vpop.f32.mrf.mxu0
      %v2028 = vadd.f32 0.0, %v2027
      %2029 = vmatmul.f32.gmra.mxu0 %v2004
      %v2030 = vpop.f32.mrf.mxu0
      %v2031 = vadd.f32 0.0, %v2030
      %2032 = vdwg.mxu0
      %2033 = vrot.lane.b32.xlu0 %v1925, 96
      %v2034 = vpop.permute.xlu0 %2033
      %2035 = vrot.lane.b32.xlu0 %v1927, 96
      %v2036 = vpop.permute.xlu0 %2035
      %v2037 = vsel %vm511, %v1925, 0
      %v2039 = vsel %vm511, %v1927, 0
      %v2041 = vsel %vm511, %v2034, 0
      %v2043 = vsel %vm511, %v2036, 0
      %2045 = vmatpush.xpose.msra.mxu0 0.0
      %2046 = vmatpush.xpose.msra.mxu0 0.0
      %2047 = vmatpush.xpose.msra.mxu0 0.0
      %2048 = vmatpush.xpose.msra.mxu0 0.0
      %2049 = vmatpush.xpose.msra.mxu0 0.0
      %2050 = vmatpush.xpose.msra.mxu0 0.0
      %2051 = vmatpush.xpose.msra.mxu0 0.0
      %2052 = vmatpush.xpose.msra.mxu0 0.0
      %2053 = vmatpush.xpose.msra.mxu0 0.0
      %2054 = vmatpush.xpose.msra.mxu0 0.0
      %2055 = vmatpush.xpose.msra.mxu0 0.0
      %2056 = vmatpush.xpose.msra.mxu0 0.0
      %2057 = vmatpush.xpose.msra.mxu0 0.0
      %2058 = vmatpush.xpose.msra.mxu0 0.0
      %2059 = vmatpush.xpose.msra.mxu0 %v2043
      %2060 = vmatpush.xpose.msra.mxu0 %v2041
      %2061 = vmatmul.f32.gmra.mxu0 %v2037
      %v2062 = vpop.f32.mrf.mxu0
      %v2063 = vadd.f32 0.0, %v2062
      %2064 = vmatmul.f32.gmra.mxu0 %v2039
      %v2065 = vpop.f32.mrf.mxu0
      %v2066 = vadd.f32 0.0, %v2065
      %2067 = vdwg.mxu0
      %v2068 = vmul.f32 %v1958, 0.35355338
      %v2069 = vmul.f32 %v1961, 0.35355338
      %v2070 = vmul.f32 %v1993, 0.35355338
      %v2071 = vmul.f32 %v1996, 0.35355338
      %v2072 = vmul.f32 %v2028, 0.35355338
      %v2073 = vmul.f32 %v2031, 0.35355338
      %v2074 = vmul.f32 %v2063, 0.35355338
      %v2075 = vmul.f32 %v2066, 0.35355338
      %v2076 = vsel %vm656, %v2068, -inf
      %2077 = vmax.xlane.f32.xlu0 %v2076
      %v2078 = vpop.xlane.xlu0 %2077
      %v2079 = vsel %vm656, %v2069, -inf
      %2080 = vmax.xlane.f32.xlu0 %v2079
      %v2081 = vpop.xlane.xlu0 %2080
      %v2082 = vsel %vm656, %v2070, -inf
      %2083 = vmax.xlane.f32.xlu0 %v2082
      %v2084 = vpop.xlane.xlu0 %2083
      %v2085 = vsel %vm656, %v2071, -inf
      %2086 = vmax.xlane.f32.xlu0 %v2085
      %v2087 = vpop.xlane.xlu0 %2086
      %v2088 = vsel %vm656, %v2072, -inf
      %2089 = vmax.xlane.f32.xlu0 %v2088
      %v2090 = vpop.xlane.xlu0 %2089
      %v2091 = vsel %vm656, %v2073, -inf
      %2092 = vmax.xlane.f32.xlu0 %v2091
      %v2093 = vpop.xlane.xlu0 %2092
      %v2094 = vsel %vm656, %v2074, -inf
      %2095 = vmax.xlane.f32.xlu0 %v2094
      %v2096 = vpop.xlane.xlu0 %2095
      %v2097 = vsel %vm656, %v2075, -inf
      %2098 = vmax.xlane.f32.xlu0 %v2097
      %v2099 = vpop.xlane.xlu0 %2098
      %v2100 = vsub.f32 %v2068, %v2078
      %v2101 = vsub.f32 %v2069, %v2081
      %v2102 = vsub.f32 %v2070, %v2084
      %v2103 = vsub.f32 %v2071, %v2087
      %v2104 = vsub.f32 %v2072, %v2090
      %v2105 = vsub.f32 %v2073, %v2093
      %v2106 = vsub.f32 %v2074, %v2096
      %v2107 = vsub.f32 %v2075, %v2099
      %v2108 = vmul.f32 %v2100, 1.442695
      %v2109 = vpow.pop %v2108
      %v2110 = vmul.f32 %v2101, 1.442695
      %v2111 = vpow.pop %v2110
      %v2112 = vmul.f32 %v2102, 1.442695
      %v2113 = vpow.pop %v2112
      %v2114 = vmul.f32 %v2103, 1.442695
      %v2115 = vpow.pop %v2114
      %v2116 = vmul.f32 %v2104, 1.442695
      %v2117 = vpow.pop %v2116
      %v2118 = vmul.f32 %v2105, 1.442695
      %v2119 = vpow.pop %v2118
      %v2120 = vmul.f32 %v2106, 1.442695
      %v2121 = vpow.pop %v2120
      %v2122 = vmul.f32 %v2107, 1.442695
      %v2123 = vpow.pop %v2122
      %v2124 = vsel %vm656, %v2109, 0.0
      %2125 = vadd.xlane.f32.xlu0 %v2124
      %v2126 = vpop.xlane.xlu0 %2125
      %v2127 = vsel %vm656, %v2111, 0.0
      %2128 = vadd.xlane.f32.xlu0 %v2127
      %v2129 = vpop.xlane.xlu0 %2128
      %v2130 = vsel %vm656, %v2113, 0.0
      %2131 = vadd.xlane.f32.xlu0 %v2130
      %v2132 = vpop.xlane.xlu0 %2131
      %v2133 = vsel %vm656, %v2115, 0.0
      %2134 = vadd.xlane.f32.xlu0 %v2133
      %v2135 = vpop.xlane.xlu0 %2134
      %v2136 = vsel %vm656, %v2117, 0.0
      %2137 = vadd.xlane.f32.xlu0 %v2136
      %v2138 = vpop.xlane.xlu0 %2137
      %v2139 = vsel %vm656, %v2119, 0.0
      %2140 = vadd.xlane.f32.xlu0 %v2139
      %v2141 = vpop.xlane.xlu0 %2140
      %v2142 = vsel %vm656, %v2121, 0.0
      %2143 = vadd.xlane.f32.xlu0 %v2142
      %v2144 = vpop.xlane.xlu0 %2143
      %v2145 = vsel %vm656, %v2123, 0.0
      %2146 = vadd.xlane.f32.xlu0 %v2145
      %v2147 = vpop.xlane.xlu0 %2146
      %v2148 = vrcp.pop %v2126
      %v2149 = vrcp.pop %v2129
      %v2150 = vrcp.pop %v2132
      %v2151 = vrcp.pop %v2135
      %v2152 = vrcp.pop %v2138
      %v2153 = vrcp.pop %v2141
      %v2154 = vrcp.pop %v2144
      %v2155 = vrcp.pop %v2147
      %v2156 = vmul.f32 %v2109, %v2148
      %v2157 = vmul.f32 %v2111, %v2149
      %v2158 = vmul.f32 %v2113, %v2150
      %v2159 = vmul.f32 %v2115, %v2151
      %v2160 = vmul.f32 %v2117, %v2152
      %v2161 = vmul.f32 %v2119, %v2153
      %v2162 = vmul.f32 %v2121, %v2154
      %v2163 = vmul.f32 %v2123, %v2155
      %2164 = vrot.lane.b32.xlu0 %v1909, 64
      %v2165 = vpop.permute.xlu0 %2164
      %2166 = vrot.lane.b32.xlu0 %v1912, 64
      %v2167 = vpop.permute.xlu0 %2166
      %v2171 = vsel %vm656, %v2156, 0
      %v2174 = vsel %vm656, %v2157, 0
      %2176 = vmatpush.msra.mxu0 0.0
      %2177 = vmatpush.msra.mxu0 0.0
      %2178 = vmatpush.msra.mxu0 0.0
      %2179 = vmatpush.msra.mxu0 0.0
      %2180 = vmatpush.msra.mxu0 0.0
      %2181 = vmatpush.msra.mxu0 0.0
      %2182 = vmatpush.msra.mxu0 0.0
      %2183 = vmatpush.msra.mxu0 0.0
      %2184 = vmatpush.msra.mxu0 0.0
      %2185 = vmatpush.msra.mxu0 0.0
      %2186 = vmatpush.msra.mxu0 0.0
      %2187 = vmatpush.msra.mxu0 0.0
      %2188 = vmatpush.msra.mxu0 0.0
      %2189 = vmatpush.msra.mxu0 0.0
      %2190 = vmatpush.msra.mxu0 %v2167
      %2191 = vmatpush.msra.mxu0 %v2165
      %2192 = vmatmul.f32.gmra.mxu0 %v2171
      %v2193 = vpop.f32.mrf.mxu0
      %v2194 = vadd.f32 0.0, %v2193
      %2195 = vmatmul.f32.gmra.mxu0 %v2174
      %v2196 = vpop.f32.mrf.mxu0
      %v2197 = vadd.f32 0.0, %v2196
      %2198 = vdwg.mxu0
      %2199 = vrot.lane.b32.xlu0 %v1917, 64
      %v2200 = vpop.permute.xlu0 %2199
      %2201 = vrot.lane.b32.xlu0 %v1919, 64
      %v2202 = vpop.permute.xlu0 %2201
      %v2206 = vsel %vm656, %v2158, 0
      %v2209 = vsel %vm656, %v2159, 0
      %2211 = vmatpush.msra.mxu0 0.0
      %2212 = vmatpush.msra.mxu0 0.0
      %2213 = vmatpush.msra.mxu0 0.0
      %2214 = vmatpush.msra.mxu0 0.0
      %2215 = vmatpush.msra.mxu0 0.0
      %2216 = vmatpush.msra.mxu0 0.0
      %2217 = vmatpush.msra.mxu0 0.0
      %2218 = vmatpush.msra.mxu0 0.0
      %2219 = vmatpush.msra.mxu0 0.0
      %2220 = vmatpush.msra.mxu0 0.0
      %2221 = vmatpush.msra.mxu0 0.0
      %2222 = vmatpush.msra.mxu0 0.0
      %2223 = vmatpush.msra.mxu0 0.0
      %2224 = vmatpush.msra.mxu0 0.0
      %2225 = vmatpush.msra.mxu0 %v2202
      %2226 = vmatpush.msra.mxu0 %v2200
      %2227 = vmatmul.f32.gmra.mxu0 %v2206
      %v2228 = vpop.f32.mrf.mxu0
      %v2229 = vadd.f32 0.0, %v2228
      %2230 = vmatmul.f32.gmra.mxu0 %v2209
      %v2231 = vpop.f32.mrf.mxu0
      %v2232 = vadd.f32 0.0, %v2231
      %2233 = vdwg.mxu0
      %2234 = vrot.lane.b32.xlu0 %v1921, 64
      %v2235 = vpop.permute.xlu0 %2234
      %2236 = vrot.lane.b32.xlu0 %v1923, 64
      %v2237 = vpop.permute.xlu0 %2236
      %v2241 = vsel %vm656, %v2160, 0
      %v2244 = vsel %vm656, %v2161, 0
      %2246 = vmatpush.msra.mxu0 0.0
      %2247 = vmatpush.msra.mxu0 0.0
      %2248 = vmatpush.msra.mxu0 0.0
      %2249 = vmatpush.msra.mxu0 0.0
      %2250 = vmatpush.msra.mxu0 0.0
      %2251 = vmatpush.msra.mxu0 0.0
      %2252 = vmatpush.msra.mxu0 0.0
      %2253 = vmatpush.msra.mxu0 0.0
      %2254 = vmatpush.msra.mxu0 0.0
      %2255 = vmatpush.msra.mxu0 0.0
      %2256 = vmatpush.msra.mxu0 0.0
      %2257 = vmatpush.msra.mxu0 0.0
      %2258 = vmatpush.msra.mxu0 0.0
      %2259 = vmatpush.msra.mxu0 0.0
      %2260 = vmatpush.msra.mxu0 %v2237
      %2261 = vmatpush.msra.mxu0 %v2235
      %2262 = vmatmul.f32.gmra.mxu0 %v2241
      %v2263 = vpop.f32.mrf.mxu0
      %v2264 = vadd.f32 0.0, %v2263
      %2265 = vmatmul.f32.gmra.mxu0 %v2244
      %v2266 = vpop.f32.mrf.mxu0
      %v2267 = vadd.f32 0.0, %v2266
      %2268 = vdwg.mxu0
      %2269 = vrot.lane.b32.xlu0 %v1925, 64
      %v2270 = vpop.permute.xlu0 %2269
      %2271 = vrot.lane.b32.xlu0 %v1927, 64
      %v2272 = vpop.permute.xlu0 %2271
      %v2276 = vsel %vm656, %v2162, 0
      %v2279 = vsel %vm656, %v2163, 0
      %2281 = vmatpush.msra.mxu0 0.0
      %2282 = vmatpush.msra.mxu0 0.0
      %2283 = vmatpush.msra.mxu0 0.0
      %2284 = vmatpush.msra.mxu0 0.0
      %2285 = vmatpush.msra.mxu0 0.0
      %2286 = vmatpush.msra.mxu0 0.0
      %2287 = vmatpush.msra.mxu0 0.0
      %2288 = vmatpush.msra.mxu0 0.0
      %2289 = vmatpush.msra.mxu0 0.0
      %2290 = vmatpush.msra.mxu0 0.0
      %2291 = vmatpush.msra.mxu0 0.0
      %2292 = vmatpush.msra.mxu0 0.0
      %2293 = vmatpush.msra.mxu0 0.0
      %2294 = vmatpush.msra.mxu0 0.0
      %2295 = vmatpush.msra.mxu0 %v2272
      %2296 = vmatpush.msra.mxu0 %v2270
      %2297 = vmatmul.f32.gmra.mxu0 %v2276
      %v2298 = vpop.f32.mrf.mxu0
      %v2299 = vadd.f32 0.0, %v2298
      %2300 = vmatmul.f32.gmra.mxu0 %v2279
      %v2301 = vpop.f32.mrf.mxu0
      %v2302 = vadd.f32 0.0, %v2301
      %2303 = vdwg.mxu0
      %2306 = vrot.lane.b32.xlu0 %v2229, 8
      %v2307 = vpop.permute.xlu0 %2306
      %2308 = vrot.lane.b32.xlu0 %v2232, 8
      %v2309 = vpop.permute.xlu0 %2308
      %2314 = vrot.lane.b32.xlu0 %v2264, 16
      %v2315 = vpop.permute.xlu0 %2314
      %2316 = vrot.lane.b32.xlu0 %v2267, 16
      %v2317 = vpop.permute.xlu0 %2316
      %2322 = vrot.lane.b32.xlu0 %v2299, 24
      %v2323 = vpop.permute.xlu0 %2322
      %2324 = vrot.lane.b32.xlu0 %v2302, 24
      %v2325 = vpop.permute.xlu0 %2324
      %v2328 = vsel %vm511, %v2194, %v2307
      %v2329 = vsel %vm511, %v2197, %v2309
      %v2330 = vsel %vm656, %v2328, %v2315
      %v2331 = vsel %vm656, %v2329, %v2317
      %v2332 = vsel %vm913, %v2330, %v2323
      %v2333 = vsel %vm913, %v2331, %v2325
      %v2334 = vperm.slane %v1883, 1
      %v2336 = vsel %vm463, %v2332, 0
      %v2339 = vsel %vm463, %v2333, 0
      %2341 = vmatpush.msra.mxu0 0.0
      %2342 = vmatpush.msra.mxu0 0.0
      %2343 = vmatpush.msra.mxu0 0.0
      %2344 = vmatpush.msra.mxu0 0.0
      %2345 = vmatpush.msra.mxu0 0.0
      %2346 = vmatpush.msra.mxu0 0.0
      %2347 = vmatpush.msra.mxu0 0.0
      %2348 = vmatpush.msra.mxu0 0.0
      %2349 = vmatpush.msra.mxu0 0.0
      %2350 = vmatpush.msra.mxu0 0.0
      %2351 = vmatpush.msra.mxu0 0.0
      %2352 = vmatpush.msra.mxu0 0.0
      %2353 = vmatpush.msra.mxu0 %v1881
      %2354 = vmatpush.msra.mxu0 %v1880
      %2355 = vmatpush.msra.mxu0 %v1879
      %2356 = vmatpush.msra.mxu0 %v1878
      %2357 = vmatmul.f32.gmra.mxu0 %v2336
      %v2358 = vpop.f32.mrf.mxu0
      %v2359 = vadd.f32 %v2334, %v2358
      %2360 = vmatmul.f32.gmra.mxu0 %v2339
      %v2361 = vpop.f32.mrf.mxu0
      %v2362 = vadd.f32 %v2334, %v2361
      %2363 = vdwg.mxu0
      %2366 = vrot.lane.b32.xlu0 %v2359, 32
      %v2367 = vpop.permute.xlu0 %2366
      %2368 = vrot.lane.b32.xlu0 %v2362, 32
      %v2369 = vpop.permute.xlu0 %2368
      %v2372 = vadd.f32 %v452, %v2367
      %v2373 = vadd.f32 %v455, %v2369
      %s2374 = scalar_lea.vmem %s5, 10
      %v2375 = vld [vmem:[%s2374] sm:$0x3]
      %v2376 = vsel %vm463, %v2372, 0.0
      %2377 = vadd.xlane.f32.xlu0 %v2376
      %v2378 = vpop.xlane.xlu0 %2377
      %v2379 = vsel %vm463, %v2373, 0.0
      %2380 = vadd.xlane.f32.xlu0 %v2379
      %v2381 = vpop.xlane.xlu0 %2380
      %v2382 = vmul.f32 %v2378, %v969
      %v2383 = vmul.f32 %v2381, %v969
      %v2384 = vsub.f32 %v2372, %v2382
      %v2385 = vsub.f32 %v2373, %v2383
      %v2386 = vmul.f32 %v2384, %v2384
      %v2387 = vmul.f32 %v2385, %v2385
      %v2388 = vsel %vm463, %v2386, 0.0
      %2389 = vadd.xlane.f32.xlu0 %v2388
      %v2390 = vpop.xlane.xlu0 %2389
      %v2391 = vsel %vm463, %v2387, 0.0
      %2392 = vadd.xlane.f32.xlu0 %v2391
      %v2393 = vpop.xlane.xlu0 %2392
      %v2394 = vmul.f32 %v2390, %v969
      %v2395 = vmul.f32 %v2393, %v969
      %v2396 = vadd.f32 %v2394, 1e-05
      %v2397 = vadd.f32 %v2395, 1e-05
      %v2398 = vrsqrt.pop %v2396
      %v2399 = vmul.f32 %v2398, %v2396
      %v2400 = vmul.f32 %v2399, %v2398
      %v2401 = vmul.f32 0.5, %v2400
      %v2402 = vsub.f32 1.5, %v2401
      %v2403 = vmul.f32 %v2398, %v2402
      %vm2404 = vweird.f32 %v2396
      %vm2405 = vweird.f32 %v2398
      %vm2406 = vmor %vm2404, %vm2405
      %v2407 = vsel %vm2406, %v2398, %v2403
      %v2408 = vrsqrt.pop %v2397
      %v2409 = vmul.f32 %v2408, %v2397
      %v2410 = vmul.f32 %v2409, %v2408
      %v2411 = vmul.f32 0.5, %v2410
      %v2412 = vsub.f32 1.5, %v2411
      %v2413 = vmul.f32 %v2408, %v2412
      %vm2414 = vweird.f32 %v2397
      %vm2415 = vweird.f32 %v2408
      %vm2416 = vmor %vm2414, %vm2415
      %v2417 = vsel %vm2416, %v2408, %v2413
      %v2418 = vmul.f32 %v2384, %v2407
      %v2419 = vmul.f32 %v2385, %v2417
      %v2420 = vperm.slane %v2375, 0
      %v2421 = vmul.f32 %v2418, %v2420
      %v2422 = vmul.f32 %v2419, %v2420
      %v2423 = vperm.slane %v2375, 1
      %v2424 = vadd.f32 %v2421, %v2423
      %v2425 = vadd.f32 %v2422, %v2423
      %s2426 = scalar_lea.vmem %s3, 96
      %v2427 = vld [vmem:[%s2426] sm:$0xff]
      %v2428 = vld [vmem:[%s2426 + $0x8] sm:$0xff]
      %v2429 = vld [vmem:[%s2426 + $0x10] sm:$0xff]
      %v2430 = vld [vmem:[%s2426 + $0x18] sm:$0xff]
      %s2431 = scalar_lea.vmem %s4, 6
      %v2432 = vld [vmem:[%s2431] sm:$0x3]
      %v2433 = vperm.slane %v2432, 0
      %v2435 = vsel %vm463, %v2424, 0
      %v2438 = vsel %vm463, %v2425, 0
      %2440 = vmatpush.msra.mxu0 0.0
      %2441 = vmatpush.msra.mxu0 0.0
      %2442 = vmatpush.msra.mxu0 0.0
      %2443 = vmatpush.msra.mxu0 0.0
      %2444 = vmatpush.msra.mxu0 0.0
      %2445 = vmatpush.msra.mxu0 0.0
      %2446 = vmatpush.msra.mxu0 0.0
      %2447 = vmatpush.msra.mxu0 0.0
      %2448 = vmatpush.msra.mxu0 0.0
      %2449 = vmatpush.msra.mxu0 0.0
      %2450 = vmatpush.msra.mxu0 0.0
      %2451 = vmatpush.msra.mxu0 0.0
      %2452 = vmatpush.msra.mxu0 %v2430
      %2453 = vmatpush.msra.mxu0 %v2429
      %2454 = vmatpush.msra.mxu0 %v2428
      %2455 = vmatpush.msra.mxu0 %v2427
      %2456 = vmatmul.f32.gmra.mxu0 %v2435
      %v2457 = vpop.f32.mrf.mxu0
      %v2458 = vadd.f32 %v2433, %v2457
      %2459 = vmatmul.f32.gmra.mxu0 %v2438
      %v2460 = vpop.f32.mrf.mxu0
      %v2461 = vadd.f32 %v2433, %v2460
      %2462 = vdwg.mxu0
      %v2464 = vsel %vm463, %v1875, 0
      %v2467 = vsel %vm463, %v1876, 0
      %2469 = vmatpush.msra.mxu0 0.0
      %2470 = vmatpush.msra.mxu0 0.0
      %2471 = vmatpush.msra.mxu0 0.0
      %2472 = vmatpush.msra.mxu0 0.0
      %2473 = vmatpush.msra.mxu0 0.0
      %2474 = vmatpush.msra.mxu0 0.0
      %2475 = vmatpush.msra.mxu0 0.0
      %2476 = vmatpush.msra.mxu0 0.0
      %2477 = vmatpush.msra.mxu0 0.0
      %2478 = vmatpush.msra.mxu0 0.0
      %2479 = vmatpush.msra.mxu0 0.0
      %2480 = vmatpush.msra.mxu0 0.0
      %2481 = vmatpush.msra.mxu0 %v2430
      %2482 = vmatpush.msra.mxu0 %v2429
      %2483 = vmatpush.msra.mxu0 %v2428
      %2484 = vmatpush.msra.mxu0 %v2427
      %2485 = vmatmul.f32.gmra.mxu0 %v2464
      %v2486 = vpop.f32.mrf.mxu0
      %v2487 = vadd.f32 %v2433, %v2486
      %2488 = vmatmul.f32.gmra.mxu0 %v2467
      %v2489 = vpop.f32.mrf.mxu0
      %v2490 = vadd.f32 %v2433, %v2489
      %2491 = vdwg.mxu0
      %2494 = vrot.lane.b32.xlu0 %v2458, 120
      %v2495 = vpop.permute.xlu0 %2494
      %2496 = vrot.lane.b32.xlu0 %v2461, 120
      %v2497 = vpop.permute.xlu0 %2496
      %2498 = vrot.lane.b32.xlu0 %v2458, 112
      %v2499 = vpop.permute.xlu0 %2498
      %2500 = vrot.lane.b32.xlu0 %v2461, 112
      %v2501 = vpop.permute.xlu0 %2500
      %2502 = vrot.lane.b32.xlu0 %v2458, 104
      %v2503 = vpop.permute.xlu0 %2502
      %2504 = vrot.lane.b32.xlu0 %v2461, 104
      %v2505 = vpop.permute.xlu0 %2504
      %2508 = vrot.lane.b32.xlu0 %v2487, 120
      %v2509 = vpop.permute.xlu0 %2508
      %2510 = vrot.lane.b32.xlu0 %v2490, 120
      %v2511 = vpop.permute.xlu0 %2510
      %2512 = vrot.lane.b32.xlu0 %v2487, 112
      %v2513 = vpop.permute.xlu0 %2512
      %2514 = vrot.lane.b32.xlu0 %v2490, 112
      %v2515 = vpop.permute.xlu0 %2514
      %2516 = vrot.lane.b32.xlu0 %v2487, 104
      %v2517 = vpop.permute.xlu0 %2516
      %2518 = vrot.lane.b32.xlu0 %v2490, 104
      %v2519 = vpop.permute.xlu0 %2518
      %2520 = vrot.lane.b32.xlu0 %v2487, 96
      %v2521 = vpop.permute.xlu0 %2520
      %2522 = vrot.lane.b32.xlu0 %v2490, 96
      %v2523 = vpop.permute.xlu0 %2522
      %v2524 = vsel %vm511, %v2458, 0
      %v2526 = vsel %vm511, %v2461, 0
      %v2528 = vsel %vm511, %v2521, 0
      %v2530 = vsel %vm511, %v2523, 0
      %2532 = vmatpush.xpose.msra.mxu0 0.0
      %2533 = vmatpush.xpose.msra.mxu0 0.0
      %2534 = vmatpush.xpose.msra.mxu0 0.0
      %2535 = vmatpush.xpose.msra.mxu0 0.0
      %2536 = vmatpush.xpose.msra.mxu0 0.0
      %2537 = vmatpush.xpose.msra.mxu0 0.0
      %2538 = vmatpush.xpose.msra.mxu0 0.0
      %2539 = vmatpush.xpose.msra.mxu0 0.0
      %2540 = vmatpush.xpose.msra.mxu0 0.0
      %2541 = vmatpush.xpose.msra.mxu0 0.0
      %2542 = vmatpush.xpose.msra.mxu0 0.0
      %2543 = vmatpush.xpose.msra.mxu0 0.0
      %2544 = vmatpush.xpose.msra.mxu0 0.0
      %2545 = vmatpush.xpose.msra.mxu0 0.0
      %2546 = vmatpush.xpose.msra.mxu0 %v2530
      %2547 = vmatpush.xpose.msra.mxu0 %v2528
      %2548 = vmatmul.f32.gmra.mxu0 %v2524
      %v2549 = vpop.f32.mrf.mxu0
      %v2550 = vadd.f32 0.0, %v2549
      %2551 = vmatmul.f32.gmra.mxu0 %v2526
      %v2552 = vpop.f32.mrf.mxu0
      %v2553 = vadd.f32 0.0, %v2552
      %2554 = vdwg.mxu0
      %2555 = vrot.lane.b32.xlu0 %v2509, 96
      %v2556 = vpop.permute.xlu0 %2555
      %2557 = vrot.lane.b32.xlu0 %v2511, 96
      %v2558 = vpop.permute.xlu0 %2557
      %v2559 = vsel %vm511, %v2495, 0
      %v2561 = vsel %vm511, %v2497, 0
      %v2563 = vsel %vm511, %v2556, 0
      %v2565 = vsel %vm511, %v2558, 0
      %2567 = vmatpush.xpose.msra.mxu0 0.0
      %2568 = vmatpush.xpose.msra.mxu0 0.0
      %2569 = vmatpush.xpose.msra.mxu0 0.0
      %2570 = vmatpush.xpose.msra.mxu0 0.0
      %2571 = vmatpush.xpose.msra.mxu0 0.0
      %2572 = vmatpush.xpose.msra.mxu0 0.0
      %2573 = vmatpush.xpose.msra.mxu0 0.0
      %2574 = vmatpush.xpose.msra.mxu0 0.0
      %2575 = vmatpush.xpose.msra.mxu0 0.0
      %2576 = vmatpush.xpose.msra.mxu0 0.0
      %2577 = vmatpush.xpose.msra.mxu0 0.0
      %2578 = vmatpush.xpose.msra.mxu0 0.0
      %2579 = vmatpush.xpose.msra.mxu0 0.0
      %2580 = vmatpush.xpose.msra.mxu0 0.0
      %2581 = vmatpush.xpose.msra.mxu0 %v2565
      %2582 = vmatpush.xpose.msra.mxu0 %v2563
      %2583 = vmatmul.f32.gmra.mxu0 %v2559
      %v2584 = vpop.f32.mrf.mxu0
      %v2585 = vadd.f32 0.0, %v2584
      %2586 = vmatmul.f32.gmra.mxu0 %v2561
      %v2587 = vpop.f32.mrf.mxu0
      %v2588 = vadd.f32 0.0, %v2587
      %2589 = vdwg.mxu0
      %2590 = vrot.lane.b32.xlu0 %v2513, 96
      %v2591 = vpop.permute.xlu0 %2590
      %2592 = vrot.lane.b32.xlu0 %v2515, 96
      %v2593 = vpop.permute.xlu0 %2592
      %v2594 = vsel %vm511, %v2499, 0
      %v2596 = vsel %vm511, %v2501, 0
      %v2598 = vsel %vm511, %v2591, 0
      %v2600 = vsel %vm511, %v2593, 0
      %2602 = vmatpush.xpose.msra.mxu0 0.0
      %2603 = vmatpush.xpose.msra.mxu0 0.0
      %2604 = vmatpush.xpose.msra.mxu0 0.0
      %2605 = vmatpush.xpose.msra.mxu0 0.0
      %2606 = vmatpush.xpose.msra.mxu0 0.0
      %2607 = vmatpush.xpose.msra.mxu0 0.0
      %2608 = vmatpush.xpose.msra.mxu0 0.0
      %2609 = vmatpush.xpose.msra.mxu0 0.0
      %2610 = vmatpush.xpose.msra.mxu0 0.0
      %2611 = vmatpush.xpose.msra.mxu0 0.0
      %2612 = vmatpush.xpose.msra.mxu0 0.0
      %2613 = vmatpush.xpose.msra.mxu0 0.0
      %2614 = vmatpush.xpose.msra.mxu0 0.0
      %2615 = vmatpush.xpose.msra.mxu0 0.0
      %2616 = vmatpush.xpose.msra.mxu0 %v2600
      %2617 = vmatpush.xpose.msra.mxu0 %v2598
      %2618 = vmatmul.f32.gmra.mxu0 %v2594
      %v2619 = vpop.f32.mrf.mxu0
      %v2620 = vadd.f32 0.0, %v2619
      %2621 = vmatmul.f32.gmra.mxu0 %v2596
      %v2622 = vpop.f32.mrf.mxu0
      %v2623 = vadd.f32 0.0, %v2622
      %2624 = vdwg.mxu0
      %2625 = vrot.lane.b32.xlu0 %v2517, 96
      %v2626 = vpop.permute.xlu0 %2625
      %2627 = vrot.lane.b32.xlu0 %v2519, 96
      %v2628 = vpop.permute.xlu0 %2627
      %v2629 = vsel %vm511, %v2503, 0
      %v2631 = vsel %vm511, %v2505, 0
      %v2633 = vsel %vm511, %v2626, 0
      %v2635 = vsel %vm511, %v2628, 0
      %2637 = vmatpush.xpose.msra.mxu0 0.0
      %2638 = vmatpush.xpose.msra.mxu0 0.0
      %2639 = vmatpush.xpose.msra.mxu0 0.0
      %2640 = vmatpush.xpose.msra.mxu0 0.0
      %2641 = vmatpush.xpose.msra.mxu0 0.0
      %2642 = vmatpush.xpose.msra.mxu0 0.0
      %2643 = vmatpush.xpose.msra.mxu0 0.0
      %2644 = vmatpush.xpose.msra.mxu0 0.0
      %2645 = vmatpush.xpose.msra.mxu0 0.0
      %2646 = vmatpush.xpose.msra.mxu0 0.0
      %2647 = vmatpush.xpose.msra.mxu0 0.0
      %2648 = vmatpush.xpose.msra.mxu0 0.0
      %2649 = vmatpush.xpose.msra.mxu0 0.0
      %2650 = vmatpush.xpose.msra.mxu0 0.0
      %2651 = vmatpush.xpose.msra.mxu0 %v2635
      %2652 = vmatpush.xpose.msra.mxu0 %v2633
      %2653 = vmatmul.f32.gmra.mxu0 %v2629
      %v2654 = vpop.f32.mrf.mxu0
      %v2655 = vadd.f32 0.0, %v2654
      %2656 = vmatmul.f32.gmra.mxu0 %v2631
      %v2657 = vpop.f32.mrf.mxu0
      %v2658 = vadd.f32 0.0, %v2657
      %2659 = vdwg.mxu0
      %v2660 = vmul.f32 %v2550, 0.35355338
      %v2661 = vmul.f32 %v2553, 0.35355338
      %v2662 = vmul.f32 %v2585, 0.35355338
      %v2663 = vmul.f32 %v2588, 0.35355338
      %v2664 = vmul.f32 %v2620, 0.35355338
      %v2665 = vmul.f32 %v2623, 0.35355338
      %v2666 = vmul.f32 %v2655, 0.35355338
      %v2667 = vmul.f32 %v2658, 0.35355338
      %v2668 = vsel %vm656, %v2660, -inf
      %2669 = vmax.xlane.f32.xlu0 %v2668
      %v2670 = vpop.xlane.xlu0 %2669
      %v2671 = vsel %vm656, %v2661, -inf
      %2672 = vmax.xlane.f32.xlu0 %v2671
      %v2673 = vpop.xlane.xlu0 %2672
      %v2674 = vsel %vm656, %v2662, -inf
      %2675 = vmax.xlane.f32.xlu0 %v2674
      %v2676 = vpop.xlane.xlu0 %2675
      %v2677 = vsel %vm656, %v2663, -inf
      %2678 = vmax.xlane.f32.xlu0 %v2677
      %v2679 = vpop.xlane.xlu0 %2678
      %v2680 = vsel %vm656, %v2664, -inf
      %2681 = vmax.xlane.f32.xlu0 %v2680
      %v2682 = vpop.xlane.xlu0 %2681
      %v2683 = vsel %vm656, %v2665, -inf
      %2684 = vmax.xlane.f32.xlu0 %v2683
      %v2685 = vpop.xlane.xlu0 %2684
      %v2686 = vsel %vm656, %v2666, -inf
      %2687 = vmax.xlane.f32.xlu0 %v2686
      %v2688 = vpop.xlane.xlu0 %2687
      %v2689 = vsel %vm656, %v2667, -inf
      %2690 = vmax.xlane.f32.xlu0 %v2689
      %v2691 = vpop.xlane.xlu0 %2690
      %v2692 = vsub.f32 %v2660, %v2670
      %v2693 = vsub.f32 %v2661, %v2673
      %v2694 = vsub.f32 %v2662, %v2676
      %v2695 = vsub.f32 %v2663, %v2679
      %v2696 = vsub.f32 %v2664, %v2682
      %v2697 = vsub.f32 %v2665, %v2685
      %v2698 = vsub.f32 %v2666, %v2688
      %v2699 = vsub.f32 %v2667, %v2691
      %v2700 = vmul.f32 %v2692, 1.442695
      %v2701 = vpow.pop %v2700
      %v2702 = vmul.f32 %v2693, 1.442695
      %v2703 = vpow.pop %v2702
      %v2704 = vmul.f32 %v2694, 1.442695
      %v2705 = vpow.pop %v2704
      %v2706 = vmul.f32 %v2695, 1.442695
      %v2707 = vpow.pop %v2706
      %v2708 = vmul.f32 %v2696, 1.442695
      %v2709 = vpow.pop %v2708
      %v2710 = vmul.f32 %v2697, 1.442695
      %v2711 = vpow.pop %v2710
      %v2712 = vmul.f32 %v2698, 1.442695
      %v2713 = vpow.pop %v2712
      %v2714 = vmul.f32 %v2699, 1.442695
      %v2715 = vpow.pop %v2714
      %v2716 = vsel %vm656, %v2701, 0.0
      %2717 = vadd.xlane.f32.xlu0 %v2716
      %v2718 = vpop.xlane.xlu0 %2717
      %v2719 = vsel %vm656, %v2703, 0.0
      %2720 = vadd.xlane.f32.xlu0 %v2719
      %v2721 = vpop.xlane.xlu0 %2720
      %v2722 = vsel %vm656, %v2705, 0.0
      %2723 = vadd.xlane.f32.xlu0 %v2722
      %v2724 = vpop.xlane.xlu0 %2723
      %v2725 = vsel %vm656, %v2707, 0.0
      %2726 = vadd.xlane.f32.xlu0 %v2725
      %v2727 = vpop.xlane.xlu0 %2726
      %v2728 = vsel %vm656, %v2709, 0.0
      %2729 = vadd.xlane.f32.xlu0 %v2728
      %v2730 = vpop.xlane.xlu0 %2729
      %v2731 = vsel %vm656, %v2711, 0.0
      %2732 = vadd.xlane.f32.xlu0 %v2731
      %v2733 = vpop.xlane.xlu0 %2732
      %v2734 = vsel %vm656, %v2713, 0.0
      %2735 = vadd.xlane.f32.xlu0 %v2734
      %v2736 = vpop.xlane.xlu0 %2735
      %v2737 = vsel %vm656, %v2715, 0.0
      %2738 = vadd.xlane.f32.xlu0 %v2737
      %v2739 = vpop.xlane.xlu0 %2738
      %v2740 = vrcp.pop %v2718
      %v2741 = vrcp.pop %v2721
      %v2742 = vrcp.pop %v2724
      %v2743 = vrcp.pop %v2727
      %v2744 = vrcp.pop %v2730
      %v2745 = vrcp.pop %v2733
      %v2746 = vrcp.pop %v2736
      %v2747 = vrcp.pop %v2739
      %v2748 = vmul.f32 %v2701, %v2740
      %v2749 = vmul.f32 %v2703, %v2741
      %v2750 = vmul.f32 %v2705, %v2742
      %v2751 = vmul.f32 %v2707, %v2743
      %v2752 = vmul.f32 %v2709, %v2744
      %v2753 = vmul.f32 %v2711, %v2745
      %v2754 = vmul.f32 %v2713, %v2746
      %v2755 = vmul.f32 %v2715, %v2747
      %2756 = vrot.lane.b32.xlu0 %v2487, 64
      %v2757 = vpop.permute.xlu0 %2756
      %2758 = vrot.lane.b32.xlu0 %v2490, 64
      %v2759 = vpop.permute.xlu0 %2758
      %v2763 = vsel %vm656, %v2748, 0
      %v2766 = vsel %vm656, %v2749, 0
      %2768 = vmatpush.msra.mxu0 0.0
      %2769 = vmatpush.msra.mxu0 0.0
      %2770 = vmatpush.msra.mxu0 0.0
      %2771 = vmatpush.msra.mxu0 0.0
      %2772 = vmatpush.msra.mxu0 0.0
      %2773 = vmatpush.msra.mxu0 0.0
      %2774 = vmatpush.msra.mxu0 0.0
      %2775 = vmatpush.msra.mxu0 0.0
      %2776 = vmatpush.msra.mxu0 0.0
      %2777 = vmatpush.msra.mxu0 0.0
      %2778 = vmatpush.msra.mxu0 0.0
      %2779 = vmatpush.msra.mxu0 0.0
      %2780 = vmatpush.msra.mxu0 0.0
      %2781 = vmatpush.msra.mxu0 0.0
      %2782 = vmatpush.msra.mxu0 %v2759
      %2783 = vmatpush.msra.mxu0 %v2757
      %2784 = vmatmul.f32.gmra.mxu0 %v2763
      %v2785 = vpop.f32.mrf.mxu0
      %v2786 = vadd.f32 0.0, %v2785
      %2787 = vmatmul.f32.gmra.mxu0 %v2766
      %v2788 = vpop.f32.mrf.mxu0
      %v2789 = vadd.f32 0.0, %v2788
      %2790 = vdwg.mxu0
      %2791 = vrot.lane.b32.xlu0 %v2509, 64
      %v2792 = vpop.permute.xlu0 %2791
      %2793 = vrot.lane.b32.xlu0 %v2511, 64
      %v2794 = vpop.permute.xlu0 %2793
      %v2798 = vsel %vm656, %v2750, 0
      %v2801 = vsel %vm656, %v2751, 0
      %2803 = vmatpush.msra.mxu0 0.0
      %2804 = vmatpush.msra.mxu0 0.0
      %2805 = vmatpush.msra.mxu0 0.0
      %2806 = vmatpush.msra.mxu0 0.0
      %2807 = vmatpush.msra.mxu0 0.0
      %2808 = vmatpush.msra.mxu0 0.0
      %2809 = vmatpush.msra.mxu0 0.0
      %2810 = vmatpush.msra.mxu0 0.0
      %2811 = vmatpush.msra.mxu0 0.0
      %2812 = vmatpush.msra.mxu0 0.0
      %2813 = vmatpush.msra.mxu0 0.0
      %2814 = vmatpush.msra.mxu0 0.0
      %2815 = vmatpush.msra.mxu0 0.0
      %2816 = vmatpush.msra.mxu0 0.0
      %2817 = vmatpush.msra.mxu0 %v2794
      %2818 = vmatpush.msra.mxu0 %v2792
      %2819 = vmatmul.f32.gmra.mxu0 %v2798
      %v2820 = vpop.f32.mrf.mxu0
      %v2821 = vadd.f32 0.0, %v2820
      %2822 = vmatmul.f32.gmra.mxu0 %v2801
      %v2823 = vpop.f32.mrf.mxu0
      %v2824 = vadd.f32 0.0, %v2823
      %2825 = vdwg.mxu0
      %2826 = vrot.lane.b32.xlu0 %v2513, 64
      %v2827 = vpop.permute.xlu0 %2826
      %2828 = vrot.lane.b32.xlu0 %v2515, 64
      %v2829 = vpop.permute.xlu0 %2828
      %v2833 = vsel %vm656, %v2752, 0
      %v2836 = vsel %vm656, %v2753, 0
      %2838 = vmatpush.msra.mxu0 0.0
      %2839 = vmatpush.msra.mxu0 0.0
      %2840 = vmatpush.msra.mxu0 0.0
      %2841 = vmatpush.msra.mxu0 0.0
      %2842 = vmatpush.msra.mxu0 0.0
      %2843 = vmatpush.msra.mxu0 0.0
      %2844 = vmatpush.msra.mxu0 0.0
      %2845 = vmatpush.msra.mxu0 0.0
      %2846 = vmatpush.msra.mxu0 0.0
      %2847 = vmatpush.msra.mxu0 0.0
      %2848 = vmatpush.msra.mxu0 0.0
      %2849 = vmatpush.msra.mxu0 0.0
      %2850 = vmatpush.msra.mxu0 0.0
      %2851 = vmatpush.msra.mxu0 0.0
      %2852 = vmatpush.msra.mxu0 %v2829
      %2853 = vmatpush.msra.mxu0 %v2827
      %2854 = vmatmul.f32.gmra.mxu0 %v2833
      %v2855 = vpop.f32.mrf.mxu0
      %v2856 = vadd.f32 0.0, %v2855
      %2857 = vmatmul.f32.gmra.mxu0 %v2836
      %v2858 = vpop.f32.mrf.mxu0
      %v2859 = vadd.f32 0.0, %v2858
      %2860 = vdwg.mxu0
      %2861 = vrot.lane.b32.xlu0 %v2517, 64
      %v2862 = vpop.permute.xlu0 %2861
      %2863 = vrot.lane.b32.xlu0 %v2519, 64
      %v2864 = vpop.permute.xlu0 %2863
      %v2868 = vsel %vm656, %v2754, 0
      %v2871 = vsel %vm656, %v2755, 0
      %2873 = vmatpush.msra.mxu0 0.0
      %2874 = vmatpush.msra.mxu0 0.0
      %2875 = vmatpush.msra.mxu0 0.0
      %2876 = vmatpush.msra.mxu0 0.0
      %2877 = vmatpush.msra.mxu0 0.0
      %2878 = vmatpush.msra.mxu0 0.0
      %2879 = vmatpush.msra.mxu0 0.0
      %2880 = vmatpush.msra.mxu0 0.0
      %2881 = vmatpush.msra.mxu0 0.0
      %2882 = vmatpush.msra.mxu0 0.0
      %2883 = vmatpush.msra.mxu0 0.0
      %2884 = vmatpush.msra.mxu0 0.0
      %2885 = vmatpush.msra.mxu0 0.0
      %2886 = vmatpush.msra.mxu0 0.0
      %2887 = vmatpush.msra.mxu0 %v2864
      %2888 = vmatpush.msra.mxu0 %v2862
      %2889 = vmatmul.f32.gmra.mxu0 %v2868
      %v2890 = vpop.f32.mrf.mxu0
      %v2891 = vadd.f32 0.0, %v2890
      %2892 = vmatmul.f32.gmra.mxu0 %v2871
      %v2893 = vpop.f32.mrf.mxu0
      %v2894 = vadd.f32 0.0, %v2893
      %2895 = vdwg.mxu0
      %2898 = vrot.lane.b32.xlu0 %v2821, 8
      %v2899 = vpop.permute.xlu0 %2898
      %2900 = vrot.lane.b32.xlu0 %v2824, 8
      %v2901 = vpop.permute.xlu0 %2900
      %2906 = vrot.lane.b32.xlu0 %v2856, 16
      %v2907 = vpop.permute.xlu0 %2906
      %2908 = vrot.lane.b32.xlu0 %v2859, 16
      %v2909 = vpop.permute.xlu0 %2908
      %2914 = vrot.lane.b32.xlu0 %v2891, 24
      %v2915 = vpop.permute.xlu0 %2914
      %2916 = vrot.lane.b32.xlu0 %v2894, 24
      %v2917 = vpop.permute.xlu0 %2916
      %v2920 = vsel %vm511, %v2786, %v2899
      %v2921 = vsel %vm511, %v2789, %v2901
      %v2922 = vsel %vm656, %v2920, %v2907
      %v2923 = vsel %vm656, %v2921, %v2909
      %v2924 = vsel %vm913, %v2922, %v2915
      %v2925 = vsel %vm913, %v2923, %v2917
      %v2926 = vperm.slane %v2432, 1
      %v2928 = vsel %vm463, %v2924, 0
      %v2931 = vsel %vm463, %v2925, 0
      %2933 = vmatpush.msra.mxu0 0.0
      %2934 = vmatpush.msra.mxu0 0.0
      %2935 = vmatpush.msra.mxu0 0.0
      %2936 = vmatpush.msra.mxu0 0.0
      %2937 = vmatpush.msra.mxu0 0.0
      %2938 = vmatpush.msra.mxu0 0.0
      %2939 = vmatpush.msra.mxu0 0.0
      %2940 = vmatpush.msra.mxu0 0.0
      %2941 = vmatpush.msra.mxu0 0.0
      %2942 = vmatpush.msra.mxu0 0.0
      %2943 = vmatpush.msra.mxu0 0.0
      %2944 = vmatpush.msra.mxu0 0.0
      %2945 = vmatpush.msra.mxu0 %v2430
      %2946 = vmatpush.msra.mxu0 %v2429
      %2947 = vmatpush.msra.mxu0 %v2428
      %2948 = vmatpush.msra.mxu0 %v2427
      %2949 = vmatmul.f32.gmra.mxu0 %v2928
      %v2950 = vpop.f32.mrf.mxu0
      %v2951 = vadd.f32 %v2926, %v2950
      %2952 = vmatmul.f32.gmra.mxu0 %v2931
      %v2953 = vpop.f32.mrf.mxu0
      %v2954 = vadd.f32 %v2926, %v2953
      %2955 = vdwg.mxu0
      %2958 = vrot.lane.b32.xlu0 %v2951, 32
      %v2959 = vpop.permute.xlu0 %2958
      %2960 = vrot.lane.b32.xlu0 %v2954, 32
      %v2961 = vpop.permute.xlu0 %2960
      %v2964 = vadd.f32 %v2424, %v2959
      %v2965 = vadd.f32 %v2425, %v2961
      %s2966 = scalar_lea.vmem %s5, 12
      %v2967 = vld [vmem:[%s2966] sm:$0x3]
      %v2968 = vsel %vm463, %v2964, 0.0
      %2969 = vadd.xlane.f32.xlu0 %v2968
      %v2970 = vpop.xlane.xlu0 %2969
      %v2971 = vsel %vm463, %v2965, 0.0
      %2972 = vadd.xlane.f32.xlu0 %v2971
      %v2973 = vpop.xlane.xlu0 %2972
      %v2974 = vmul.f32 %v2970, %v969
      %v2975 = vmul.f32 %v2973, %v969
      %v2976 = vsub.f32 %v2964, %v2974
      %v2977 = vsub.f32 %v2965, %v2975
      %v2978 = vmul.f32 %v2976, %v2976
      %v2979 = vmul.f32 %v2977, %v2977
      %v2980 = vsel %vm463, %v2978, 0.0
      %2981 = vadd.xlane.f32.xlu0 %v2980
      %v2982 = vpop.xlane.xlu0 %2981
      %v2983 = vsel %vm463, %v2979, 0.0
      %2984 = vadd.xlane.f32.xlu0 %v2983
      %v2985 = vpop.xlane.xlu0 %2984
      %v2986 = vmul.f32 %v2982, %v969
      %v2987 = vmul.f32 %v2985, %v969
      %v2988 = vadd.f32 %v2986, 1e-05
      %v2989 = vadd.f32 %v2987, 1e-05
      %v2990 = vrsqrt.pop %v2988
      %v2991 = vmul.f32 %v2990, %v2988
      %v2992 = vmul.f32 %v2991, %v2990
      %v2993 = vmul.f32 0.5, %v2992
      %v2994 = vsub.f32 1.5, %v2993
      %v2995 = vmul.f32 %v2990, %v2994
      %vm2996 = vweird.f32 %v2988
      %vm2997 = vweird.f32 %v2990
      %vm2998 = vmor %vm2996, %vm2997
      %v2999 = vsel %vm2998, %v2990, %v2995
      %v3000 = vrsqrt.pop %v2989
      %v3001 = vmul.f32 %v3000, %v2989
      %v3002 = vmul.f32 %v3001, %v3000
      %v3003 = vmul.f32 0.5, %v3002
      %v3004 = vsub.f32 1.5, %v3003
      %v3005 = vmul.f32 %v3000, %v3004
      %vm3006 = vweird.f32 %v2989
      %vm3007 = vweird.f32 %v3000
      %vm3008 = vmor %vm3006, %vm3007
      %v3009 = vsel %vm3008, %v3000, %v3005
      %v3010 = vmul.f32 %v2976, %v2999
      %v3011 = vmul.f32 %v2977, %v3009
      %v3012 = vperm.slane %v2967, 0
      %v3013 = vmul.f32 %v3010, %v3012
      %v3014 = vmul.f32 %v3011, %v3012
      %v3015 = vperm.slane %v2967, 1
      %v3016 = vadd.f32 %v3013, %v3015
      %v3017 = vadd.f32 %v3014, %v3015
      %s3018 = scalar_lea.vmem %s6, 64
      %v3019 = vld [vmem:[%s3018] sm:$0xff]
      %v3020 = vld [vmem:[%s3018 + $0x8] sm:$0xff]
      %v3021 = vld [vmem:[%s3018 + $0x10] sm:$0xff]
      %v3022 = vld [vmem:[%s3018 + $0x18] sm:$0xff]
      %s3023 = scalar_lea.vmem %s7, 128
      %v3024 = vld [vmem:[%s3023] sm:$0xff]
      %v3025 = vld [vmem:[%s3023 + $0x8] sm:$0xff]
      %v3026 = vld [vmem:[%s3023 + $0x10] sm:$0xff]
      %v3027 = vld [vmem:[%s3023 + $0x18] sm:$0xff]
      %v3028 = vld [vmem:[%s3023 + $0x20] sm:$0xff]
      %v3029 = vld [vmem:[%s3023 + $0x28] sm:$0xff]
      %v3030 = vld [vmem:[%s3023 + $0x30] sm:$0xff]
      %v3031 = vld [vmem:[%s3023 + $0x38] sm:$0xff]
      %s3032 = scalar_lea.vmem %s8, 4
      %v3033 = vld [vmem:[%s3032] sm:$0x3]
      %v3034 = vperm.slane %v3033, 0
      %v3036 = vsel %vm463, %v3016, 0
      %v3039 = vsel %vm463, %v3017, 0
      %3041 = vmatpush.msra.mxu0 0.0
      %3042 = vmatpush.msra.mxu0 0.0
      %3043 = vmatpush.msra.mxu0 0.0
      %3044 = vmatpush.msra.mxu0 0.0
      %3045 = vmatpush.msra.mxu0 0.0
      %3046 = vmatpush.msra.mxu0 0.0
      %3047 = vmatpush.msra.mxu0 0.0
      %3048 = vmatpush.msra.mxu0 0.0
      %3049 = vmatpush.msra.mxu0 0.0
      %3050 = vmatpush.msra.mxu0 0.0
      %3051 = vmatpush.msra.mxu0 0.0
      %3052 = vmatpush.msra.mxu0 0.0
      %3053 = vmatpush.msra.mxu0 %v3022
      %3054 = vmatpush.msra.mxu0 %v3021
      %3055 = vmatpush.msra.mxu0 %v3020
      %3056 = vmatpush.msra.mxu0 %v3019
      %3057 = vmatmul.f32.gmra.mxu0 %v3036
      %v3058 = vpop.f32.mrf.mxu0
      %v3059 = vadd.f32 %v3034, %v3058
      %3060 = vmatmul.f32.gmra.mxu0 %v3039
      %v3061 = vpop.f32.mrf.mxu0
      %v3062 = vadd.f32 %v3034, %v3061
      %3063 = vdwg.mxu0
      %v3064 = vmax.f32 %v3059, 0.0
      %v3065 = vmax.f32 %v3062, 0.0
      %v3066 = vperm.slane %v3033, 1
      %v3068 = vsel %vm1060, %v3064, 0
      %v3071 = vsel %vm1060, %v3065, 0
      %3073 = vmatpush.msra.mxu0 0.0
      %3074 = vmatpush.msra.mxu0 0.0
      %3075 = vmatpush.msra.mxu0 0.0
      %3076 = vmatpush.msra.mxu0 0.0
      %3077 = vmatpush.msra.mxu0 0.0
      %3078 = vmatpush.msra.mxu0 0.0
      %3079 = vmatpush.msra.mxu0 0.0
      %3080 = vmatpush.msra.mxu0 0.0
      %3081 = vmatpush.msra.mxu0 %v3031
      %3082 = vmatpush.msra.mxu0 %v3030
      %3083 = vmatpush.msra.mxu0 %v3029
      %3084 = vmatpush.msra.mxu0 %v3028
      %3085 = vmatpush.msra.mxu0 %v3027
      %3086 = vmatpush.msra.mxu0 %v3026
      %3087 = vmatpush.msra.mxu0 %v3025
      %3088 = vmatpush.msra.mxu0 %v3024
      %3089 = vmatmul.f32.gmra.mxu0 %v3068
      %v3090 = vpop.f32.mrf.mxu0
      %v3091 = vadd.f32 %v3066, %v3090
      %3092 = vmatmul.f32.gmra.mxu0 %v3071
      %v3093 = vpop.f32.mrf.mxu0
      %v3094 = vadd.f32 %v3066, %v3093
      %3095 = vdwg.mxu0
      %v3096 = vadd.f32 %v3016, %v3091
      %v3097 = vadd.f32 %v3017, %v3094
      %s3098 = scalar_lea.vmem %s5, 14
      %v3099 = vld [vmem:[%s3098] sm:$0x3]
      %v3100 = vsel %vm463, %v3096, 0.0
      %3101 = vadd.xlane.f32.xlu0 %v3100
      %v3102 = vpop.xlane.xlu0 %3101
      %v3103 = vsel %vm463, %v3097, 0.0
      %3104 = vadd.xlane.f32.xlu0 %v3103
      %v3105 = vpop.xlane.xlu0 %3104
      %v3106 = vmul.f32 %v3102, %v969
      %v3107 = vmul.f32 %v3105, %v969
      %v3108 = vsub.f32 %v3096, %v3106
      %v3109 = vsub.f32 %v3097, %v3107
      %v3110 = vmul.f32 %v3108, %v3108
      %v3111 = vmul.f32 %v3109, %v3109
      %v3112 = vsel %vm463, %v3110, 0.0
      %3113 = vadd.xlane.f32.xlu0 %v3112
      %v3114 = vpop.xlane.xlu0 %3113
      %v3115 = vsel %vm463, %v3111, 0.0
      %3116 = vadd.xlane.f32.xlu0 %v3115
      %v3117 = vpop.xlane.xlu0 %3116
      %v3118 = vmul.f32 %v3114, %v969
      %v3119 = vmul.f32 %v3117, %v969
      %v3120 = vadd.f32 %v3118, 1e-05
      %v3121 = vadd.f32 %v3119, 1e-05
      %v3122 = vrsqrt.pop %v3120
      %v3123 = vmul.f32 %v3122, %v3120
      %v3124 = vmul.f32 %v3123, %v3122
      %v3125 = vmul.f32 0.5, %v3124
      %v3126 = vsub.f32 1.5, %v3125
      %v3127 = vmul.f32 %v3122, %v3126
      %vm3128 = vweird.f32 %v3120
      %vm3129 = vweird.f32 %v3122
      %vm3130 = vmor %vm3128, %vm3129
      %v3131 = vsel %vm3130, %v3122, %v3127
      %v3132 = vrsqrt.pop %v3121
      %v3133 = vmul.f32 %v3132, %v3121
      %v3134 = vmul.f32 %v3133, %v3132
      %v3135 = vmul.f32 0.5, %v3134
      %v3136 = vsub.f32 1.5, %v3135
      %v3137 = vmul.f32 %v3132, %v3136
      %vm3138 = vweird.f32 %v3121
      %vm3139 = vweird.f32 %v3132
      %vm3140 = vmor %vm3138, %vm3139
      %v3141 = vsel %vm3140, %v3132, %v3137
      %v3142 = vmul.f32 %v3108, %v3131
      %v3143 = vmul.f32 %v3109, %v3141
      %v3144 = vperm.slane %v3099, 0
      %v3145 = vmul.f32 %v3142, %v3144
      %v3146 = vmul.f32 %v3143, %v3144
      %v3147 = vperm.slane %v3099, 1
      %v3148 = vadd.f32 %v3145, %v3147
      %v3149 = vadd.f32 %v3146, %v3147
      %s3150 = scalar_lea.vmem %s3, 128
      %v3151 = vld [vmem:[%s3150] sm:$0xff]
      %v3152 = vld [vmem:[%s3150 + $0x8] sm:$0xff]
      %v3153 = vld [vmem:[%s3150 + $0x10] sm:$0xff]
      %v3154 = vld [vmem:[%s3150 + $0x18] sm:$0xff]
      %s3155 = scalar_lea.vmem %s4, 8
      %v3156 = vld [vmem:[%s3155] sm:$0x3]
      %v3157 = vperm.slane %v3156, 0
      %v3159 = vsel %vm463, %v3148, 0
      %v3162 = vsel %vm463, %v3149, 0
      %3164 = vmatpush.msra.mxu0 0.0
      %3165 = vmatpush.msra.mxu0 0.0
      %3166 = vmatpush.msra.mxu0 0.0
      %3167 = vmatpush.msra.mxu0 0.0
      %3168 = vmatpush.msra.mxu0 0.0
      %3169 = vmatpush.msra.mxu0 0.0
      %3170 = vmatpush.msra.mxu0 0.0
      %3171 = vmatpush.msra.mxu0 0.0
      %3172 = vmatpush.msra.mxu0 0.0
      %3173 = vmatpush.msra.mxu0 0.0
      %3174 = vmatpush.msra.mxu0 0.0
      %3175 = vmatpush.msra.mxu0 0.0
      %3176 = vmatpush.msra.mxu0 %v3154
      %3177 = vmatpush.msra.mxu0 %v3153
      %3178 = vmatpush.msra.mxu0 %v3152
      %3179 = vmatpush.msra.mxu0 %v3151
      %3180 = vmatmul.f32.gmra.mxu0 %v3159
      %v3181 = vpop.f32.mrf.mxu0
      %v3182 = vadd.f32 %v3157, %v3181
      %3183 = vmatmul.f32.gmra.mxu0 %v3162
      %v3184 = vpop.f32.mrf.mxu0
      %v3185 = vadd.f32 %v3157, %v3184
      %3186 = vdwg.mxu0
      %3189 = vrot.lane.b32.xlu0 %v3182, 120
      %v3190 = vpop.permute.xlu0 %3189
      %3191 = vrot.lane.b32.xlu0 %v3185, 120
      %v3192 = vpop.permute.xlu0 %3191
      %3193 = vrot.lane.b32.xlu0 %v3182, 112
      %v3194 = vpop.permute.xlu0 %3193
      %3195 = vrot.lane.b32.xlu0 %v3185, 112
      %v3196 = vpop.permute.xlu0 %3195
      %3197 = vrot.lane.b32.xlu0 %v3182, 104
      %v3198 = vpop.permute.xlu0 %3197
      %3199 = vrot.lane.b32.xlu0 %v3185, 104
      %v3200 = vpop.permute.xlu0 %3199
      %3201 = vrot.lane.b32.xlu0 %v3182, 96
      %v3202 = vpop.permute.xlu0 %3201
      %3203 = vrot.lane.b32.xlu0 %v3185, 96
      %v3204 = vpop.permute.xlu0 %3203
      %v3205 = vsel %vm511, %v3182, 0
      %v3207 = vsel %vm511, %v3185, 0
      %v3209 = vsel %vm511, %v3202, 0
      %v3211 = vsel %vm511, %v3204, 0
      %3213 = vmatpush.xpose.msra.mxu0 0.0
      %3214 = vmatpush.xpose.msra.mxu0 0.0
      %3215 = vmatpush.xpose.msra.mxu0 0.0
      %3216 = vmatpush.xpose.msra.mxu0 0.0
      %3217 = vmatpush.xpose.msra.mxu0 0.0
      %3218 = vmatpush.xpose.msra.mxu0 0.0
      %3219 = vmatpush.xpose.msra.mxu0 0.0
      %3220 = vmatpush.xpose.msra.mxu0 0.0
      %3221 = vmatpush.xpose.msra.mxu0 0.0
      %3222 = vmatpush.xpose.msra.mxu0 0.0
      %3223 = vmatpush.xpose.msra.mxu0 0.0
      %3224 = vmatpush.xpose.msra.mxu0 0.0
      %3225 = vmatpush.xpose.msra.mxu0 0.0
      %3226 = vmatpush.xpose.msra.mxu0 0.0
      %3227 = vmatpush.xpose.msra.mxu0 %v3211
      %3228 = vmatpush.xpose.msra.mxu0 %v3209
      %3229 = vmatmul.f32.gmra.mxu0 %v3205
      %v3230 = vpop.f32.mrf.mxu0
      %v3231 = vadd.f32 0.0, %v3230
      %3232 = vmatmul.f32.gmra.mxu0 %v3207
      %v3233 = vpop.f32.mrf.mxu0
      %v3234 = vadd.f32 0.0, %v3233
      %3235 = vdwg.mxu0
      %3236 = vrot.lane.b32.xlu0 %v3190, 96
      %v3237 = vpop.permute.xlu0 %3236
      %3238 = vrot.lane.b32.xlu0 %v3192, 96
      %v3239 = vpop.permute.xlu0 %3238
      %v3240 = vsel %vm511, %v3190, 0
      %v3242 = vsel %vm511, %v3192, 0
      %v3244 = vsel %vm511, %v3237, 0
      %v3246 = vsel %vm511, %v3239, 0
      %3248 = vmatpush.xpose.msra.mxu0 0.0
      %3249 = vmatpush.xpose.msra.mxu0 0.0
      %3250 = vmatpush.xpose.msra.mxu0 0.0
      %3251 = vmatpush.xpose.msra.mxu0 0.0
      %3252 = vmatpush.xpose.msra.mxu0 0.0
      %3253 = vmatpush.xpose.msra.mxu0 0.0
      %3254 = vmatpush.xpose.msra.mxu0 0.0
      %3255 = vmatpush.xpose.msra.mxu0 0.0
      %3256 = vmatpush.xpose.msra.mxu0 0.0
      %3257 = vmatpush.xpose.msra.mxu0 0.0
      %3258 = vmatpush.xpose.msra.mxu0 0.0
      %3259 = vmatpush.xpose.msra.mxu0 0.0
      %3260 = vmatpush.xpose.msra.mxu0 0.0
      %3261 = vmatpush.xpose.msra.mxu0 0.0
      %3262 = vmatpush.xpose.msra.mxu0 %v3246
      %3263 = vmatpush.xpose.msra.mxu0 %v3244
      %3264 = vmatmul.f32.gmra.mxu0 %v3240
      %v3265 = vpop.f32.mrf.mxu0
      %v3266 = vadd.f32 0.0, %v3265
      %3267 = vmatmul.f32.gmra.mxu0 %v3242
      %v3268 = vpop.f32.mrf.mxu0
      %v3269 = vadd.f32 0.0, %v3268
      %3270 = vdwg.mxu0
      %3271 = vrot.lane.b32.xlu0 %v3194, 96
      %v3272 = vpop.permute.xlu0 %3271
      %3273 = vrot.lane.b32.xlu0 %v3196, 96
      %v3274 = vpop.permute.xlu0 %3273
      %v3275 = vsel %vm511, %v3194, 0
      %v3277 = vsel %vm511, %v3196, 0
      %v3279 = vsel %vm511, %v3272, 0
      %v3281 = vsel %vm511, %v3274, 0
      %3283 = vmatpush.xpose.msra.mxu0 0.0
      %3284 = vmatpush.xpose.msra.mxu0 0.0
      %3285 = vmatpush.xpose.msra.mxu0 0.0
      %3286 = vmatpush.xpose.msra.mxu0 0.0
      %3287 = vmatpush.xpose.msra.mxu0 0.0
      %3288 = vmatpush.xpose.msra.mxu0 0.0
      %3289 = vmatpush.xpose.msra.mxu0 0.0
      %3290 = vmatpush.xpose.msra.mxu0 0.0
      %3291 = vmatpush.xpose.msra.mxu0 0.0
      %3292 = vmatpush.xpose.msra.mxu0 0.0
      %3293 = vmatpush.xpose.msra.mxu0 0.0
      %3294 = vmatpush.xpose.msra.mxu0 0.0
      %3295 = vmatpush.xpose.msra.mxu0 0.0
      %3296 = vmatpush.xpose.msra.mxu0 0.0
      %3297 = vmatpush.xpose.msra.mxu0 %v3281
      %3298 = vmatpush.xpose.msra.mxu0 %v3279
      %3299 = vmatmul.f32.gmra.mxu0 %v3275
      %v3300 = vpop.f32.mrf.mxu0
      %v3301 = vadd.f32 0.0, %v3300
      %3302 = vmatmul.f32.gmra.mxu0 %v3277
      %v3303 = vpop.f32.mrf.mxu0
      %v3304 = vadd.f32 0.0, %v3303
      %3305 = vdwg.mxu0
      %3306 = vrot.lane.b32.xlu0 %v3198, 96
      %v3307 = vpop.permute.xlu0 %3306
      %3308 = vrot.lane.b32.xlu0 %v3200, 96
      %v3309 = vpop.permute.xlu0 %3308
      %v3310 = vsel %vm511, %v3198, 0
      %v3312 = vsel %vm511, %v3200, 0
      %v3314 = vsel %vm511, %v3307, 0
      %v3316 = vsel %vm511, %v3309, 0
      %3318 = vmatpush.xpose.msra.mxu0 0.0
      %3319 = vmatpush.xpose.msra.mxu0 0.0
      %3320 = vmatpush.xpose.msra.mxu0 0.0
      %3321 = vmatpush.xpose.msra.mxu0 0.0
      %3322 = vmatpush.xpose.msra.mxu0 0.0
      %3323 = vmatpush.xpose.msra.mxu0 0.0
      %3324 = vmatpush.xpose.msra.mxu0 0.0
      %3325 = vmatpush.xpose.msra.mxu0 0.0
      %3326 = vmatpush.xpose.msra.mxu0 0.0
      %3327 = vmatpush.xpose.msra.mxu0 0.0
      %3328 = vmatpush.xpose.msra.mxu0 0.0
      %3329 = vmatpush.xpose.msra.mxu0 0.0
      %3330 = vmatpush.xpose.msra.mxu0 0.0
      %3331 = vmatpush.xpose.msra.mxu0 0.0
      %3332 = vmatpush.xpose.msra.mxu0 %v3316
      %3333 = vmatpush.xpose.msra.mxu0 %v3314
      %3334 = vmatmul.f32.gmra.mxu0 %v3310
      %v3335 = vpop.f32.mrf.mxu0
      %v3336 = vadd.f32 0.0, %v3335
      %3337 = vmatmul.f32.gmra.mxu0 %v3312
      %v3338 = vpop.f32.mrf.mxu0
      %v3339 = vadd.f32 0.0, %v3338
      %3340 = vdwg.mxu0
      %v3341 = vmul.f32 %v3231, 0.35355338
      %v3342 = vmul.f32 %v3234, 0.35355338
      %v3343 = vmul.f32 %v3266, 0.35355338
      %v3344 = vmul.f32 %v3269, 0.35355338
      %v3345 = vmul.f32 %v3301, 0.35355338
      %v3346 = vmul.f32 %v3304, 0.35355338
      %v3347 = vmul.f32 %v3336, 0.35355338
      %v3348 = vmul.f32 %v3339, 0.35355338
      %v3349 = vsel %vm656, %v3341, -inf
      %3350 = vmax.xlane.f32.xlu0 %v3349
      %v3351 = vpop.xlane.xlu0 %3350
      %v3352 = vsel %vm656, %v3342, -inf
      %3353 = vmax.xlane.f32.xlu0 %v3352
      %v3354 = vpop.xlane.xlu0 %3353
      %v3355 = vsel %vm656, %v3343, -inf
      %3356 = vmax.xlane.f32.xlu0 %v3355
      %v3357 = vpop.xlane.xlu0 %3356
      %v3358 = vsel %vm656, %v3344, -inf
      %3359 = vmax.xlane.f32.xlu0 %v3358
      %v3360 = vpop.xlane.xlu0 %3359
      %v3361 = vsel %vm656, %v3345, -inf
      %3362 = vmax.xlane.f32.xlu0 %v3361
      %v3363 = vpop.xlane.xlu0 %3362
      %v3364 = vsel %vm656, %v3346, -inf
      %3365 = vmax.xlane.f32.xlu0 %v3364
      %v3366 = vpop.xlane.xlu0 %3365
      %v3367 = vsel %vm656, %v3347, -inf
      %3368 = vmax.xlane.f32.xlu0 %v3367
      %v3369 = vpop.xlane.xlu0 %3368
      %v3370 = vsel %vm656, %v3348, -inf
      %3371 = vmax.xlane.f32.xlu0 %v3370
      %v3372 = vpop.xlane.xlu0 %3371
      %v3373 = vsub.f32 %v3341, %v3351
      %v3374 = vsub.f32 %v3342, %v3354
      %v3375 = vsub.f32 %v3343, %v3357
      %v3376 = vsub.f32 %v3344, %v3360
      %v3377 = vsub.f32 %v3345, %v3363
      %v3378 = vsub.f32 %v3346, %v3366
      %v3379 = vsub.f32 %v3347, %v3369
      %v3380 = vsub.f32 %v3348, %v3372
      %v3381 = vmul.f32 %v3373, 1.442695
      %v3382 = vpow.pop %v3381
      %v3383 = vmul.f32 %v3374, 1.442695
      %v3384 = vpow.pop %v3383
      %v3385 = vmul.f32 %v3375, 1.442695
      %v3386 = vpow.pop %v3385
      %v3387 = vmul.f32 %v3376, 1.442695
      %v3388 = vpow.pop %v3387
      %v3389 = vmul.f32 %v3377, 1.442695
      %v3390 = vpow.pop %v3389
      %v3391 = vmul.f32 %v3378, 1.442695
      %v3392 = vpow.pop %v3391
      %v3393 = vmul.f32 %v3379, 1.442695
      %v3394 = vpow.pop %v3393
      %v3395 = vmul.f32 %v3380, 1.442695
      %v3396 = vpow.pop %v3395
      %v3397 = vsel %vm656, %v3382, 0.0
      %3398 = vadd.xlane.f32.xlu0 %v3397
      %v3399 = vpop.xlane.xlu0 %3398
      %v3400 = vsel %vm656, %v3384, 0.0
      %3401 = vadd.xlane.f32.xlu0 %v3400
      %v3402 = vpop.xlane.xlu0 %3401
      %v3403 = vsel %vm656, %v3386, 0.0
      %3404 = vadd.xlane.f32.xlu0 %v3403
      %v3405 = vpop.xlane.xlu0 %3404
      %v3406 = vsel %vm656, %v3388, 0.0
      %3407 = vadd.xlane.f32.xlu0 %v3406
      %v3408 = vpop.xlane.xlu0 %3407
      %v3409 = vsel %vm656, %v3390, 0.0
      %3410 = vadd.xlane.f32.xlu0 %v3409
      %v3411 = vpop.xlane.xlu0 %3410
      %v3412 = vsel %vm656, %v3392, 0.0
      %3413 = vadd.xlane.f32.xlu0 %v3412
      %v3414 = vpop.xlane.xlu0 %3413
      %v3415 = vsel %vm656, %v3394, 0.0
      %3416 = vadd.xlane.f32.xlu0 %v3415
      %v3417 = vpop.xlane.xlu0 %3416
      %v3418 = vsel %vm656, %v3396, 0.0
      %3419 = vadd.xlane.f32.xlu0 %v3418
      %v3420 = vpop.xlane.xlu0 %3419
      %v3421 = vrcp.pop %v3399
      %v3422 = vrcp.pop %v3402
      %v3423 = vrcp.pop %v3405
      %v3424 = vrcp.pop %v3408
      %v3425 = vrcp.pop %v3411
      %v3426 = vrcp.pop %v3414
      %v3427 = vrcp.pop %v3417
      %v3428 = vrcp.pop %v3420
      %v3429 = vmul.f32 %v3382, %v3421
      %v3430 = vmul.f32 %v3384, %v3422
      %v3431 = vmul.f32 %v3386, %v3423
      %v3432 = vmul.f32 %v3388, %v3424
      %v3433 = vmul.f32 %v3390, %v3425
      %v3434 = vmul.f32 %v3392, %v3426
      %v3435 = vmul.f32 %v3394, %v3427
      %v3436 = vmul.f32 %v3396, %v3428
      %3437 = vrot.lane.b32.xlu0 %v3182, 64
      %v3438 = vpop.permute.xlu0 %3437
      %3439 = vrot.lane.b32.xlu0 %v3185, 64
      %v3440 = vpop.permute.xlu0 %3439
      %v3444 = vsel %vm656, %v3429, 0
      %v3447 = vsel %vm656, %v3430, 0
      %3449 = vmatpush.msra.mxu0 0.0
      %3450 = vmatpush.msra.mxu0 0.0
      %3451 = vmatpush.msra.mxu0 0.0
      %3452 = vmatpush.msra.mxu0 0.0
      %3453 = vmatpush.msra.mxu0 0.0
      %3454 = vmatpush.msra.mxu0 0.0
      %3455 = vmatpush.msra.mxu0 0.0
      %3456 = vmatpush.msra.mxu0 0.0
      %3457 = vmatpush.msra.mxu0 0.0
      %3458 = vmatpush.msra.mxu0 0.0
      %3459 = vmatpush.msra.mxu0 0.0
      %3460 = vmatpush.msra.mxu0 0.0
      %3461 = vmatpush.msra.mxu0 0.0
      %3462 = vmatpush.msra.mxu0 0.0
      %3463 = vmatpush.msra.mxu0 %v3440
      %3464 = vmatpush.msra.mxu0 %v3438
      %3465 = vmatmul.f32.gmra.mxu0 %v3444
      %v3466 = vpop.f32.mrf.mxu0
      %v3467 = vadd.f32 0.0, %v3466
      %3468 = vmatmul.f32.gmra.mxu0 %v3447
      %v3469 = vpop.f32.mrf.mxu0
      %v3470 = vadd.f32 0.0, %v3469
      %3471 = vdwg.mxu0
      %3472 = vrot.lane.b32.xlu0 %v3190, 64
      %v3473 = vpop.permute.xlu0 %3472
      %3474 = vrot.lane.b32.xlu0 %v3192, 64
      %v3475 = vpop.permute.xlu0 %3474
      %v3479 = vsel %vm656, %v3431, 0
      %v3482 = vsel %vm656, %v3432, 0
      %3484 = vmatpush.msra.mxu0 0.0
      %3485 = vmatpush.msra.mxu0 0.0
      %3486 = vmatpush.msra.mxu0 0.0
      %3487 = vmatpush.msra.mxu0 0.0
      %3488 = vmatpush.msra.mxu0 0.0
      %3489 = vmatpush.msra.mxu0 0.0
      %3490 = vmatpush.msra.mxu0 0.0
      %3491 = vmatpush.msra.mxu0 0.0
      %3492 = vmatpush.msra.mxu0 0.0
      %3493 = vmatpush.msra.mxu0 0.0
      %3494 = vmatpush.msra.mxu0 0.0
      %3495 = vmatpush.msra.mxu0 0.0
      %3496 = vmatpush.msra.mxu0 0.0
      %3497 = vmatpush.msra.mxu0 0.0
      %3498 = vmatpush.msra.mxu0 %v3475
      %3499 = vmatpush.msra.mxu0 %v3473
      %3500 = vmatmul.f32.gmra.mxu0 %v3479
      %v3501 = vpop.f32.mrf.mxu0
      %v3502 = vadd.f32 0.0, %v3501
      %3503 = vmatmul.f32.gmra.mxu0 %v3482
      %v3504 = vpop.f32.mrf.mxu0
      %v3505 = vadd.f32 0.0, %v3504
      %3506 = vdwg.mxu0
      %3507 = vrot.lane.b32.xlu0 %v3194, 64
      %v3508 = vpop.permute.xlu0 %3507
      %3509 = vrot.lane.b32.xlu0 %v3196, 64
      %v3510 = vpop.permute.xlu0 %3509
      %v3514 = vsel %vm656, %v3433, 0
      %v3517 = vsel %vm656, %v3434, 0
      %3519 = vmatpush.msra.mxu0 0.0
      %3520 = vmatpush.msra.mxu0 0.0
      %3521 = vmatpush.msra.mxu0 0.0
      %3522 = vmatpush.msra.mxu0 0.0
      %3523 = vmatpush.msra.mxu0 0.0
      %3524 = vmatpush.msra.mxu0 0.0
      %3525 = vmatpush.msra.mxu0 0.0
      %3526 = vmatpush.msra.mxu0 0.0
      %3527 = vmatpush.msra.mxu0 0.0
      %3528 = vmatpush.msra.mxu0 0.0
      %3529 = vmatpush.msra.mxu0 0.0
      %3530 = vmatpush.msra.mxu0 0.0
      %3531 = vmatpush.msra.mxu0 0.0
      %3532 = vmatpush.msra.mxu0 0.0
      %3533 = vmatpush.msra.mxu0 %v3510
      %3534 = vmatpush.msra.mxu0 %v3508
      %3535 = vmatmul.f32.gmra.mxu0 %v3514
      %v3536 = vpop.f32.mrf.mxu0
      %v3537 = vadd.f32 0.0, %v3536
      %3538 = vmatmul.f32.gmra.mxu0 %v3517
      %v3539 = vpop.f32.mrf.mxu0
      %v3540 = vadd.f32 0.0, %v3539
      %3541 = vdwg.mxu0
      %3542 = vrot.lane.b32.xlu0 %v3198, 64
      %v3543 = vpop.permute.xlu0 %3542
      %3544 = vrot.lane.b32.xlu0 %v3200, 64
      %v3545 = vpop.permute.xlu0 %3544
      %v3549 = vsel %vm656, %v3435, 0
      %v3552 = vsel %vm656, %v3436, 0
      %3554 = vmatpush.msra.mxu0 0.0
      %3555 = vmatpush.msra.mxu0 0.0
      %3556 = vmatpush.msra.mxu0 0.0
      %3557 = vmatpush.msra.mxu0 0.0
      %3558 = vmatpush.msra.mxu0 0.0
      %3559 = vmatpush.msra.mxu0 0.0
      %3560 = vmatpush.msra.mxu0 0.0
      %3561 = vmatpush.msra.mxu0 0.0
      %3562 = vmatpush.msra.mxu0 0.0
      %3563 = vmatpush.msra.mxu0 0.0
      %3564 = vmatpush.msra.mxu0 0.0
      %3565 = vmatpush.msra.mxu0 0.0
      %3566 = vmatpush.msra.mxu0 0.0
      %3567 = vmatpush.msra.mxu0 0.0
      %3568 = vmatpush.msra.mxu0 %v3545
      %3569 = vmatpush.msra.mxu0 %v3543
      %3570 = vmatmul.f32.gmra.mxu0 %v3549
      %v3571 = vpop.f32.mrf.mxu0
      %v3572 = vadd.f32 0.0, %v3571
      %3573 = vmatmul.f32.gmra.mxu0 %v3552
      %v3574 = vpop.f32.mrf.mxu0
      %v3575 = vadd.f32 0.0, %v3574
      %3576 = vdwg.mxu0
      %3579 = vrot.lane.b32.xlu0 %v3502, 8
      %v3580 = vpop.permute.xlu0 %3579
      %3581 = vrot.lane.b32.xlu0 %v3505, 8
      %v3582 = vpop.permute.xlu0 %3581
      %3587 = vrot.lane.b32.xlu0 %v3537, 16
      %v3588 = vpop.permute.xlu0 %3587
      %3589 = vrot.lane.b32.xlu0 %v3540, 16
      %v3590 = vpop.permute.xlu0 %3589
      %3595 = vrot.lane.b32.xlu0 %v3572, 24
      %v3596 = vpop.permute.xlu0 %3595
      %3597 = vrot.lane.b32.xlu0 %v3575, 24
      %v3598 = vpop.permute.xlu0 %3597
      %v3601 = vsel %vm511, %v3467, %v3580
      %v3602 = vsel %vm511, %v3470, %v3582
      %v3603 = vsel %vm656, %v3601, %v3588
      %v3604 = vsel %vm656, %v3602, %v3590
      %v3605 = vsel %vm913, %v3603, %v3596
      %v3606 = vsel %vm913, %v3604, %v3598
      %v3607 = vperm.slane %v3156, 1
      %v3609 = vsel %vm463, %v3605, 0
      %v3612 = vsel %vm463, %v3606, 0
      %3614 = vmatpush.msra.mxu0 0.0
      %3615 = vmatpush.msra.mxu0 0.0
      %3616 = vmatpush.msra.mxu0 0.0
      %3617 = vmatpush.msra.mxu0 0.0
      %3618 = vmatpush.msra.mxu0 0.0
      %3619 = vmatpush.msra.mxu0 0.0
      %3620 = vmatpush.msra.mxu0 0.0
      %3621 = vmatpush.msra.mxu0 0.0
      %3622 = vmatpush.msra.mxu0 0.0
      %3623 = vmatpush.msra.mxu0 0.0
      %3624 = vmatpush.msra.mxu0 0.0
      %3625 = vmatpush.msra.mxu0 0.0
      %3626 = vmatpush.msra.mxu0 %v3154
      %3627 = vmatpush.msra.mxu0 %v3153
      %3628 = vmatpush.msra.mxu0 %v3152
      %3629 = vmatpush.msra.mxu0 %v3151
      %3630 = vmatmul.f32.gmra.mxu0 %v3609
      %v3631 = vpop.f32.mrf.mxu0
      %v3632 = vadd.f32 %v3607, %v3631
      %3633 = vmatmul.f32.gmra.mxu0 %v3612
      %v3634 = vpop.f32.mrf.mxu0
      %v3635 = vadd.f32 %v3607, %v3634
      %3636 = vdwg.mxu0
      %3639 = vrot.lane.b32.xlu0 %v3632, 32
      %v3640 = vpop.permute.xlu0 %3639
      %3641 = vrot.lane.b32.xlu0 %v3635, 32
      %v3642 = vpop.permute.xlu0 %3641
      %v3645 = vadd.f32 %v3148, %v3640
      %v3646 = vadd.f32 %v3149, %v3642
      %s3647 = scalar_lea.vmem %s5, 16
      %v3648 = vld [vmem:[%s3647] sm:$0x3]
      %v3649 = vsel %vm463, %v3645, 0.0
      %3650 = vadd.xlane.f32.xlu0 %v3649
      %v3651 = vpop.xlane.xlu0 %3650
      %v3652 = vsel %vm463, %v3646, 0.0
      %3653 = vadd.xlane.f32.xlu0 %v3652
      %v3654 = vpop.xlane.xlu0 %3653
      %v3655 = vmul.f32 %v3651, %v969
      %v3656 = vmul.f32 %v3654, %v969
      %v3657 = vsub.f32 %v3645, %v3655
      %v3658 = vsub.f32 %v3646, %v3656
      %v3659 = vmul.f32 %v3657, %v3657
      %v3660 = vmul.f32 %v3658, %v3658
      %v3661 = vsel %vm463, %v3659, 0.0
      %3662 = vadd.xlane.f32.xlu0 %v3661
      %v3663 = vpop.xlane.xlu0 %3662
      %v3664 = vsel %vm463, %v3660, 0.0
      %3665 = vadd.xlane.f32.xlu0 %v3664
      %v3666 = vpop.xlane.xlu0 %3665
      %v3667 = vmul.f32 %v3663, %v969
      %v3668 = vmul.f32 %v3666, %v969
      %v3669 = vadd.f32 %v3667, 1e-05
      %v3670 = vadd.f32 %v3668, 1e-05
      %v3671 = vrsqrt.pop %v3669
      %v3672 = vmul.f32 %v3671, %v3669
      %v3673 = vmul.f32 %v3672, %v3671
      %v3674 = vmul.f32 0.5, %v3673
      %v3675 = vsub.f32 1.5, %v3674
      %v3676 = vmul.f32 %v3671, %v3675
      %vm3677 = vweird.f32 %v3669
      %vm3678 = vweird.f32 %v3671
      %vm3679 = vmor %vm3677, %vm3678
      %v3680 = vsel %vm3679, %v3671, %v3676
      %v3681 = vrsqrt.pop %v3670
      %v3682 = vmul.f32 %v3681, %v3670
      %v3683 = vmul.f32 %v3682, %v3681
      %v3684 = vmul.f32 0.5, %v3683
      %v3685 = vsub.f32 1.5, %v3684
      %v3686 = vmul.f32 %v3681, %v3685
      %vm3687 = vweird.f32 %v3670
      %vm3688 = vweird.f32 %v3681
      %vm3689 = vmor %vm3687, %vm3688
      %v3690 = vsel %vm3689, %v3681, %v3686
      %v3691 = vmul.f32 %v3657, %v3680
      %v3692 = vmul.f32 %v3658, %v3690
      %v3693 = vperm.slane %v3648, 0
      %v3694 = vmul.f32 %v3691, %v3693
      %v3695 = vmul.f32 %v3692, %v3693
      %v3696 = vperm.slane %v3648, 1
      %v3697 = vadd.f32 %v3694, %v3696
      %v3698 = vadd.f32 %v3695, %v3696
      %s3699 = scalar_lea.vmem %s3, 160
      %v3700 = vld [vmem:[%s3699] sm:$0xff]
      %v3701 = vld [vmem:[%s3699 + $0x8] sm:$0xff]
      %v3702 = vld [vmem:[%s3699 + $0x10] sm:$0xff]
      %v3703 = vld [vmem:[%s3699 + $0x18] sm:$0xff]
      %s3704 = scalar_lea.vmem %s4, 10
      %v3705 = vld [vmem:[%s3704] sm:$0x3]
      %v3706 = vperm.slane %v3705, 0
      %v3708 = vsel %vm463, %v3697, 0
      %v3711 = vsel %vm463, %v3698, 0
      %3713 = vmatpush.msra.mxu0 0.0
      %3714 = vmatpush.msra.mxu0 0.0
      %3715 = vmatpush.msra.mxu0 0.0
      %3716 = vmatpush.msra.mxu0 0.0
      %3717 = vmatpush.msra.mxu0 0.0
      %3718 = vmatpush.msra.mxu0 0.0
      %3719 = vmatpush.msra.mxu0 0.0
      %3720 = vmatpush.msra.mxu0 0.0
      %3721 = vmatpush.msra.mxu0 0.0
      %3722 = vmatpush.msra.mxu0 0.0
      %3723 = vmatpush.msra.mxu0 0.0
      %3724 = vmatpush.msra.mxu0 0.0
      %3725 = vmatpush.msra.mxu0 %v3703
      %3726 = vmatpush.msra.mxu0 %v3702
      %3727 = vmatpush.msra.mxu0 %v3701
      %3728 = vmatpush.msra.mxu0 %v3700
      %3729 = vmatmul.f32.gmra.mxu0 %v3708
      %v3730 = vpop.f32.mrf.mxu0
      %v3731 = vadd.f32 %v3706, %v3730
      %3732 = vmatmul.f32.gmra.mxu0 %v3711
      %v3733 = vpop.f32.mrf.mxu0
      %v3734 = vadd.f32 %v3706, %v3733
      %3735 = vdwg.mxu0
      %3736 = vmatpush.msra.mxu0 0.0
      %3737 = vmatpush.msra.mxu0 0.0
      %3738 = vmatpush.msra.mxu0 0.0
      %3739 = vmatpush.msra.mxu0 0.0
      %3740 = vmatpush.msra.mxu0 0.0
      %3741 = vmatpush.msra.mxu0 0.0
      %3742 = vmatpush.msra.mxu0 0.0
      %3743 = vmatpush.msra.mxu0 0.0
      %3744 = vmatpush.msra.mxu0 0.0
      %3745 = vmatpush.msra.mxu0 0.0
      %3746 = vmatpush.msra.mxu0 0.0
      %3747 = vmatpush.msra.mxu0 0.0
      %3748 = vmatpush.msra.mxu0 %v3703
      %3749 = vmatpush.msra.mxu0 %v3702
      %3750 = vmatpush.msra.mxu0 %v3701
      %3751 = vmatpush.msra.mxu0 %v3700
      %3752 = vmatmul.f32.gmra.mxu0 %v2464
      %v3753 = vpop.f32.mrf.mxu0
      %v3754 = vadd.f32 %v3706, %v3753
      %3755 = vmatmul.f32.gmra.mxu0 %v2467
      %v3756 = vpop.f32.mrf.mxu0
      %v3757 = vadd.f32 %v3706, %v3756
      %3758 = vdwg.mxu0
      %3761 = vrot.lane.b32.xlu0 %v3731, 120
      %v3762 = vpop.permute.xlu0 %3761
      %3763 = vrot.lane.b32.xlu0 %v3734, 120
      %v3764 = vpop.permute.xlu0 %3763
      %3765 = vrot.lane.b32.xlu0 %v3731, 112
      %v3766 = vpop.permute.xlu0 %3765
      %3767 = vrot.lane.b32.xlu0 %v3734, 112
      %v3768 = vpop.permute.xlu0 %3767
      %3769 = vrot.lane.b32.xlu0 %v3731, 104
      %v3770 = vpop.permute.xlu0 %3769
      %3771 = vrot.lane.b32.xlu0 %v3734, 104
      %v3772 = vpop.permute.xlu0 %3771
      %3775 = vrot.lane.b32.xlu0 %v3754, 120
      %v3776 = vpop.permute.xlu0 %3775
      %3777 = vrot.lane.b32.xlu0 %v3757, 120
      %v3778 = vpop.permute.xlu0 %3777
      %3779 = vrot.lane.b32.xlu0 %v3754, 112
      %v3780 = vpop.permute.xlu0 %3779
      %3781 = vrot.lane.b32.xlu0 %v3757, 112
      %v3782 = vpop.permute.xlu0 %3781
      %3783 = vrot.lane.b32.xlu0 %v3754, 104
      %v3784 = vpop.permute.xlu0 %3783
      %3785 = vrot.lane.b32.xlu0 %v3757, 104
      %v3786 = vpop.permute.xlu0 %3785
      %3787 = vrot.lane.b32.xlu0 %v3754, 96
      %v3788 = vpop.permute.xlu0 %3787
      %3789 = vrot.lane.b32.xlu0 %v3757, 96
      %v3790 = vpop.permute.xlu0 %3789
      %v3791 = vsel %vm511, %v3731, 0
      %v3793 = vsel %vm511, %v3734, 0
      %v3795 = vsel %vm511, %v3788, 0
      %v3797 = vsel %vm511, %v3790, 0
      %3799 = vmatpush.xpose.msra.mxu0 0.0
      %3800 = vmatpush.xpose.msra.mxu0 0.0
      %3801 = vmatpush.xpose.msra.mxu0 0.0
      %3802 = vmatpush.xpose.msra.mxu0 0.0
      %3803 = vmatpush.xpose.msra.mxu0 0.0
      %3804 = vmatpush.xpose.msra.mxu0 0.0
      %3805 = vmatpush.xpose.msra.mxu0 0.0
      %3806 = vmatpush.xpose.msra.mxu0 0.0
      %3807 = vmatpush.xpose.msra.mxu0 0.0
      %3808 = vmatpush.xpose.msra.mxu0 0.0
      %3809 = vmatpush.xpose.msra.mxu0 0.0
      %3810 = vmatpush.xpose.msra.mxu0 0.0
      %3811 = vmatpush.xpose.msra.mxu0 0.0
      %3812 = vmatpush.xpose.msra.mxu0 0.0
      %3813 = vmatpush.xpose.msra.mxu0 %v3797
      %3814 = vmatpush.xpose.msra.mxu0 %v3795
      %3815 = vmatmul.f32.gmra.mxu0 %v3791
      %v3816 = vpop.f32.mrf.mxu0
      %v3817 = vadd.f32 0.0, %v3816
      %3818 = vmatmul.f32.gmra.mxu0 %v3793
      %v3819 = vpop.f32.mrf.mxu0
      %v3820 = vadd.f32 0.0, %v3819
      %3821 = vdwg.mxu0
      %3822 = vrot.lane.b32.xlu0 %v3776, 96
      %v3823 = vpop.permute.xlu0 %3822
      %3824 = vrot.lane.b32.xlu0 %v3778, 96
      %v3825 = vpop.permute.xlu0 %3824
      %v3826 = vsel %vm511, %v3762, 0
      %v3828 = vsel %vm511, %v3764, 0
      %v3830 = vsel %vm511, %v3823, 0
      %v3832 = vsel %vm511, %v3825, 0
      %3834 = vmatpush.xpose.msra.mxu0 0.0
      %3835 = vmatpush.xpose.msra.mxu0 0.0
      %3836 = vmatpush.xpose.msra.mxu0 0.0
      %3837 = vmatpush.xpose.msra.mxu0 0.0
      %3838 = vmatpush.xpose.msra.mxu0 0.0
      %3839 = vmatpush.xpose.msra.mxu0 0.0
      %3840 = vmatpush.xpose.msra.mxu0 0.0
      %3841 = vmatpush.xpose.msra.mxu0 0.0
      %3842 = vmatpush.xpose.msra.mxu0 0.0
      %3843 = vmatpush.xpose.msra.mxu0 0.0
      %3844 = vmatpush.xpose.msra.mxu0 0.0
      %3845 = vmatpush.xpose.msra.mxu0 0.0
      %3846 = vmatpush.xpose.msra.mxu0 0.0
      %3847 = vmatpush.xpose.msra.mxu0 0.0
      %3848 = vmatpush.xpose.msra.mxu0 %v3832
      %3849 = vmatpush.xpose.msra.mxu0 %v3830
      %3850 = vmatmul.f32.gmra.mxu0 %v3826
      %v3851 = vpop.f32.mrf.mxu0
      %v3852 = vadd.f32 0.0, %v3851
      %3853 = vmatmul.f32.gmra.mxu0 %v3828
      %v3854 = vpop.f32.mrf.mxu0
      %v3855 = vadd.f32 0.0, %v3854
      %3856 = vdwg.mxu0
      %3857 = vrot.lane.b32.xlu0 %v3780, 96
      %v3858 = vpop.permute.xlu0 %3857
      %3859 = vrot.lane.b32.xlu0 %v3782, 96
      %v3860 = vpop.permute.xlu0 %3859
      %v3861 = vsel %vm511, %v3766, 0
      %v3863 = vsel %vm511, %v3768, 0
      %v3865 = vsel %vm511, %v3858, 0
      %v3867 = vsel %vm511, %v3860, 0
      %3869 = vmatpush.xpose.msra.mxu0 0.0
      %3870 = vmatpush.xpose.msra.mxu0 0.0
      %3871 = vmatpush.xpose.msra.mxu0 0.0
      %3872 = vmatpush.xpose.msra.mxu0 0.0
      %3873 = vmatpush.xpose.msra.mxu0 0.0
      %3874 = vmatpush.xpose.msra.mxu0 0.0
      %3875 = vmatpush.xpose.msra.mxu0 0.0
      %3876 = vmatpush.xpose.msra.mxu0 0.0
      %3877 = vmatpush.xpose.msra.mxu0 0.0
      %3878 = vmatpush.xpose.msra.mxu0 0.0
      %3879 = vmatpush.xpose.msra.mxu0 0.0
      %3880 = vmatpush.xpose.msra.mxu0 0.0
      %3881 = vmatpush.xpose.msra.mxu0 0.0
      %3882 = vmatpush.xpose.msra.mxu0 0.0
      %3883 = vmatpush.xpose.msra.mxu0 %v3867
      %3884 = vmatpush.xpose.msra.mxu0 %v3865
      %3885 = vmatmul.f32.gmra.mxu0 %v3861
      %v3886 = vpop.f32.mrf.mxu0
      %v3887 = vadd.f32 0.0, %v3886
      %3888 = vmatmul.f32.gmra.mxu0 %v3863
      %v3889 = vpop.f32.mrf.mxu0
      %v3890 = vadd.f32 0.0, %v3889
      %3891 = vdwg.mxu0
      %3892 = vrot.lane.b32.xlu0 %v3784, 96
      %v3893 = vpop.permute.xlu0 %3892
      %3894 = vrot.lane.b32.xlu0 %v3786, 96
      %v3895 = vpop.permute.xlu0 %3894
      %v3896 = vsel %vm511, %v3770, 0
      %v3898 = vsel %vm511, %v3772, 0
      %v3900 = vsel %vm511, %v3893, 0
      %v3902 = vsel %vm511, %v3895, 0
      %3904 = vmatpush.xpose.msra.mxu0 0.0
      %3905 = vmatpush.xpose.msra.mxu0 0.0
      %3906 = vmatpush.xpose.msra.mxu0 0.0
      %3907 = vmatpush.xpose.msra.mxu0 0.0
      %3908 = vmatpush.xpose.msra.mxu0 0.0
      %3909 = vmatpush.xpose.msra.mxu0 0.0
      %3910 = vmatpush.xpose.msra.mxu0 0.0
      %3911 = vmatpush.xpose.msra.mxu0 0.0
      %3912 = vmatpush.xpose.msra.mxu0 0.0
      %3913 = vmatpush.xpose.msra.mxu0 0.0
      %3914 = vmatpush.xpose.msra.mxu0 0.0
      %3915 = vmatpush.xpose.msra.mxu0 0.0
      %3916 = vmatpush.xpose.msra.mxu0 0.0
      %3917 = vmatpush.xpose.msra.mxu0 0.0
      %3918 = vmatpush.xpose.msra.mxu0 %v3902
      %3919 = vmatpush.xpose.msra.mxu0 %v3900
      %3920 = vmatmul.f32.gmra.mxu0 %v3896
      %v3921 = vpop.f32.mrf.mxu0
      %v3922 = vadd.f32 0.0, %v3921
      %3923 = vmatmul.f32.gmra.mxu0 %v3898
      %v3924 = vpop.f32.mrf.mxu0
      %v3925 = vadd.f32 0.0, %v3924
      %3926 = vdwg.mxu0
      %v3927 = vmul.f32 %v3817, 0.35355338
      %v3928 = vmul.f32 %v3820, 0.35355338
      %v3929 = vmul.f32 %v3852, 0.35355338
      %v3930 = vmul.f32 %v3855, 0.35355338
      %v3931 = vmul.f32 %v3887, 0.35355338
      %v3932 = vmul.f32 %v3890, 0.35355338
      %v3933 = vmul.f32 %v3922, 0.35355338
      %v3934 = vmul.f32 %v3925, 0.35355338
      %v3935 = vsel %vm656, %v3927, -inf
      %3936 = vmax.xlane.f32.xlu0 %v3935
      %v3937 = vpop.xlane.xlu0 %3936
      %v3938 = vsel %vm656, %v3928, -inf
      %3939 = vmax.xlane.f32.xlu0 %v3938
      %v3940 = vpop.xlane.xlu0 %3939
      %v3941 = vsel %vm656, %v3929, -inf
      %3942 = vmax.xlane.f32.xlu0 %v3941
      %v3943 = vpop.xlane.xlu0 %3942
      %v3944 = vsel %vm656, %v3930, -inf
      %3945 = vmax.xlane.f32.xlu0 %v3944
      %v3946 = vpop.xlane.xlu0 %3945
      %v3947 = vsel %vm656, %v3931, -inf
      %3948 = vmax.xlane.f32.xlu0 %v3947
      %v3949 = vpop.xlane.xlu0 %3948
      %v3950 = vsel %vm656, %v3932, -inf
      %3951 = vmax.xlane.f32.xlu0 %v3950
      %v3952 = vpop.xlane.xlu0 %3951
      %v3953 = vsel %vm656, %v3933, -inf
      %3954 = vmax.xlane.f32.xlu0 %v3953
      %v3955 = vpop.xlane.xlu0 %3954
      %v3956 = vsel %vm656, %v3934, -inf
      %3957 = vmax.xlane.f32.xlu0 %v3956
      %v3958 = vpop.xlane.xlu0 %3957
      %v3959 = vsub.f32 %v3927, %v3937
      %v3960 = vsub.f32 %v3928, %v3940
      %v3961 = vsub.f32 %v3929, %v3943
      %v3962 = vsub.f32 %v3930, %v3946
      %v3963 = vsub.f32 %v3931, %v3949
      %v3964 = vsub.f32 %v3932, %v3952
      %v3965 = vsub.f32 %v3933, %v3955
      %v3966 = vsub.f32 %v3934, %v3958
      %v3967 = vmul.f32 %v3959, 1.442695
      %v3968 = vpow.pop %v3967
      %v3969 = vmul.f32 %v3960, 1.442695
      %v3970 = vpow.pop %v3969
      %v3971 = vmul.f32 %v3961, 1.442695
      %v3972 = vpow.pop %v3971
      %v3973 = vmul.f32 %v3962, 1.442695
      %v3974 = vpow.pop %v3973
      %v3975 = vmul.f32 %v3963, 1.442695
      %v3976 = vpow.pop %v3975
      %v3977 = vmul.f32 %v3964, 1.442695
      %v3978 = vpow.pop %v3977
      %v3979 = vmul.f32 %v3965, 1.442695
      %v3980 = vpow.pop %v3979
      %v3981 = vmul.f32 %v3966, 1.442695
      %v3982 = vpow.pop %v3981
      %v3983 = vsel %vm656, %v3968, 0.0
      %3984 = vadd.xlane.f32.xlu0 %v3983
      %v3985 = vpop.xlane.xlu0 %3984
      %v3986 = vsel %vm656, %v3970, 0.0
      %3987 = vadd.xlane.f32.xlu0 %v3986
      %v3988 = vpop.xlane.xlu0 %3987
      %v3989 = vsel %vm656, %v3972, 0.0
      %3990 = vadd.xlane.f32.xlu0 %v3989
      %v3991 = vpop.xlane.xlu0 %3990
      %v3992 = vsel %vm656, %v3974, 0.0
      %3993 = vadd.xlane.f32.xlu0 %v3992
      %v3994 = vpop.xlane.xlu0 %3993
      %v3995 = vsel %vm656, %v3976, 0.0
      %3996 = vadd.xlane.f32.xlu0 %v3995
      %v3997 = vpop.xlane.xlu0 %3996
      %v3998 = vsel %vm656, %v3978, 0.0
      %3999 = vadd.xlane.f32.xlu0 %v3998
      %v4000 = vpop.xlane.xlu0 %3999
      %v4001 = vsel %vm656, %v3980, 0.0
      %4002 = vadd.xlane.f32.xlu0 %v4001
      %v4003 = vpop.xlane.xlu0 %4002
      %v4004 = vsel %vm656, %v3982, 0.0
      %4005 = vadd.xlane.f32.xlu0 %v4004
      %v4006 = vpop.xlane.xlu0 %4005
      %v4007 = vrcp.pop %v3985
      %v4008 = vrcp.pop %v3988
      %v4009 = vrcp.pop %v3991
      %v4010 = vrcp.pop %v3994
      %v4011 = vrcp.pop %v3997
      %v4012 = vrcp.pop %v4000
      %v4013 = vrcp.pop %v4003
      %v4014 = vrcp.pop %v4006
      %v4015 = vmul.f32 %v3968, %v4007
      %v4016 = vmul.f32 %v3970, %v4008
      %v4017 = vmul.f32 %v3972, %v4009
      %v4018 = vmul.f32 %v3974, %v4010
      %v4019 = vmul.f32 %v3976, %v4011
      %v4020 = vmul.f32 %v3978, %v4012
      %v4021 = vmul.f32 %v3980, %v4013
      %v4022 = vmul.f32 %v3982, %v4014
      %4023 = vrot.lane.b32.xlu0 %v3754, 64
      %v4024 = vpop.permute.xlu0 %4023
      %4025 = vrot.lane.b32.xlu0 %v3757, 64
      %v4026 = vpop.permute.xlu0 %4025
      %v4030 = vsel %vm656, %v4015, 0
      %v4033 = vsel %vm656, %v4016, 0
      %4035 = vmatpush.msra.mxu0 0.0
      %4036 = vmatpush.msra.mxu0 0.0
      %4037 = vmatpush.msra.mxu0 0.0
      %4038 = vmatpush.msra.mxu0 0.0
      %4039 = vmatpush.msra.mxu0 0.0
      %4040 = vmatpush.msra.mxu0 0.0
      %4041 = vmatpush.msra.mxu0 0.0
      %4042 = vmatpush.msra.mxu0 0.0
      %4043 = vmatpush.msra.mxu0 0.0
      %4044 = vmatpush.msra.mxu0 0.0
      %4045 = vmatpush.msra.mxu0 0.0
      %4046 = vmatpush.msra.mxu0 0.0
      %4047 = vmatpush.msra.mxu0 0.0
      %4048 = vmatpush.msra.mxu0 0.0
      %4049 = vmatpush.msra.mxu0 %v4026
      %4050 = vmatpush.msra.mxu0 %v4024
      %4051 = vmatmul.f32.gmra.mxu0 %v4030
      %v4052 = vpop.f32.mrf.mxu0
      %v4053 = vadd.f32 0.0, %v4052
      %4054 = vmatmul.f32.gmra.mxu0 %v4033
      %v4055 = vpop.f32.mrf.mxu0
      %v4056 = vadd.f32 0.0, %v4055
      %4057 = vdwg.mxu0
      %4058 = vrot.lane.b32.xlu0 %v3776, 64
      %v4059 = vpop.permute.xlu0 %4058
      %4060 = vrot.lane.b32.xlu0 %v3778, 64
      %v4061 = vpop.permute.xlu0 %4060
      %v4065 = vsel %vm656, %v4017, 0
      %v4068 = vsel %vm656, %v4018, 0
      %4070 = vmatpush.msra.mxu0 0.0
      %4071 = vmatpush.msra.mxu0 0.0
      %4072 = vmatpush.msra.mxu0 0.0
      %4073 = vmatpush.msra.mxu0 0.0
      %4074 = vmatpush.msra.mxu0 0.0
      %4075 = vmatpush.msra.mxu0 0.0
      %4076 = vmatpush.msra.mxu0 0.0
      %4077 = vmatpush.msra.mxu0 0.0
      %4078 = vmatpush.msra.mxu0 0.0
      %4079 = vmatpush.msra.mxu0 0.0
      %4080 = vmatpush.msra.mxu0 0.0
      %4081 = vmatpush.msra.mxu0 0.0
      %4082 = vmatpush.msra.mxu0 0.0
      %4083 = vmatpush.msra.mxu0 0.0
      %4084 = vmatpush.msra.mxu0 %v4061
      %4085 = vmatpush.msra.mxu0 %v4059
      %4086 = vmatmul.f32.gmra.mxu0 %v4065
      %v4087 = vpop.f32.mrf.mxu0
      %v4088 = vadd.f32 0.0, %v4087
      %4089 = vmatmul.f32.gmra.mxu0 %v4068
      %v4090 = vpop.f32.mrf.mxu0
      %v4091 = vadd.f32 0.0, %v4090
      %4092 = vdwg.mxu0
      %4093 = vrot.lane.b32.xlu0 %v3780, 64
      %v4094 = vpop.permute.xlu0 %4093
      %4095 = vrot.lane.b32.xlu0 %v3782, 64
      %v4096 = vpop.permute.xlu0 %4095
      %v4100 = vsel %vm656, %v4019, 0
      %v4103 = vsel %vm656, %v4020, 0
      %4105 = vmatpush.msra.mxu0 0.0
      %4106 = vmatpush.msra.mxu0 0.0
      %4107 = vmatpush.msra.mxu0 0.0
      %4108 = vmatpush.msra.mxu0 0.0
      %4109 = vmatpush.msra.mxu0 0.0
      %4110 = vmatpush.msra.mxu0 0.0
      %4111 = vmatpush.msra.mxu0 0.0
      %4112 = vmatpush.msra.mxu0 0.0
      %4113 = vmatpush.msra.mxu0 0.0
      %4114 = vmatpush.msra.mxu0 0.0
      %4115 = vmatpush.msra.mxu0 0.0
      %4116 = vmatpush.msra.mxu0 0.0
      %4117 = vmatpush.msra.mxu0 0.0
      %4118 = vmatpush.msra.mxu0 0.0
      %4119 = vmatpush.msra.mxu0 %v4096
      %4120 = vmatpush.msra.mxu0 %v4094
      %4121 = vmatmul.f32.gmra.mxu0 %v4100
      %v4122 = vpop.f32.mrf.mxu0
      %v4123 = vadd.f32 0.0, %v4122
      %4124 = vmatmul.f32.gmra.mxu0 %v4103
      %v4125 = vpop.f32.mrf.mxu0
      %v4126 = vadd.f32 0.0, %v4125
      %4127 = vdwg.mxu0
      %4128 = vrot.lane.b32.xlu0 %v3784, 64
      %v4129 = vpop.permute.xlu0 %4128
      %4130 = vrot.lane.b32.xlu0 %v3786, 64
      %v4131 = vpop.permute.xlu0 %4130
      %v4135 = vsel %vm656, %v4021, 0
      %v4138 = vsel %vm656, %v4022, 0
      %4140 = vmatpush.msra.mxu0 0.0
      %4141 = vmatpush.msra.mxu0 0.0
      %4142 = vmatpush.msra.mxu0 0.0
      %4143 = vmatpush.msra.mxu0 0.0
      %4144 = vmatpush.msra.mxu0 0.0
      %4145 = vmatpush.msra.mxu0 0.0
      %4146 = vmatpush.msra.mxu0 0.0
      %4147 = vmatpush.msra.mxu0 0.0
      %4148 = vmatpush.msra.mxu0 0.0
      %4149 = vmatpush.msra.mxu0 0.0
      %4150 = vmatpush.msra.mxu0 0.0
      %4151 = vmatpush.msra.mxu0 0.0
      %4152 = vmatpush.msra.mxu0 0.0
      %4153 = vmatpush.msra.mxu0 0.0
      %4154 = vmatpush.msra.mxu0 %v4131
      %4155 = vmatpush.msra.mxu0 %v4129
      %4156 = vmatmul.f32.gmra.mxu0 %v4135
      %v4157 = vpop.f32.mrf.mxu0
      %v4158 = vadd.f32 0.0, %v4157
      %4159 = vmatmul.f32.gmra.mxu0 %v4138
      %v4160 = vpop.f32.mrf.mxu0
      %v4161 = vadd.f32 0.0, %v4160
      %4162 = vdwg.mxu0
      %4165 = vrot.lane.b32.xlu0 %v4088, 8
      %v4166 = vpop.permute.xlu0 %4165
      %4167 = vrot.lane.b32.xlu0 %v4091, 8
      %v4168 = vpop.permute.xlu0 %4167
      %4173 = vrot.lane.b32.xlu0 %v4123, 16
      %v4174 = vpop.permute.xlu0 %4173
      %4175 = vrot.lane.b32.xlu0 %v4126, 16
      %v4176 = vpop.permute.xlu0 %4175
      %4181 = vrot.lane.b32.xlu0 %v4158, 24
      %v4182 = vpop.permute.xlu0 %4181
      %4183 = vrot.lane.b32.xlu0 %v4161, 24
      %v4184 = vpop.permute.xlu0 %4183
      %v4187 = vsel %vm511, %v4053, %v4166
      %v4188 = vsel %vm511, %v4056, %v4168
      %v4189 = vsel %vm656, %v4187, %v4174
      %v4190 = vsel %vm656, %v4188, %v4176
      %v4191 = vsel %vm913, %v4189, %v4182
      %v4192 = vsel %vm913, %v4190, %v4184
      %v4193 = vperm.slane %v3705, 1
      %v4195 = vsel %vm463, %v4191, 0
      %v4198 = vsel %vm463, %v4192, 0
      %4200 = vmatpush.msra.mxu0 0.0
      %4201 = vmatpush.msra.mxu0 0.0
      %4202 = vmatpush.msra.mxu0 0.0
      %4203 = vmatpush.msra.mxu0 0.0
      %4204 = vmatpush.msra.mxu0 0.0
      %4205 = vmatpush.msra.mxu0 0.0
      %4206 = vmatpush.msra.mxu0 0.0
      %4207 = vmatpush.msra.mxu0 0.0
      %4208 = vmatpush.msra.mxu0 0.0
      %4209 = vmatpush.msra.mxu0 0.0
      %4210 = vmatpush.msra.mxu0 0.0
      %4211 = vmatpush.msra.mxu0 0.0
      %4212 = vmatpush.msra.mxu0 %v3703
      %4213 = vmatpush.msra.mxu0 %v3702
      %4214 = vmatpush.msra.mxu0 %v3701
      %4215 = vmatpush.msra.mxu0 %v3700
      %4216 = vmatmul.f32.gmra.mxu0 %v4195
      %v4217 = vpop.f32.mrf.mxu0
      %v4218 = vadd.f32 %v4193, %v4217
      %4219 = vmatmul.f32.gmra.mxu0 %v4198
      %v4220 = vpop.f32.mrf.mxu0
      %v4221 = vadd.f32 %v4193, %v4220
      %4222 = vdwg.mxu0
      %4225 = vrot.lane.b32.xlu0 %v4218, 32
      %v4226 = vpop.permute.xlu0 %4225
      %4227 = vrot.lane.b32.xlu0 %v4221, 32
      %v4228 = vpop.permute.xlu0 %4227
      %v4231 = vadd.f32 %v3697, %v4226
      %v4232 = vadd.f32 %v3698, %v4228
      %s4233 = scalar_lea.vmem %s5, 18
      %v4234 = vld [vmem:[%s4233] sm:$0x3]
      %v4235 = vsel %vm463, %v4231, 0.0
      %4236 = vadd.xlane.f32.xlu0 %v4235
      %v4237 = vpop.xlane.xlu0 %4236
      %v4238 = vsel %vm463, %v4232, 0.0
      %4239 = vadd.xlane.f32.xlu0 %v4238
      %v4240 = vpop.xlane.xlu0 %4239
      %v4241 = vmul.f32 %v4237, %v969
      %v4242 = vmul.f32 %v4240, %v969
      %v4243 = vsub.f32 %v4231, %v4241
      %v4244 = vsub.f32 %v4232, %v4242
      %v4245 = vmul.f32 %v4243, %v4243
      %v4246 = vmul.f32 %v4244, %v4244
      %v4247 = vsel %vm463, %v4245, 0.0
      %4248 = vadd.xlane.f32.xlu0 %v4247
      %v4249 = vpop.xlane.xlu0 %4248
      %v4250 = vsel %vm463, %v4246, 0.0
      %4251 = vadd.xlane.f32.xlu0 %v4250
      %v4252 = vpop.xlane.xlu0 %4251
      %v4253 = vmul.f32 %v4249, %v969
      %v4254 = vmul.f32 %v4252, %v969
      %v4255 = vadd.f32 %v4253, 1e-05
      %v4256 = vadd.f32 %v4254, 1e-05
      %v4257 = vrsqrt.pop %v4255
      %v4258 = vmul.f32 %v4257, %v4255
      %v4259 = vmul.f32 %v4258, %v4257
      %v4260 = vmul.f32 0.5, %v4259
      %v4261 = vsub.f32 1.5, %v4260
      %v4262 = vmul.f32 %v4257, %v4261
      %vm4263 = vweird.f32 %v4255
      %vm4264 = vweird.f32 %v4257
      %vm4265 = vmor %vm4263, %vm4264
      %v4266 = vsel %vm4265, %v4257, %v4262
      %v4267 = vrsqrt.pop %v4256
      %v4268 = vmul.f32 %v4267, %v4256
      %v4269 = vmul.f32 %v4268, %v4267
      %v4270 = vmul.f32 0.5, %v4269
      %v4271 = vsub.f32 1.5, %v4270
      %v4272 = vmul.f32 %v4267, %v4271
      %vm4273 = vweird.f32 %v4256
      %vm4274 = vweird.f32 %v4267
      %vm4275 = vmor %vm4273, %vm4274
      %v4276 = vsel %vm4275, %v4267, %v4272
      %v4277 = vmul.f32 %v4243, %v4266
      %v4278 = vmul.f32 %v4244, %v4276
      %v4279 = vperm.slane %v4234, 0
      %v4280 = vmul.f32 %v4277, %v4279
      %v4281 = vmul.f32 %v4278, %v4279
      %v4282 = vperm.slane %v4234, 1
      %v4283 = vadd.f32 %v4280, %v4282
      %v4284 = vadd.f32 %v4281, %v4282
      %s4285 = scalar_lea.vmem %s6, 96
      %v4286 = vld [vmem:[%s4285] sm:$0xff]
      %v4287 = vld [vmem:[%s4285 + $0x8] sm:$0xff]
      %v4288 = vld [vmem:[%s4285 + $0x10] sm:$0xff]
      %v4289 = vld [vmem:[%s4285 + $0x18] sm:$0xff]
      %s4290 = scalar_lea.vmem %s7, 192
      %v4291 = vld [vmem:[%s4290] sm:$0xff]
      %v4292 = vld [vmem:[%s4290 + $0x8] sm:$0xff]
      %v4293 = vld [vmem:[%s4290 + $0x10] sm:$0xff]
      %v4294 = vld [vmem:[%s4290 + $0x18] sm:$0xff]
      %v4295 = vld [vmem:[%s4290 + $0x20] sm:$0xff]
      %v4296 = vld [vmem:[%s4290 + $0x28] sm:$0xff]
      %v4297 = vld [vmem:[%s4290 + $0x30] sm:$0xff]
      %v4298 = vld [vmem:[%s4290 + $0x38] sm:$0xff]
      %s4299 = scalar_lea.vmem %s8, 6
      %v4300 = vld [vmem:[%s4299] sm:$0x3]
      %v4301 = vperm.slane %v4300, 0
      %v4303 = vsel %vm463, %v4283, 0
      %v4306 = vsel %vm463, %v4284, 0
      %4308 = vmatpush.msra.mxu0 0.0
      %4309 = vmatpush.msra.mxu0 0.0
      %4310 = vmatpush.msra.mxu0 0.0
      %4311 = vmatpush.msra.mxu0 0.0
      %4312 = vmatpush.msra.mxu0 0.0
      %4313 = vmatpush.msra.mxu0 0.0
      %4314 = vmatpush.msra.mxu0 0.0
      %4315 = vmatpush.msra.mxu0 0.0
      %4316 = vmatpush.msra.mxu0 0.0
      %4317 = vmatpush.msra.mxu0 0.0
      %4318 = vmatpush.msra.mxu0 0.0
      %4319 = vmatpush.msra.mxu0 0.0
      %4320 = vmatpush.msra.mxu0 %v4289
      %4321 = vmatpush.msra.mxu0 %v4288
      %4322 = vmatpush.msra.mxu0 %v4287
      %4323 = vmatpush.msra.mxu0 %v4286
      %4324 = vmatmul.f32.gmra.mxu0 %v4303
      %v4325 = vpop.f32.mrf.mxu0
      %v4326 = vadd.f32 %v4301, %v4325
      %4327 = vmatmul.f32.gmra.mxu0 %v4306
      %v4328 = vpop.f32.mrf.mxu0
      %v4329 = vadd.f32 %v4301, %v4328
      %4330 = vdwg.mxu0
      %v4331 = vmax.f32 %v4326, 0.0
      %v4332 = vmax.f32 %v4329, 0.0
      %v4333 = vperm.slane %v4300, 1
      %v4335 = vsel %vm1060, %v4331, 0
      %v4338 = vsel %vm1060, %v4332, 0
      %4340 = vmatpush.msra.mxu0 0.0
      %4341 = vmatpush.msra.mxu0 0.0
      %4342 = vmatpush.msra.mxu0 0.0
      %4343 = vmatpush.msra.mxu0 0.0
      %4344 = vmatpush.msra.mxu0 0.0
      %4345 = vmatpush.msra.mxu0 0.0
      %4346 = vmatpush.msra.mxu0 0.0
      %4347 = vmatpush.msra.mxu0 0.0
      %4348 = vmatpush.msra.mxu0 %v4298
      %4349 = vmatpush.msra.mxu0 %v4297
      %4350 = vmatpush.msra.mxu0 %v4296
      %4351 = vmatpush.msra.mxu0 %v4295
      %4352 = vmatpush.msra.mxu0 %v4294
      %4353 = vmatpush.msra.mxu0 %v4293
      %4354 = vmatpush.msra.mxu0 %v4292
      %4355 = vmatpush.msra.mxu0 %v4291
      %4356 = vmatmul.f32.gmra.mxu0 %v4335
      %v4357 = vpop.f32.mrf.mxu0
      %4358 = vmatmul.f32.gmra.mxu0 %v4338
      %v4359 = vpop.f32.mrf.mxu0
      %v4360 = vadd.f32 %v4333, %v4359
      %4361 = vdwg.mxu0
      %v4362 = vadd.f32 %v4284, %v4360
      %s4363 = scalar_lea.vmem %s5, 20
      %v4364 = vld [vmem:[%s4363] sm:$0x3]
      %v4365 = vsel %vm463, %v4362, 0.0
      %4366 = vadd.xlane.f32.xlu0 %v4365
      %v4367 = vpop.xlane.xlu0 %4366
      %v4368 = vmul.f32 %v4367, %v969
      %v4369 = vsub.f32 %v4362, %v4368
      %v4370 = vmul.f32 %v4369, %v4369
      %v4371 = vsel %vm463, %v4370, 0.0
      %4372 = vadd.xlane.f32.xlu0 %v4371
      %v4373 = vpop.xlane.xlu0 %4372
      %v4374 = vmul.f32 %v4373, %v969
      %v4375 = vadd.f32 %v4374, 1e-05
      %v4376 = vrsqrt.pop %v4375
      %v4377 = vmul.f32 %v4376, %v4375
      %v4378 = vmul.f32 %v4377, %v4376
      %v4379 = vmul.f32 0.5, %v4378
      %v4380 = vsub.f32 1.5, %v4379
      %v4381 = vmul.f32 %v4376, %v4380
      %vm4382 = vweird.f32 %v4375
      %vm4383 = vweird.f32 %v4376
      %vm4384 = vmor %vm4382, %vm4383
      %v4385 = vsel %vm4384, %v4376, %v4381
      %v4386 = vmul.f32 %v4369, %v4385
      %v4387 = vperm.slane %v4364, 0
      %v4388 = vmul.f32 %v4386, %v4387
      %v4389 = vperm.slane %v4364, 1
      %v4390 = vadd.f32 %v4388, %v4389
      %s4391 = scalar_lea.vmem %s5, 22
      %v4392 = vld [vmem:[%s4391] sm:$0x3]
      %v4393 = vsel %vm463, %v4390, 0.0
      %4394 = vadd.xlane.f32.xlu0 %v4393
      %v4395 = vpop.xlane.xlu0 %4394
      %v4396 = vmul.f32 %v4395, %v969
      %v4397 = vsub.f32 %v4390, %v4396
      %v4398 = vmul.f32 %v4397, %v4397
      %v4399 = vsel %vm463, %v4398, 0.0
      %4400 = vadd.xlane.f32.xlu0 %v4399
      %v4401 = vpop.xlane.xlu0 %4400
      %v4402 = vmul.f32 %v4401, %v969
      %v4403 = vadd.f32 %v4402, 1e-05
      %v4404 = vrsqrt.pop %v4403
      %v4405 = vmul.f32 %v4404, %v4403
      %v4406 = vmul.f32 %v4405, %v4404
      %v4407 = vmul.f32 0.5, %v4406
      %v4408 = vsub.f32 1.5, %v4407
      %v4409 = vmul.f32 %v4404, %v4408
      %vm4410 = vweird.f32 %v4403
      %vm4411 = vweird.f32 %v4404
      %vm4412 = vmor %vm4410, %vm4411
      %v4413 = vsel %vm4412, %v4404, %v4409
      %v4414 = vmul.f32 %v4397, %v4413
      %v4415 = vperm.slane %v4392, 0
      %v4416 = vmul.f32 %v4414, %v4415
      %v4417 = vperm.slane %v4392, 1
      %v4418 = vadd.f32 %v4416, %v4417
      %v4419 = vld [vmem:[%s9] sm:$0xff]
      %v4420 = vld [vmem:[%s9 + $0x8] sm:$0xff]
      %v4421 = vld [vmem:[%s9 + $0x10] sm:$0xff]
      %v4422 = vld [vmem:[%s9 + $0x18] sm:$0xff]
      %v4423 = vld [vmem:[%s9 + $0x20] sm:$0x1]
      %v4424 = vperm.slane %v4423, 0
      %v4426 = vsel %vm463, %v4418, 0
      %4428 = vmatpush.msra.mxu0 0.0
      %4429 = vmatpush.msra.mxu0 0.0
      %4430 = vmatpush.msra.mxu0 0.0
      %4431 = vmatpush.msra.mxu0 0.0
      %4432 = vmatpush.msra.mxu0 0.0
      %4433 = vmatpush.msra.mxu0 0.0
      %4434 = vmatpush.msra.mxu0 0.0
      %4435 = vmatpush.msra.mxu0 0.0
      %4436 = vmatpush.msra.mxu0 0.0
      %4437 = vmatpush.msra.mxu0 0.0
      %4438 = vmatpush.msra.mxu0 0.0
      %4439 = vmatpush.msra.mxu0 0.0
      %4440 = vmatpush.msra.mxu0 %v4422
      %4441 = vmatpush.msra.mxu0 %v4421
      %4442 = vmatpush.msra.mxu0 %v4420
      %4443 = vmatpush.msra.mxu0 %v4419
      %4444 = vmatmul.f32.gmra.mxu0 %v4426
      %v4445 = vpop.f32.mrf.mxu0
      %v4446 = vadd.f32 %v4424, %v4445
      %4447 = vdwg.mxu0
      %vm4448 = vcmask 31744
      %4449 = vst.msk [vmem:[%s381] sm:$0xff] %vm4448, %v4446
      %p4450 = scmp.lt.s32.totalorder %s21, 1
      %s4451 = scalar_select %p4450, %s21, 1
      %s4452 = smul.addr %s4451, 8
      %s4453 = scalar_lea.vmem %s10, %s4452
      // Predicated region
      $region61: #{forward.1} parent=59 // pred_check
        %p4454 = pneg %p259
      $region62: #{forward.1} parent=59 // pred_check_branch
        %4456 = sbr.rel (%p4454) target = $region64
      $region63: #{forward.1} parent=59 // pred_region
        _
      $region64: #{forward.1} parent=59 // pred_fallthru
        _
    $region60: #{forward.1} parent=5 // pred_fallthru
      _
    %p4457 = scmp.le.s32.totalorder 2, %s16
    // Predicated region
    $region65: #{forward.1} parent=5 // pred_check
      %p4458 = pneg %p4457
    $region66: #{forward.1} parent=5 // pred_check_branch
      %4460 = sbr.rel (%p4458) target = $region68
    $region67: #{forward.1} parent=5 // pred_region
      %s4461 = ssub.s32 %s16, 2
      // Predicated region
      $region69: #{forward.1} parent=67 // pred_check
        %p4462 = pneg %p265
      $region70: #{forward.1} parent=67 // pred_check_branch
        %4464 = sbr.rel (%p4462) target = $region72
      $region71: #{forward.1} parent=67 // pred_region
        %p4465 = scmp.lt.s32.totalorder %s22, 1
        %s4466 = scalar_select %p4465, %s22, 1
        %s4467 = smul.addr %s4466, 8
        %s4468 = scalar_lea.vmem %s10, %s4467
      $region72: #{forward.1} parent=67 // pred_fallthru
        _
    $region68: #{forward.1} parent=5 // pred_fallthru
      _
  $region6: #{forward.1} parent=0 // loop_footer
    %s20 = sadd.s32 1, %s16
  $region7: #{forward.1} parent=0 // loop_footer_branch
    %15 = sbr.rel target = $region3
  $region8: #{forward.1} parent=0 // loop_exit
    _

</llo_original>
